<compile_context>
chip_gen: v7x
topology: tpu7x:2x2x1
jax: 0.10.0
libtpu: 0.0.40
codegen_flags: <defaults>
</compile_context>

<pallas_src>
import jax
import jax.numpy as jnp
from jax import lax
from jax.experimental import pallas as pl
from jax.experimental.pallas import tpu as pltpu

# ---------------- model hyper-parameters (small, consistent with the module) --------
B = 8            # batch of independent graphs (amortizes launch overhead)
N = 16           # number of graph nodes per graph
DIN = 32         # in_dim
DH = 8           # out_dim per head
H = 4            # num_heads
NEG_SLOPE = 0.01  # F.leaky_relu default
_HIGH = lax.Precision.HIGHEST   # keep f32 accuracy through the folded projections


# ---------------- fused multi-head GAT kernel (one graph per grid step) --------------
def gat_kernel(x_ref, mask_ref, w_ref, wattn_ref, o_ref):
    x = x_ref[...]                                                       # (N, DIN)

    # fused per-head fc: one (N, DIN) x (DIN, H*DH) matmul; head h owns columns
    # [h*DH : (h+1)*DH] of z (same layout as torch.cat(head_out, dim=1)).
    z = jnp.dot(x, w_ref[...], preferred_element_type=jnp.float32,
                precision=_HIGH)                                         # (N, H*DH)

    # all per-head attention scores in ONE push, already head-major (no transposes):
    # s[h, u]   = a_src[h] . z_u(head h)   for h in [0, H)
    # s[H+h, v] = a_dst[h] . z_v(head h)
    s = lax.dot_general(wattn_ref[...], x,
                        dimension_numbers=(((1,), (1,)), ((), ())),
                        preferred_element_type=jnp.float32,
                        precision=_HIGH)                                 # (2H, N)
    s_src = s[:H]                                                        # (H, N_u)
    s_dst = s[H:]                                                        # (H, N_v)

    # edge logits, batched over heads: e[h, v, u] = leaky_relu(s_src[h,u] + s_dst[h,v])
    e = s_dst[:, :, None] + s_src[:, None, :]                            # (H, N, N)
    e = jnp.where(e >= 0, e, NEG_SLOPE * e)                              # LeakyReLU
    e = e + mask_ref[...][None, :, :]                                    # -1e30 off-edges

    # masked softmax over in-neighbours u (last / lane axis)
    m = jnp.max(e, axis=-1, keepdims=True)
    p = jnp.exp(e - m)
    denom = jnp.sum(p, axis=-1, keepdims=True)                           # >= 1 (self-loop)
    r = pl.reciprocal(denom, approx=True)                # EUP seed (free slot)
    r = r * (2.0 - denom * r)                            # Newton step 1 (VPU)
    r = r * (2.0 - denom * r)                            # Newton step 2 -> f32 accurate
    alpha = p * r                                                        # (H, N, N)

    # per-head aggregation h_v = sum_u alpha[v,u] * z_u, written directly into static
    # slices of the output ref (free views; no lane-axis concatenate relayout).
    for hh in range(H):
        o_ref[:, hh * DH:(hh + 1) * DH] = jnp.dot(
            alpha[hh], z[:, hh * DH:(hh + 1) * DH],
            preferred_element_type=jnp.float32, precision=_HIGH)


# ---------------- wrapper -------------------------------------------------------------
@jax.jit
def multi_head_gat(x, adj_bias, w_all, w_attn_t):
    """x: (B, N, DIN) node features per graph. adj_bias: (B, N, N) additive mask
    (0 on edges / -1e30 elsewhere). Returns concatenated head outputs (B, N, H*DH)."""
    return pl.pallas_call(
        gat_kernel,
        out_shape=jax.ShapeDtypeStruct((B, N, H * DH), jnp.float32),
        grid=(B,),
        in_specs=[
            pl.BlockSpec((None, N, DIN), lambda b: (b, 0, 0)),          # x[b]
            pl.BlockSpec((None, N, N), lambda b: (b, 0, 0)),            # adj_bias[b]
            pl.BlockSpec((DIN, H * DH), lambda b: (0, 0)),              # w_all (resident)
            pl.BlockSpec((2 * H, DIN), lambda b: (0, 0)),               # w_attn_t (resident)
        ],
        out_specs=pl.BlockSpec((None, N, H * DH), lambda b: (b, 0, 0)),
        compiler_params=pltpu.CompilerParams(
            dimension_semantics=("parallel",)),
    )(x, adj_bias, w_all, w_attn_t)


# ---------------- pure-JAX reference (per head, matches the PyTorch/DGL module) -------
def reference_single(x, w_heads, a_src, a_dst, adj):
    outs = []
    for hh in range(H):
        z = jnp.dot(x, w_heads[hh], precision=_HIGH)                    # fc (no bias)
        ss = jnp.dot(z, a_src[hh], precision=_HIGH)                     # (N,)
        sd = jnp.dot(z, a_dst[hh], precision=_HIGH)                     # (N,)
        e = sd[:, None] + ss[None, :]                                   # e[v, u]
        e = jnp.where(e >= 0, e, NEG_SLOPE * e)                         # leaky_relu
        e = jnp.where(adj, e, -jnp.inf)                                 # only in-edges
        alpha = jax.nn.softmax(e, axis=-1)
        outs.append(jnp.dot(alpha, z, precision=_HIGH))
    return jnp.concatenate(outs, axis=-1)


# ---------------- deterministic parameter init ----------------------------------------
def init_params(key):
    gain = 2.0 ** 0.5                       # nn.init.calculate_gain('relu')
    k_fc, k_attn = jax.random.split(key)

    # per-head fc weights (xavier_normal_): (H, DIN, DH); fused as (DIN, H*DH)
    std_fc = gain * (2.0 / (DIN + DH)) ** 0.5
    w_heads = std_fc * jax.random.normal(k_fc, (H, DIN, DH), jnp.float32)
    w_all = jnp.concatenate([w_heads[hh] for hh in range(H)], axis=1)    # (DIN, H*DH)

    # attn_fc weight (1, 2*DH) per head -> a_src = first DH entries, a_dst = last DH
    std_a = gain * (2.0 / (2 * DH + 1)) ** 0.5
    a = std_a * jax.random.normal(k_attn, (H, 2 * DH), jnp.float32)
    a_src, a_dst = a[:, :DH], a[:, DH:]

    # Fold attention projections into the node-feature weights ONCE, at init:
    # w_attn_t[h]   = (W_h @ a_src[h])^T  -> src scores
    # w_attn_t[H+h] = (W_h @ a_dst[h])^T  -> dst scores
    w_src_t = jnp.einsum('hdk,hk->hd', w_heads, a_src, precision=_HIGH)  # (H, DIN)
    w_dst_t = jnp.einsum('hdk,hk->hd', w_heads, a_dst, precision=_HIGH)  # (H, DIN)
    w_attn_t = jnp.concatenate([w_src_t, w_dst_t], axis=0)               # (2H, DIN)

    return dict(w_heads=w_heads, a_src=a_src, a_dst=a_dst,
                w_all=w_all, w_attn_t=w_attn_t)


if __name__ == "__main__":
    key = jax.random.PRNGKey(0)
    k_x, k_adj, k_par = jax.random.split(key, 3)

    # node features for B independent graphs
    x = jax.random.normal(k_x, (B, N, DIN), jnp.float32)

    # deterministic random graphs + self-loops (every node has >= 1 in-edge).
    adj = jnp.logical_or(jax.random.bernoulli(k_adj, 0.3, (B, N, N)),
                         jnp.eye(N, dtype=bool)[None])          # adj[b, v, u]: u -> v
    # Invariant that makes the -1e30 additive mask equivalent to -inf softmax masking:
    assert bool(jnp.all(jnp.diagonal(adj, axis1=-2, axis2=-1))), "self-loops required"
    adj_bias = jnp.where(adj, 0.0, -1e30).astype(jnp.float32)   # hoisted softmax mask

    params = init_params(k_par)

    out = multi_head_gat(x, adj_bias, params['w_all'], params['w_attn_t'])
    out = jax.block_until_ready(out)

    ref = jnp.stack([reference_single(x[b], params['w_heads'], params['a_src'],
                                      params['a_dst'], adj[b]) for b in range(B)])
    assert out.shape == (B, N, H * DH)
    assert jnp.allclose(out, ref, atol=1e-4, rtol=1e-4), \
        f"max abs diff = {jnp.max(jnp.abs(out - ref))}"

    print("KERNEL_OK")
</pallas_src>

<mosaic_0001>
module attributes {stable_mosaic.version = 11 : i64} {
  func.func @gat_kernel(%arg0: i32, %arg1: memref<1x16x32xf32, #tpu.memory_space<vmem>>, %arg2: memref<1x16x16xf32, #tpu.memory_space<vmem>>, %arg3: memref<32x32xf32, #tpu.memory_space<vmem>>, %arg4: memref<8x32xf32, #tpu.memory_space<vmem>>, %arg5: memref<1x16x32xf32, #tpu.memory_space<vmem>>) attributes {dimension_semantics = [#tpu.dimension_semantics<parallel>], iteration_bounds = array<i64: 8>, scalar_prefetch = 0 : i64, scratch_operands = 0 : i64, tpu.core_type = #tpu.core_type<tc>, window_params = [{transform_indices = @transform_0, window_bounds = array<i64: 1, 16, 32>}, {transform_indices = @transform_1, window_bounds = array<i64: 1, 16, 16>}, {pipeline_mode = #tpu.pipeline_mode<synchronous>, transform_indices = @transform_2, window_bounds = array<i64: 32, 32>}, {pipeline_mode = #tpu.pipeline_mode<synchronous>, transform_indices = @transform_3, window_bounds = array<i64: 8, 32>}, {transform_indices = @transform_4, window_bounds = array<i64: 1, 16, 32>}]} {
    %c0 = arith.constant 0 : index
    %c0_0 = arith.constant 0 : index
    %c0_1 = arith.constant 0 : index
    %0 = vector.load %arg1[%c0, %c0_0, %c0_1] : memref<1x16x32xf32, #tpu.memory_space<vmem>>, vector<1x16x32xf32>
    %1 = vector.shape_cast %0 : vector<1x16x32xf32> to vector<16x32xf32>
    %c0_2 = arith.constant 0 : index
    %c0_3 = arith.constant 0 : index
    %2 = vector.load %arg3[%c0_2, %c0_3] : memref<32x32xf32, #tpu.memory_space<vmem>>, vector<32x32xf32>
    %cst = arith.constant dense<0.000000e+00> : vector<16x32xf32>
    %3 = tpu.matmul %1, %2, %cst {dimension_numbers = #tpu.dot_dimension_numbers<[1], [0], [0], [1], [0, 0, 1, 1], [], []>, precision = #tpu.contract_precision<fp32>} : vector<16x32xf32>, vector<32x32xf32>, vector<16x32xf32> -> vector<16x32xf32>
    %c0_4 = arith.constant 0 : index
    %c0_5 = arith.constant 0 : index
    %4 = vector.load %arg4[%c0_4, %c0_5] : memref<8x32xf32, #tpu.memory_space<vmem>>, vector<8x32xf32>
    %cst_6 = arith.constant dense<0.000000e+00> : vector<8x16xf32>
    %5 = tpu.matmul %4, %1, %cst_6 {dimension_numbers = #tpu.dot_dimension_numbers<[1], [1], [0], [0], [0, 0, 1, 0], [], []>, precision = #tpu.contract_precision<fp32>} : vector<8x32xf32>, vector<16x32xf32>, vector<8x16xf32> -> vector<8x16xf32>
    %6 = vector.extract_strided_slice %5 {offsets = [0, 0], sizes = [4, 16], strides = [1, 1]} : vector<8x16xf32> to vector<4x16xf32>
    %7 = vector.extract_strided_slice %5 {offsets = [4, 0], sizes = [4, 16], strides = [1, 1]} : vector<8x16xf32> to vector<4x16xf32>
    %8 = vector.shape_cast %7 : vector<4x16xf32> to vector<4x16x1xf32>
    %9 = vector.shape_cast %6 : vector<4x16xf32> to vector<4x1x16xf32>
    %10 = vector.broadcast %8 : vector<4x16x1xf32> to vector<4x16x16xf32>
    %11 = vector.broadcast %9 : vector<4x1x16xf32> to vector<4x16x16xf32>
    %12 = arith.addf %10, %11 : vector<4x16x16xf32>
    %cst_7 = arith.constant 0.000000e+00 : f32
    %13 = vector.broadcast %cst_7 : f32 to vector<4x16x16xf32>
    %14 = arith.cmpf oge, %12, %13 : vector<4x16x16xf32>
    %cst_8 = arith.constant 0.00999999977 : f32
    %15 = vector.broadcast %cst_8 : f32 to vector<4x16x16xf32>
    %16 = arith.mulf %15, %12 : vector<4x16x16xf32>
    %17 = arith.select %14, %12, %16 : vector<4x16x16xi1>, vector<4x16x16xf32>
    %c0_9 = arith.constant 0 : index
    %c0_10 = arith.constant 0 : index
    %c0_11 = arith.constant 0 : index
    %18 = vector.load %arg2[%c0_9, %c0_10, %c0_11] : memref<1x16x16xf32, #tpu.memory_space<vmem>>, vector<1x16x16xf32>
    %19 = vector.shape_cast %18 : vector<1x16x16xf32> to vector<16x16xf32>
    %20 = vector.shape_cast %19 : vector<16x16xf32> to vector<1x16x16xf32>
    %21 = vector.broadcast %20 : vector<1x16x16xf32> to vector<4x16x16xf32>
    %22 = arith.addf %17, %21 : vector<4x16x16xf32>
    %cst_12 = arith.constant dense<0xFF800000> : vector<4x16xf32>
    %23 = vector.multi_reduction <maximumf>, %22, %cst_12 [2] : vector<4x16x16xf32> to vector<4x16xf32>
    %24 = vector.shape_cast %23 : vector<4x16xf32> to vector<4x16x1xf32>
    %25 = vector.broadcast %24 : vector<4x16x1xf32> to vector<4x16x16xf32>
    %26 = arith.subf %22, %25 : vector<4x16x16xf32>
    %27 = math.exp %26 : vector<4x16x16xf32>
    %cst_13 = arith.constant dense<0.000000e+00> : vector<4x16xf32>
    %28 = vector.multi_reduction <add>, %27, %cst_13 [2] : vector<4x16x16xf32> to vector<4x16xf32>
    %29 = vector.shape_cast %28 : vector<4x16xf32> to vector<4x16x1xf32>
    %30 = tpu.reciprocal %29 {approx = true} : vector<4x16x1xf32> -> vector<4x16x1xf32>
    %31 = arith.mulf %29, %30 : vector<4x16x1xf32>
    %cst_14 = arith.constant 2.000000e+00 : f32
    %32 = vector.broadcast %cst_14 : f32 to vector<4x16x1xf32>
    %33 = arith.subf %32, %31 : vector<4x16x1xf32>
    %34 = arith.mulf %30, %33 : vector<4x16x1xf32>
    %35 = arith.mulf %29, %34 : vector<4x16x1xf32>
    %cst_15 = arith.constant 2.000000e+00 : f32
    %36 = vector.broadcast %cst_15 : f32 to vector<4x16x1xf32>
    %37 = arith.subf %36, %35 : vector<4x16x1xf32>
    %38 = arith.mulf %34, %37 : vector<4x16x1xf32>
    %39 = vector.broadcast %38 : vector<4x16x1xf32> to vector<4x16x16xf32>
    %40 = arith.mulf %27, %39 : vector<4x16x16xf32>
    %41 = vector.extract_strided_slice %40 {offsets = [0, 0, 0], sizes = [1, 16, 16], strides = [1, 1, 1]} : vector<4x16x16xf32> to vector<1x16x16xf32>
    %42 = vector.shape_cast %41 : vector<1x16x16xf32> to vector<16x16xf32>
    %43 = vector.extract_strided_slice %3 {offsets = [0, 0], sizes = [16, 8], strides = [1, 1]} : vector<16x32xf32> to vector<16x8xf32>
    %cst_16 = arith.constant dense<0.000000e+00> : vector<16x8xf32>
    %44 = tpu.matmul %42, %43, %cst_16 {dimension_numbers = #tpu.dot_dimension_numbers<[1], [0], [0], [1], [0, 0, 1, 1], [], []>, precision = #tpu.contract_precision<fp32>} : vector<16x16xf32>, vector<16x8xf32>, vector<16x8xf32> -> vector<16x8xf32>
    %c0_17 = arith.constant 0 : index
    %c0_18 = arith.constant 0 : index
    %c0_19 = arith.constant 0 : index
    %45 = vector.load %arg5[%c0_17, %c0_18, %c0_19] : memref<1x16x32xf32, #tpu.memory_space<vmem>>, vector<1x16x8xf32>
    %46 = vector.shape_cast %45 : vector<1x16x8xf32> to vector<16x8xf32>
    %47 = vector.shape_cast %44 : vector<16x8xf32> to vector<1x16x8xf32>
    tpu.vector_store %arg5[%c0_17, %c0_18, %c0_19], %47 {strides = array<i32>} : memref<1x16x32xf32, #tpu.memory_space<vmem>>, vector<1x16x8xf32>,
    %48 = vector.extract_strided_slice %40 {offsets = [1, 0, 0], sizes = [1, 16, 16], strides = [1, 1, 1]} : vector<4x16x16xf32> to vector<1x16x16xf32>
    %49 = vector.shape_cast %48 : vector<1x16x16xf32> to vector<16x16xf32>
    %50 = vector.extract_strided_slice %3 {offsets = [0, 8], sizes = [16, 8], strides = [1, 1]} : vector<16x32xf32> to vector<16x8xf32>
    %cst_20 = arith.constant dense<0.000000e+00> : vector<16x8xf32>
    %51 = tpu.matmul %49, %50, %cst_20 {dimension_numbers = #tpu.dot_dimension_numbers<[1], [0], [0], [1], [0, 0, 1, 1], [], []>, precision = #tpu.contract_precision<fp32>} : vector<16x16xf32>, vector<16x8xf32>, vector<16x8xf32> -> vector<16x8xf32>
    %c0_21 = arith.constant 0 : index
    %c0_22 = arith.constant 0 : index
    %c8 = arith.constant 8 : index
    %52 = vector.load %arg5[%c0_21, %c0_22, %c8] : memref<1x16x32xf32, #tpu.memory_space<vmem>>, vector<1x16x8xf32>
    %53 = vector.shape_cast %52 : vector<1x16x8xf32> to vector<16x8xf32>
    %54 = vector.shape_cast %51 : vector<16x8xf32> to vector<1x16x8xf32>
    tpu.vector_store %arg5[%c0_21, %c0_22, %c8], %54 {strides = array<i32>} : memref<1x16x32xf32, #tpu.memory_space<vmem>>, vector<1x16x8xf32>,
    %55 = vector.extract_strided_slice %40 {offsets = [2, 0, 0], sizes = [1, 16, 16], strides = [1, 1, 1]} : vector<4x16x16xf32> to vector<1x16x16xf32>
    %56 = vector.shape_cast %55 : vector<1x16x16xf32> to vector<16x16xf32>
    %57 = vector.extract_strided_slice %3 {offsets = [0, 16], sizes = [16, 8], strides = [1, 1]} : vector<16x32xf32> to vector<16x8xf32>
    %cst_23 = arith.constant dense<0.000000e+00> : vector<16x8xf32>
    %58 = tpu.matmul %56, %57, %cst_23 {dimension_numbers = #tpu.dot_dimension_numbers<[1], [0], [0], [1], [0, 0, 1, 1], [], []>, precision = #tpu.contract_precision<fp32>} : vector<16x16xf32>, vector<16x8xf32>, vector<16x8xf32> -> vector<16x8xf32>
    %c0_24 = arith.constant 0 : index
    %c0_25 = arith.constant 0 : index
    %c16 = arith.constant 16 : index
    %59 = vector.load %arg5[%c0_24, %c0_25, %c16] : memref<1x16x32xf32, #tpu.memory_space<vmem>>, vector<1x16x8xf32>
    %60 = vector.shape_cast %59 : vector<1x16x8xf32> to vector<16x8xf32>
    %61 = vector.shape_cast %58 : vector<16x8xf32> to vector<1x16x8xf32>
    tpu.vector_store %arg5[%c0_24, %c0_25, %c16], %61 {strides = array<i32>} : memref<1x16x32xf32, #tpu.memory_space<vmem>>, vector<1x16x8xf32>,
    %62 = vector.extract_strided_slice %40 {offsets = [3, 0, 0], sizes = [1, 16, 16], strides = [1, 1, 1]} : vector<4x16x16xf32> to vector<1x16x16xf32>
    %63 = vector.shape_cast %62 : vector<1x16x16xf32> to vector<16x16xf32>
    %64 = vector.extract_strided_slice %3 {offsets = [0, 24], sizes = [16, 8], strides = [1, 1]} : vector<16x32xf32> to vector<16x8xf32>
    %cst_26 = arith.constant dense<0.000000e+00> : vector<16x8xf32>
    %65 = tpu.matmul %63, %64, %cst_26 {dimension_numbers = #tpu.dot_dimension_numbers<[1], [0], [0], [1], [0, 0, 1, 1], [], []>, precision = #tpu.contract_precision<fp32>} : vector<16x16xf32>, vector<16x8xf32>, vector<16x8xf32> -> vector<16x8xf32>
    %c0_27 = arith.constant 0 : index
    %c0_28 = arith.constant 0 : index
    %c24 = arith.constant 24 : index
    %66 = vector.load %arg5[%c0_27, %c0_28, %c24] : memref<1x16x32xf32, #tpu.memory_space<vmem>>, vector<1x16x8xf32>
    %67 = vector.shape_cast %66 : vector<1x16x8xf32> to vector<16x8xf32>
    %68 = vector.shape_cast %65 : vector<16x8xf32> to vector<1x16x8xf32>
    tpu.vector_store %arg5[%c0_27, %c0_28, %c24], %68 {strides = array<i32>} : memref<1x16x32xf32, #tpu.memory_space<vmem>>, vector<1x16x8xf32>,
    return
  }
  func.func @transform_0(%arg0: i32) -> (i32, i32, i32) {
    %c0_i32 = arith.constant 0 : i32
    %c0_i32_0 = arith.constant 0 : i32
    %c0_i32_1 = arith.constant 0 : i32
    return %arg0, %c0_i32, %c0_i32_0 : i32, i32, i32
  }
  func.func @transform_1(%arg0: i32) -> (i32, i32, i32) {
    %c0_i32 = arith.constant 0 : i32
    %c0_i32_0 = arith.constant 0 : i32
    %c0_i32_1 = arith.constant 0 : i32
    return %arg0, %c0_i32, %c0_i32_0 : i32, i32, i32
  }
  func.func @transform_2(%arg0: i32) -> (i32, i32) {
    %c0_i32 = arith.constant 0 : i32
    %c0_i32_0 = arith.constant 0 : i32
    %c0_i32_1 = arith.constant 0 : i32
    return %c0_i32, %c0_i32_0 : i32, i32
  }
  func.func @transform_3(%arg0: i32) -> (i32, i32) {
    %c0_i32 = arith.constant 0 : i32
    %c0_i32_0 = arith.constant 0 : i32
    %c0_i32_1 = arith.constant 0 : i32
    return %c0_i32, %c0_i32_0 : i32, i32
  }
  func.func @transform_4(%arg0: i32) -> (i32, i32, i32) {
    %c0_i32 = arith.constant 0 : i32
    %c0_i32_0 = arith.constant 0 : i32
    %c0_i32_1 = arith.constant 0 : i32
    return %arg0, %c0_i32, %c0_i32_0 : i32, i32, i32
  }
}

</mosaic_0001>

<llo_original>
// kernel: multi_head_gat.1
$region0: #{multi_head_gat.1}
  #allocation0 [shape = 'u32[]', space=smem, size = 0x4, offset = 0x4, fixed_abs, tag = 'smem constant byte address 0x4 - core index']
  #allocation1 [shape = 'u32[144,128]{1,0:T(1,128)}', space=vmem, size = 0x12000, scoped, tag = 'internal scratch']
  %s0 = inlined_call_operand.hbm [shape: f32[8,16,32], index: 0, kind: input, shape index: {}]
  %s1 = inlined_call_operand.hbm [shape: f32[8,16,16], index: 1, kind: input, shape index: {}]
  %s2 = inlined_call_operand.hbm [shape: f32[32,32], index: 2, kind: input, shape index: {}]
  %s3 = inlined_call_operand.vmem [shape: f32[8,32], index: 3, kind: input, shape index: {}]
  %s4 = inlined_call_operand.hbm [shape: f32[8,16,32], index: 4, kind: output, shape index: {}]
  %s5 = sld [smem:[#allocation0]]
  $region61: #{multi_head_gat.1} parent=0
    _
  %s7 = ssub.s32 1, %s5
  %s8 = scalar_select 0, %s7, %s5
  $region1: #{multi_head_gat.1} parent=0
    #allocation2 [shape = 'u8[16384]{0}', space=vmem, size = 0x4000, scoped, tag = 'input window, operand 0']
    #allocation3 [shape = 's32[2]{0}', space=sflag, size = 0x8, scoped, tag = 'scoped memory for multi_head_gat.1']
    #allocation4 [shape = 's32[2]{0}', space=sflag, size = 0x8, scoped, tag = 'scoped memory for multi_head_gat.1']
    #allocation5 [shape = 'u8[16384]{0}', space=vmem, size = 0x4000, scoped, tag = 'input window, operand 1']
    #allocation6 [shape = 's32[2]{0}', space=sflag, size = 0x8, scoped, tag = 'scoped memory for multi_head_gat.1']
    #allocation7 [shape = 'u8[16384]{0}', space=vmem, size = 0x4000, scoped, tag = 'input window, operand 2, single buffered']
    #allocation8 [shape = 'u8[16384]{0}', space=vmem, size = 0x4000, scoped, tag = 'output window, operand 0']
    %9 = vsyncpa [#allocation3], 0
    %s10 = scalar_lea.sflag [#allocation3], 1
    %11 = vsyncpa %s10, 0
    %12 = vsyncpa [#allocation6], 0
    %s13 = scalar_lea.sflag [#allocation6], 1
    %14 = vsyncpa %s13, 0
    %15 = vsyncpa [#allocation4], 0
    %s16 = scalar_lea.sflag [#allocation4], 1
    %17 = vsyncpa %s16, 0
    loop: start=0, step=1, limit=10
    $region2: #{multi_head_gat.1} parent=1 // loop_pre_header
      _
    $region3: #{multi_head_gat.1} parent=1 // loop_header
      %s19 = sphi 0, %s23
      %p20 = scmp.ge.s32.totalorder %s19, 10
      %s29 = sphi 0, %s31
      %s32 = sphi 0, %s29
      %s33 = sphi 0, %s32
      %s49 = sphi 0, %s33
      %s55 = sphi 0, %s57
      %s58 = sphi 0, %s55
      %s59 = sphi 0, %s58
      %s75 = sphi 0, %s59
      %s79 = sphi 0, %s79
      %s81 = sphi 0, %s79
      %s82 = sphi 0, %s81
      %s96 = sphi 0, %s82
      %s100 = sphi 0, %s100
      %s102 = sphi 0, %s100
      %s103 = sphi 0, %s102
      %s117 = sphi 0, %s103
      %s123 = sphi 0, %s125
      %s126 = sphi 0, %s123
      %s127 = sphi 0, %s126
      %s143 = sphi 0, %s127
    $region4: #{multi_head_gat.1} parent=1 // loop_header_branch
      %22 = sbr.rel (%p20) target = $region8
    $region5: #{multi_head_gat.1} parent=1 // loop_body
      %s24 = ssub.s32 %s19, 1
      %s25 = ssub.s32 %s19, 2
      %s26 = sadd.s32 %s19, 1
      %s27 = ssub.s32 %s19, %s26
      %p28 = scmp.eq.s32.totalorder %s27, 0
      %s30 = sadd.s32 %s29, 1
      %s31 = scalar_select %p28, %s29, %s30
      %p34 = pneg %p28
      %p35 = scmp.eq.s32.totalorder %s19, 7
      %p36 = por %p34, %p35
      %p37 = scmp.ne.s32.totalorder %s29, %s32
      %p38 = scmp.eq.s32.totalorder %s19, 0
      %p39 = por %p37, %p38
      %p40 = scmp.ne.s32.totalorder %s29, %s32
      %p41 = scmp.eq.s32.totalorder %s24, 7
      %p42 = por %p40, %p41
      %p43 = scmp.ne.s32.totalorder %s32, %s33
      %p44 = scmp.eq.s32.totalorder %s24, 0
      %p45 = por %p43, %p44
      %p46 = scmp.ne.s32.totalorder %s32, %s33
      %p47 = scmp.eq.s32.totalorder %s25, 7
      %p48 = por %p46, %p47
      %p50 = scmp.ne.s32.totalorder %s33, %s49
      %p51 = scmp.eq.s32.totalorder %s25, 0
      %p52 = por %p50, %p51
      %s53 = ssub.s32 %s19, %s26
      %p54 = scmp.eq.s32.totalorder %s53, 0
      %s56 = sadd.s32 %s55, 1
      %s57 = scalar_select %p54, %s55, %s56
      %p60 = pneg %p54
      %p61 = scmp.eq.s32.totalorder %s19, 7
      %p62 = por %p60, %p61
      %p63 = scmp.ne.s32.totalorder %s55, %s58
      %p64 = scmp.eq.s32.totalorder %s19, 0
      %p65 = por %p63, %p64
      %p66 = scmp.ne.s32.totalorder %s55, %s58
      %p67 = scmp.eq.s32.totalorder %s24, 7
      %p68 = por %p66, %p67
      %p69 = scmp.ne.s32.totalorder %s58, %s59
      %p70 = scmp.eq.s32.totalorder %s24, 0
      %p71 = por %p69, %p70
      %p72 = scmp.ne.s32.totalorder %s58, %s59
      %p73 = scmp.eq.s32.totalorder %s25, 7
      %p74 = por %p72, %p73
      %p76 = scmp.ne.s32.totalorder %s59, %s75
      %p77 = scmp.eq.s32.totalorder %s25, 0
      %p78 = por %p76, %p77
      %s80 = sadd.s32 %s79, 1
      %p83 = scmp.eq.s32.totalorder %s19, 7
      %p84 = scmp.ne.s32.totalorder %s79, %s81
      %p85 = scmp.eq.s32.totalorder %s19, 0
      %p86 = por %p84, %p85
      %p87 = scmp.ne.s32.totalorder %s79, %s81
      %p88 = scmp.eq.s32.totalorder %s24, 7
      %p89 = por %p87, %p88
      %p90 = scmp.ne.s32.totalorder %s81, %s82
      %p91 = scmp.eq.s32.totalorder %s24, 0
      %p92 = por %p90, %p91
      %p93 = scmp.ne.s32.totalorder %s81, %s82
      %p94 = scmp.eq.s32.totalorder %s25, 7
      %p95 = por %p93, %p94
      %p97 = scmp.ne.s32.totalorder %s82, %s96
      %p98 = scmp.eq.s32.totalorder %s25, 0
      %p99 = por %p97, %p98
      %s101 = sadd.s32 %s100, 1
      %p104 = scmp.eq.s32.totalorder %s19, 7
      %p105 = scmp.ne.s32.totalorder %s100, %s102
      %p106 = scmp.eq.s32.totalorder %s19, 0
      %p107 = por %p105, %p106
      %p108 = scmp.ne.s32.totalorder %s100, %s102
      %p109 = scmp.eq.s32.totalorder %s24, 7
      %p110 = por %p108, %p109
      %p111 = scmp.ne.s32.totalorder %s102, %s103
      %p112 = scmp.eq.s32.totalorder %s24, 0
      %p113 = por %p111, %p112
      %p114 = scmp.ne.s32.totalorder %s102, %s103
      %p115 = scmp.eq.s32.totalorder %s25, 7
      %p116 = por %p114, %p115
      %p118 = scmp.ne.s32.totalorder %s103, %s117
      %p119 = scmp.eq.s32.totalorder %s25, 0
      %p120 = por %p118, %p119
      %s121 = ssub.s32 %s19, %s26
      %p122 = scmp.eq.s32.totalorder %s121, 0
      %s124 = sadd.s32 %s123, 1
      %s125 = scalar_select %p122, %s123, %s124
      %p128 = pneg %p122
      %p129 = scmp.eq.s32.totalorder %s19, 7
      %p130 = por %p128, %p129
      %p131 = scmp.ne.s32.totalorder %s123, %s126
      %p132 = scmp.eq.s32.totalorder %s19, 0
      %p133 = por %p131, %p132
      %p134 = scmp.ne.s32.totalorder %s123, %s126
      %p135 = scmp.eq.s32.totalorder %s24, 7
      %p136 = por %p134, %p135
      %p137 = scmp.ne.s32.totalorder %s126, %s127
      %p138 = scmp.eq.s32.totalorder %s24, 0
      %p139 = por %p137, %p138
      %p140 = scmp.ne.s32.totalorder %s126, %s127
      %p141 = scmp.eq.s32.totalorder %s25, 7
      %p142 = por %p140, %p141
      %p144 = scmp.ne.s32.totalorder %s127, %s143
      %p145 = scmp.eq.s32.totalorder %s25, 0
      %p146 = por %p144, %p145
      %p147 = scmp.le.s32.totalorder 1, %s19
      %p148 = scmp.lt.s32.totalorder %s19, 9
      %p149 = pnand %p147, %p148
      %p150 = pneg %p149
      // Predicated region
      $region9: #{multi_head_gat.1} parent=5 // pred_check
        _
      $region10: #{multi_head_gat.1} parent=5 // pred_check_branch
        %152 = sbr.rel (%p149) target = $region12
      $region11: #{multi_head_gat.1} parent=5 // pred_region
        %s153 = ssub.s32 %s19, 1
        // Predicated region
        $region13: #{multi_head_gat.1} parent=11 // pred_check
          %p154 = pneg %p92
        $region14: #{multi_head_gat.1} parent=11 // pred_check_branch
          %156 = sbr.rel (%p154) target = $region16
        $region15: #{multi_head_gat.1} parent=11 // pred_region
          %s158 = ssub.s32 512, 512
          %159 = vsyncadd [#allocation6], %s158
          %s160 = sshll.u32 [#allocation7], 4
          %s161 = int_to_ptr.vmem [resolvable:$true] %s160
          %166 = dma.hbm_to_vmem [thread:$0]  %s2, 512, %s161, [#allocation6], 128, 128, 8
        $region16: #{multi_head_gat.1} parent=11 // pred_fallthru
          _
        // Predicated region
        $region17: #{multi_head_gat.1} parent=11 // pred_check
          %p167 = pneg %p113
        $region18: #{multi_head_gat.1} parent=11 // pred_check_branch
          %169 = sbr.rel (%p167) target = $region20
        $region19: #{multi_head_gat.1} parent=11 // pred_region
          _
        $region20: #{multi_head_gat.1} parent=11 // pred_fallthru
          _
      $region12: #{multi_head_gat.1} parent=5 // pred_fallthru
        _
      %p170 = scmp.lt.s32.totalorder %s19, 8
      // Predicated region
      $region21: #{multi_head_gat.1} parent=5 // pred_check
        %p171 = pneg %p170
      $region22: #{multi_head_gat.1} parent=5 // pred_check_branch
        %173 = sbr.rel (%p171) target = $region24
      $region23: #{multi_head_gat.1} parent=5 // pred_region
        // Predicated region
        $region25: #{multi_head_gat.1} parent=23 // pred_check
          %p174 = pneg %p39
        $region26: #{multi_head_gat.1} parent=23 // pred_check_branch
          %176 = sbr.rel (%p174) target = $region28
        $region27: #{multi_head_gat.1} parent=23 // pred_region
          %s177 = sand.u32 %s29, 1
          %s178 = scalar_lea.sflag [#allocation3], %s177
          %s179 = sand.u32 %s29, 1
          %s180 = smul.addr %s179, 16
          %s181 = scalar_lea.vmem [#allocation2], %s180
          %s183 = ssub.s32 256, 256
          %184 = vsyncadd %s178, %s183
          %s185 = smul.addr %s19, 2
          %s186 = smul.addr %s185, 128
          %s187 = scalar_lea.hbm %s0, %s186
          %s188 = sshll.u32 %s181, 4
          %s189 = int_to_ptr.vmem [resolvable:$true] %s188
          %194 = dma.hbm_to_vmem [thread:$0]  %s187, 256, %s189, %s178, 128, 128, 8
        $region28: #{multi_head_gat.1} parent=23 // pred_fallthru
          _
        // Predicated region
        $region29: #{multi_head_gat.1} parent=23 // pred_check
          %p195 = pneg %p65
        $region30: #{multi_head_gat.1} parent=23 // pred_check_branch
          %197 = sbr.rel (%p195) target = $region32
        $region31: #{multi_head_gat.1} parent=23 // pred_region
          %s198 = sand.u32 %s19, 1
          %s199 = scalar_lea.sflag [#allocation6], %s198
          %s200 = sand.u32 %s55, 1
          %s201 = smul.addr %s200, 16
          %s202 = scalar_lea.vmem [#allocation5], %s201
          %s204 = ssub.s32 256, 256
          %205 = vsyncadd %s199, %s204
          %s206 = smul.addr %s19, 2
          %s207 = smul.addr %s206, 128
          %s208 = scalar_lea.hbm %s1, %s207
          %s209 = sshll.u32 %s202, 4
          %s210 = int_to_ptr.vmem [resolvable:$true] %s209
          %215 = dma.hbm_to_vmem [thread:$0]  %s208, 256, %s210, %s199, 128, 128, 8
        $region32: #{multi_head_gat.1} parent=23 // pred_fallthru
          _
      $region24: #{multi_head_gat.1} parent=5 // pred_fallthru
        _
      %p216 = scmp.le.s32.totalorder 1, %s19
      %p217 = scmp.lt.s32.totalorder %s19, 9
      %p218 = pnand %p216, %p217
      %p219 = pneg %p218
      // Predicated region
      $region33: #{multi_head_gat.1} parent=5 // pred_check
        _
      $region34: #{multi_head_gat.1} parent=5 // pred_check_branch
        %221 = sbr.rel (%p218) target = $region36
      $region35: #{multi_head_gat.1} parent=5 // pred_region
        %s222 = ssub.s32 %s19, 1
        %s223 = sand.u32 %s32, 1
        %s224 = scalar_lea.sflag [#allocation3], %s223
        %s225 = sand.u32 %s32, 1
        %s226 = smul.addr %s225, 16
        %s227 = scalar_lea.vmem [#allocation2], %s226
        // Predicated region
        $region37: #{multi_head_gat.1} parent=35 // pred_check
          %p228 = pneg %p45
        $region38: #{multi_head_gat.1} parent=35 // pred_check_branch
          %230 = sbr.rel (%p228) target = $region40
        $region39: #{multi_head_gat.1} parent=35 // pred_region
          %231 = dma.done %s224, 256
        $region40: #{multi_head_gat.1} parent=35 // pred_fallthru
          _
        %s232 = sand.u32 %s24, 1
        %s233 = scalar_lea.sflag [#allocation6], %s232
        %s234 = sand.u32 %s58, 1
        %s235 = smul.addr %s234, 16
        %s236 = scalar_lea.vmem [#allocation5], %s235
        // Predicated region
        $region41: #{multi_head_gat.1} parent=35 // pred_check
          %p237 = pneg %p71
        $region42: #{multi_head_gat.1} parent=35 // pred_check_branch
          %239 = sbr.rel (%p237) target = $region44
        $region43: #{multi_head_gat.1} parent=35 // pred_region
          %240 = dma.done %s233, 256
        $region44: #{multi_head_gat.1} parent=35 // pred_fallthru
          _
        // Predicated region
        $region45: #{multi_head_gat.1} parent=35 // pred_check
          %p241 = pneg %p92
        $region46: #{multi_head_gat.1} parent=35 // pred_check_branch
          %243 = sbr.rel (%p241) target = $region48
        $region47: #{multi_head_gat.1} parent=35 // pred_region
          %244 = dma.done [#allocation6], 512
        $region48: #{multi_head_gat.1} parent=35 // pred_fallthru
          _
        %s245 = sand.u32 %s32, 1
        %s246 = scalar_lea.sflag [#allocation3], %s245
        %s247 = sand.u32 %s32, 1
        %s248 = smul.addr %s247, 16
        %s249 = scalar_lea.vmem [#allocation2], %s248
        %p250 = pneg %p45
        %p251 = pneg %p42
        %s252 = sand.u32 %s24, 1
        %s253 = scalar_lea.sflag [#allocation6], %s252
        %s254 = sand.u32 %s58, 1
        %s255 = smul.addr %s254, 16
        %s256 = scalar_lea.vmem [#allocation5], %s255
        %p257 = pneg %p71
        %p258 = pneg %p68
        %p259 = pneg %p92
        %p260 = pneg %p89
        %p261 = pneg %p113
        %p262 = pneg %p110
        %p263 = pneg %p139
        %p264 = pneg %p136
        %s265 = sand.u32 %s126, 1
        %s266 = scalar_lea.sflag [#allocation4], %s265
        %s267 = sand.u32 %s126, 1
        %s268 = smul.addr %s267, 16
        %s269 = scalar_lea.vmem [#allocation8], %s268
        %v270 = vld [vmem:[%s227] sm:$0xff]
        %v271 = vld [vmem:[%s227 + $0x8] sm:$0xff]
        %v272 = vld [vmem:[#allocation7] sm:$0xff]
        %v273 = vld [vmem:[#allocation7 + $0x8] sm:$0xff]
        %v274 = vld [vmem:[#allocation7 + $0x10] sm:$0xff]
        %v275 = vld [vmem:[#allocation7 + $0x18] sm:$0xff]
        %vm276 = vcmask 261120
        %v278 = vsel %vm276, %v270, 0
        %v281 = vsel %vm276, %v271, 0
        %283 = vmatprep.subr.mxu0 0.0
        %v284 = vand.u32 %v272, 4294901760
        %285 = vmatpush1.msra.mxu0 %v284
        %286 = vmatprep.subr.mxu0 0.0
        %v287 = vand.u32 %v273, 4294901760
        %288 = vmatpush1.msra.mxu0 %v287
        %289 = vmatprep.subr.mxu0 0.0
        %v290 = vand.u32 %v274, 4294901760
        %291 = vmatpush1.msra.mxu0 %v290
        %292 = vmatprep.subr.mxu0 0.0
        %v293 = vand.u32 %v275, 4294901760
        %294 = vmatpush1.msra.mxu0 %v293
        %295 = vmatprep.subr.mxu0 0.0
        %296 = vmatpush1.msra.mxu0 0.0
        %297 = vmatprep.subr.mxu0 0.0
        %298 = vmatpush1.msra.mxu0 0.0
        %299 = vmatprep.subr.mxu0 0.0
        %300 = vmatpush1.msra.mxu0 0.0
        %301 = vmatprep.subr.mxu0 0.0
        %302 = vmatpush1.msra.mxu0 0.0
        %303 = vmatprep.subr.mxu0 0.0
        %304 = vmatpush1.msra.mxu0 0.0
        %305 = vmatprep.subr.mxu0 0.0
        %306 = vmatpush1.msra.mxu0 0.0
        %307 = vmatprep.subr.mxu0 0.0
        %308 = vmatpush1.msra.mxu0 0.0
        %309 = vmatprep.subr.mxu0 0.0
        %310 = vmatpush1.msra.mxu0 0.0
        %311 = vmatprep.subr.mxu0 0.0
        %312 = vmatpush1.msra.mxu0 0.0
        %313 = vmatprep.subr.mxu0 0.0
        %314 = vmatpush1.msra.mxu0 0.0
        %315 = vmatprep.subr.mxu0 0.0
        %316 = vmatpush1.msra.mxu0 0.0
        %317 = vmatprep.subr.mxu0 0.0
        %318 = vmatpush1.msra.mxu0 0.0
        %319 = vmatprep.subr.mxu0 0.0
        %320 = vmatpush1.msra.mxu0 0.0
        %321 = vmatprep.subr.mxu0 0.0
        %322 = vmatpush1.msra.mxu0 0.0
        %323 = vmatprep.subr.mxu0 0.0
        %324 = vmatpush1.msra.mxu0 0.0
        %325 = vmatprep.subr.mxu0 0.0
        %326 = vmatpush1.msra.mxu0 0.0
        %327 = vmatprep.subr.mxu0 0.0
        %328 = vmatpush1.msra.mxu0 0.0
        %329 = vmatprep.subr.mxu0 0.0
        %330 = vmatpush1.msra.mxu0 0.0
        %331 = vmatprep.subr.mxu0 0.0
        %332 = vmatpush1.msra.mxu0 0.0
        %333 = vmatprep.subr.mxu0 0.0
        %334 = vmatpush1.msra.mxu0 0.0
        %335 = vmatprep.subr.mxu0 0.0
        %336 = vmatpush1.msra.mxu0 0.0
        %337 = vmatprep.subr.mxu0 0.0
        %338 = vmatpush1.msra.mxu0 0.0
        %339 = vmatprep.subr.mxu0 0.0
        %340 = vmatpush1.msra.mxu0 0.0
        %341 = vmatprep.subr.mxu0 0.0
        %342 = vmatpush1.msra.mxu0 0.0
        %343 = vmatprep.subr.mxu0 0.0
        %344 = vmatpush1.msra.mxu0 0.0
        %345 = vmatprep.subr.mxu0 0.0
        %346 = vmatpush1.msra.mxu0 0.0
        %347 = vmatprep.subr.mxu0 0.0
        %348 = vmatpush1.msra.mxu0 0.0
        %349 = vmatprep.subr.mxu0 0.0
        %350 = vmatpush1.msra.mxu0 0.0
        %351 = vmatprep.mubr.f32.mxu0 0.0
        %v352 = vand.u32 %v278, 4294901760
        %v353 = vsub.f32 %v278, %v352
        %v354 = vand.u32 %v353, 4294901760
        %v355 = vsub.f32 %v353, %v354
        %v356 = vand.u32 %v355, 4294901760
        %357 = vmatmul.mubr.f32.gmra.mrb[0].mxu0 %v356
        %v358 = vpop.f32.mrb[0].mxu0
        %v359 = vadd.f32 0.0, %v358
        %v360 = vpop.f32.mrb[0].mxu0
        %361 = vmatprep.mubr.f32.mxu0 0.0
        %v362 = vand.u32 %v281, 4294901760
        %v363 = vsub.f32 %v281, %v362
        %v364 = vand.u32 %v363, 4294901760
        %v365 = vsub.f32 %v363, %v364
        %v366 = vand.u32 %v365, 4294901760
        %367 = vmatmul.mubr.f32.gmra.mrb[0].mxu0 %v366
        %v368 = vpop.f32.mrb[0].mxu0
        %v369 = vadd.f32 0.0, %v368
        %v370 = vpop.f32.mrb[0].mxu0
        %371 = vdwg.mxu0
        %372 = vmatprep.subr.mxu0 0.0
        %v373 = vand.u32 %v272, 4294901760
        %v374 = vsub.f32 %v272, %v373
        %v375 = vand.u32 %v374, 4294901760
        %v376 = vsub.f32 %v374, %v375
        %v377 = vand.u32 %v376, 4294901760
        %378 = vmatpush1.msra.mxu0 %v377
        %379 = vmatprep.subr.mxu0 0.0
        %v380 = vand.u32 %v273, 4294901760
        %v381 = vsub.f32 %v273, %v380
        %v382 = vand.u32 %v381, 4294901760
        %v383 = vsub.f32 %v381, %v382
        %v384 = vand.u32 %v383, 4294901760
        %385 = vmatpush1.msra.mxu0 %v384
        %386 = vmatprep.subr.mxu0 0.0
        %v387 = vand.u32 %v274, 4294901760
        %v388 = vsub.f32 %v274, %v387
        %v389 = vand.u32 %v388, 4294901760
        %v390 = vsub.f32 %v388, %v389
        %v391 = vand.u32 %v390, 4294901760
        %392 = vmatpush1.msra.mxu0 %v391
        %393 = vmatprep.subr.mxu0 0.0
        %v394 = vand.u32 %v275, 4294901760
        %v395 = vsub.f32 %v275, %v394
        %v396 = vand.u32 %v395, 4294901760
        %v397 = vsub.f32 %v395, %v396
        %v398 = vand.u32 %v397, 4294901760
        %399 = vmatpush1.msra.mxu0 %v398
        %400 = vmatprep.subr.mxu0 0.0
        %401 = vmatpush1.msra.mxu0 0.0
        %402 = vmatprep.subr.mxu0 0.0
        %403 = vmatpush1.msra.mxu0 0.0
        %404 = vmatprep.subr.mxu0 0.0
        %405 = vmatpush1.msra.mxu0 0.0
        %406 = vmatprep.subr.mxu0 0.0
        %407 = vmatpush1.msra.mxu0 0.0
        %408 = vmatprep.subr.mxu0 0.0
        %409 = vmatpush1.msra.mxu0 0.0
        %410 = vmatprep.subr.mxu0 0.0
        %411 = vmatpush1.msra.mxu0 0.0
        %412 = vmatprep.subr.mxu0 0.0
        %413 = vmatpush1.msra.mxu0 0.0
        %414 = vmatprep.subr.mxu0 0.0
        %415 = vmatpush1.msra.mxu0 0.0
        %416 = vmatprep.subr.mxu0 0.0
        %417 = vmatpush1.msra.mxu0 0.0
        %418 = vmatprep.subr.mxu0 0.0
        %419 = vmatpush1.msra.mxu0 0.0
        %420 = vmatprep.subr.mxu0 0.0
        %421 = vmatpush1.msra.mxu0 0.0
        %422 = vmatprep.subr.mxu0 0.0
        %423 = vmatpush1.msra.mxu0 0.0
        %424 = vmatprep.subr.mxu0 0.0
        %425 = vmatpush1.msra.mxu0 0.0
        %426 = vmatprep.subr.mxu0 0.0
        %427 = vmatpush1.msra.mxu0 0.0
        %428 = vmatprep.subr.mxu0 0.0
        %429 = vmatpush1.msra.mxu0 0.0
        %430 = vmatprep.subr.mxu0 0.0
        %431 = vmatpush1.msra.mxu0 0.0
        %432 = vmatprep.subr.mxu0 0.0
        %433 = vmatpush1.msra.mxu0 0.0
        %434 = vmatprep.subr.mxu0 0.0
        %435 = vmatpush1.msra.mxu0 0.0
        %436 = vmatprep.subr.mxu0 0.0
        %437 = vmatpush1.msra.mxu0 0.0
        %438 = vmatprep.subr.mxu0 0.0
        %439 = vmatpush1.msra.mxu0 0.0
        %440 = vmatprep.subr.mxu0 0.0
        %441 = vmatpush1.msra.mxu0 0.0
        %442 = vmatprep.subr.mxu0 0.0
        %443 = vmatpush1.msra.mxu0 0.0
        %444 = vmatprep.subr.mxu0 0.0
        %445 = vmatpush1.msra.mxu0 0.0
        %446 = vmatprep.subr.mxu0 0.0
        %447 = vmatpush1.msra.mxu0 0.0
        %448 = vmatprep.subr.mxu0 0.0
        %449 = vmatpush1.msra.mxu0 0.0
        %450 = vmatprep.subr.mxu0 0.0
        %451 = vmatpush1.msra.mxu0 0.0
        %452 = vmatprep.subr.mxu0 0.0
        %453 = vmatpush1.msra.mxu0 0.0
        %454 = vmatprep.subr.mxu0 0.0
        %455 = vmatpush1.msra.mxu0 0.0
        %456 = vmatprep.mubr.f32.mxu0 0.0
        %v457 = vand.u32 %v278, 4294901760
        %458 = vmatmul.mubr.f32.gmra.mrb[0].mxu0 %v457
        %v459 = vpop.f32.mrb[0].mxu0
        %v460 = vadd.f32 %v359, %v459
        %v461 = vpop.f32.mrb[0].mxu0
        %462 = vmatprep.mubr.f32.mxu0 0.0
        %v463 = vand.u32 %v281, 4294901760
        %464 = vmatmul.mubr.f32.gmra.mrb[0].mxu0 %v463
        %v465 = vpop.f32.mrb[0].mxu0
        %v466 = vadd.f32 %v369, %v465
        %v467 = vpop.f32.mrb[0].mxu0
        %468 = vdwg.mxu0
        %469 = vmatprep.subr.mxu0 0.0
        %v470 = vand.u32 %v272, 4294901760
        %v471 = vsub.f32 %v272, %v470
        %472 = vmatpush1.msra.mxu0 %v471
        %473 = vmatprep.subr.mxu0 0.0
        %v474 = vand.u32 %v273, 4294901760
        %v475 = vsub.f32 %v273, %v474
        %476 = vmatpush1.msra.mxu0 %v475
        %477 = vmatprep.subr.mxu0 0.0
        %v478 = vand.u32 %v274, 4294901760
        %v479 = vsub.f32 %v274, %v478
        %480 = vmatpush1.msra.mxu0 %v479
        %481 = vmatprep.subr.mxu0 0.0
        %v482 = vand.u32 %v275, 4294901760
        %v483 = vsub.f32 %v275, %v482
        %484 = vmatpush1.msra.mxu0 %v483
        %485 = vmatprep.subr.mxu0 0.0
        %486 = vmatpush1.msra.mxu0 0.0
        %487 = vmatprep.subr.mxu0 0.0
        %488 = vmatpush1.msra.mxu0 0.0
        %489 = vmatprep.subr.mxu0 0.0
        %490 = vmatpush1.msra.mxu0 0.0
        %491 = vmatprep.subr.mxu0 0.0
        %492 = vmatpush1.msra.mxu0 0.0
        %493 = vmatprep.subr.mxu0 0.0
        %494 = vmatpush1.msra.mxu0 0.0
        %495 = vmatprep.subr.mxu0 0.0
        %496 = vmatpush1.msra.mxu0 0.0
        %497 = vmatprep.subr.mxu0 0.0
        %498 = vmatpush1.msra.mxu0 0.0
        %499 = vmatprep.subr.mxu0 0.0
        %500 = vmatpush1.msra.mxu0 0.0
        %501 = vmatprep.subr.mxu0 0.0
        %502 = vmatpush1.msra.mxu0 0.0
        %503 = vmatprep.subr.mxu0 0.0
        %504 = vmatpush1.msra.mxu0 0.0
        %505 = vmatprep.subr.mxu0 0.0
        %506 = vmatpush1.msra.mxu0 0.0
        %507 = vmatprep.subr.mxu0 0.0
        %508 = vmatpush1.msra.mxu0 0.0
        %509 = vmatprep.subr.mxu0 0.0
        %510 = vmatpush1.msra.mxu0 0.0
        %511 = vmatprep.subr.mxu0 0.0
        %512 = vmatpush1.msra.mxu0 0.0
        %513 = vmatprep.subr.mxu0 0.0
        %514 = vmatpush1.msra.mxu0 0.0
        %515 = vmatprep.subr.mxu0 0.0
        %516 = vmatpush1.msra.mxu0 0.0
        %517 = vmatprep.subr.mxu0 0.0
        %518 = vmatpush1.msra.mxu0 0.0
        %519 = vmatprep.subr.mxu0 0.0
        %520 = vmatpush1.msra.mxu0 0.0
        %521 = vmatprep.subr.mxu0 0.0
        %522 = vmatpush1.msra.mxu0 0.0
        %523 = vmatprep.subr.mxu0 0.0
        %524 = vmatpush1.msra.mxu0 0.0
        %525 = vmatprep.subr.mxu0 0.0
        %526 = vmatpush1.msra.mxu0 0.0
        %527 = vmatprep.subr.mxu0 0.0
        %528 = vmatpush1.msra.mxu0 0.0
        %529 = vmatprep.subr.mxu0 0.0
        %530 = vmatpush1.msra.mxu0 0.0
        %531 = vmatprep.subr.mxu0 0.0
        %532 = vmatpush1.msra.mxu0 0.0
        %533 = vmatprep.subr.mxu0 0.0
        %534 = vmatpush1.msra.mxu0 0.0
        %535 = vmatprep.subr.mxu0 0.0
        %536 = vmatpush1.msra.mxu0 0.0
        %537 = vmatprep.subr.mxu0 0.0
        %538 = vmatpush1.msra.mxu0 0.0
        %539 = vmatprep.subr.mxu0 0.0
        %540 = vmatpush1.msra.mxu0 0.0
        %541 = vmatprep.mubr.f32.mxu0 0.0
        %v542 = vand.u32 %v278, 4294901760
        %v543 = vsub.f32 %v278, %v542
        %544 = vmatmul.mubr.f32.gmra.mrb[0].mxu0 %v543
        %v545 = vpop.f32.mrb[0].mxu0
        %v546 = vadd.f32 %v460, %v545
        %v547 = vpop.f32.mrb[0].mxu0
        %548 = vmatprep.mubr.f32.mxu0 0.0
        %v549 = vand.u32 %v281, 4294901760
        %v550 = vsub.f32 %v281, %v549
        %551 = vmatmul.mubr.f32.gmra.mrb[0].mxu0 %v550
        %v552 = vpop.f32.mrb[0].mxu0
        %v553 = vadd.f32 %v466, %v552
        %v554 = vpop.f32.mrb[0].mxu0
        %555 = vdwg.mxu0
        %556 = vmatprep.subr.mxu0 0.0
        %v557 = vand.u32 %v272, 4294901760
        %558 = vmatpush1.msra.mxu0 %v557
        %559 = vmatprep.subr.mxu0 0.0
        %v560 = vand.u32 %v273, 4294901760
        %561 = vmatpush1.msra.mxu0 %v560
        %562 = vmatprep.subr.mxu0 0.0
        %v563 = vand.u32 %v274, 4294901760
        %564 = vmatpush1.msra.mxu0 %v563
        %565 = vmatprep.subr.mxu0 0.0
        %v566 = vand.u32 %v275, 4294901760
        %567 = vmatpush1.msra.mxu0 %v566
        %568 = vmatprep.subr.mxu0 0.0
        %569 = vmatpush1.msra.mxu0 0.0
        %570 = vmatprep.subr.mxu0 0.0
        %571 = vmatpush1.msra.mxu0 0.0
        %572 = vmatprep.subr.mxu0 0.0
        %573 = vmatpush1.msra.mxu0 0.0
        %574 = vmatprep.subr.mxu0 0.0
        %575 = vmatpush1.msra.mxu0 0.0
        %576 = vmatprep.subr.mxu0 0.0
        %577 = vmatpush1.msra.mxu0 0.0
        %578 = vmatprep.subr.mxu0 0.0
        %579 = vmatpush1.msra.mxu0 0.0
        %580 = vmatprep.subr.mxu0 0.0
        %581 = vmatpush1.msra.mxu0 0.0
        %582 = vmatprep.subr.mxu0 0.0
        %583 = vmatpush1.msra.mxu0 0.0
        %584 = vmatprep.subr.mxu0 0.0
        %585 = vmatpush1.msra.mxu0 0.0
        %586 = vmatprep.subr.mxu0 0.0
        %587 = vmatpush1.msra.mxu0 0.0
        %588 = vmatprep.subr.mxu0 0.0
        %589 = vmatpush1.msra.mxu0 0.0
        %590 = vmatprep.subr.mxu0 0.0
        %591 = vmatpush1.msra.mxu0 0.0
        %592 = vmatprep.subr.mxu0 0.0
        %593 = vmatpush1.msra.mxu0 0.0
        %594 = vmatprep.subr.mxu0 0.0
        %595 = vmatpush1.msra.mxu0 0.0
        %596 = vmatprep.subr.mxu0 0.0
        %597 = vmatpush1.msra.mxu0 0.0
        %598 = vmatprep.subr.mxu0 0.0
        %599 = vmatpush1.msra.mxu0 0.0
        %600 = vmatprep.subr.mxu0 0.0
        %601 = vmatpush1.msra.mxu0 0.0
        %602 = vmatprep.subr.mxu0 0.0
        %603 = vmatpush1.msra.mxu0 0.0
        %604 = vmatprep.subr.mxu0 0.0
        %605 = vmatpush1.msra.mxu0 0.0
        %606 = vmatprep.subr.mxu0 0.0
        %607 = vmatpush1.msra.mxu0 0.0
        %608 = vmatprep.subr.mxu0 0.0
        %609 = vmatpush1.msra.mxu0 0.0
        %610 = vmatprep.subr.mxu0 0.0
        %611 = vmatpush1.msra.mxu0 0.0
        %612 = vmatprep.subr.mxu0 0.0
        %613 = vmatpush1.msra.mxu0 0.0
        %614 = vmatprep.subr.mxu0 0.0
        %615 = vmatpush1.msra.mxu0 0.0
        %616 = vmatprep.subr.mxu0 0.0
        %617 = vmatpush1.msra.mxu0 0.0
        %618 = vmatprep.subr.mxu0 0.0
        %619 = vmatpush1.msra.mxu0 0.0
        %620 = vmatprep.subr.mxu0 0.0
        %621 = vmatpush1.msra.mxu0 0.0
        %622 = vmatprep.subr.mxu0 0.0
        %623 = vmatpush1.msra.mxu0 0.0
        %624 = vmatprep.mubr.f32.mxu0 0.0
        %v625 = vand.u32 %v278, 4294901760
        %v626 = vsub.f32 %v278, %v625
        %v627 = vand.u32 %v626, 4294901760
        %628 = vmatmul.mubr.f32.gmra.mrb[0].mxu0 %v627
        %v629 = vpop.f32.mrb[0].mxu0
        %v630 = vadd.f32 %v546, %v629
        %v631 = vpop.f32.mrb[0].mxu0
        %632 = vmatprep.mubr.f32.mxu0 0.0
        %v633 = vand.u32 %v281, 4294901760
        %v634 = vsub.f32 %v281, %v633
        %v635 = vand.u32 %v634, 4294901760
        %636 = vmatmul.mubr.f32.gmra.mrb[0].mxu0 %v635
        %v637 = vpop.f32.mrb[0].mxu0
        %v638 = vadd.f32 %v553, %v637
        %v639 = vpop.f32.mrb[0].mxu0
        %640 = vdwg.mxu0
        %641 = vmatprep.subr.mxu0 0.0
        %v642 = vand.u32 %v272, 4294901760
        %v643 = vsub.f32 %v272, %v642
        %v644 = vand.u32 %v643, 4294901760
        %645 = vmatpush1.msra.mxu0 %v644
        %646 = vmatprep.subr.mxu0 0.0
        %v647 = vand.u32 %v273, 4294901760
        %v648 = vsub.f32 %v273, %v647
        %v649 = vand.u32 %v648, 4294901760
        %650 = vmatpush1.msra.mxu0 %v649
        %651 = vmatprep.subr.mxu0 0.0
        %v652 = vand.u32 %v274, 4294901760
        %v653 = vsub.f32 %v274, %v652
        %v654 = vand.u32 %v653, 4294901760
        %655 = vmatpush1.msra.mxu0 %v654
        %656 = vmatprep.subr.mxu0 0.0
        %v657 = vand.u32 %v275, 4294901760
        %v658 = vsub.f32 %v275, %v657
        %v659 = vand.u32 %v658, 4294901760
        %660 = vmatpush1.msra.mxu0 %v659
        %661 = vmatprep.subr.mxu0 0.0
        %662 = vmatpush1.msra.mxu0 0.0
        %663 = vmatprep.subr.mxu0 0.0
        %664 = vmatpush1.msra.mxu0 0.0
        %665 = vmatprep.subr.mxu0 0.0
        %666 = vmatpush1.msra.mxu0 0.0
        %667 = vmatprep.subr.mxu0 0.0
        %668 = vmatpush1.msra.mxu0 0.0
        %669 = vmatprep.subr.mxu0 0.0
        %670 = vmatpush1.msra.mxu0 0.0
        %671 = vmatprep.subr.mxu0 0.0
        %672 = vmatpush1.msra.mxu0 0.0
        %673 = vmatprep.subr.mxu0 0.0
        %674 = vmatpush1.msra.mxu0 0.0
        %675 = vmatprep.subr.mxu0 0.0
        %676 = vmatpush1.msra.mxu0 0.0
        %677 = vmatprep.subr.mxu0 0.0
        %678 = vmatpush1.msra.mxu0 0.0
        %679 = vmatprep.subr.mxu0 0.0
        %680 = vmatpush1.msra.mxu0 0.0
        %681 = vmatprep.subr.mxu0 0.0
        %682 = vmatpush1.msra.mxu0 0.0
        %683 = vmatprep.subr.mxu0 0.0
        %684 = vmatpush1.msra.mxu0 0.0
        %685 = vmatprep.subr.mxu0 0.0
        %686 = vmatpush1.msra.mxu0 0.0
        %687 = vmatprep.subr.mxu0 0.0
        %688 = vmatpush1.msra.mxu0 0.0
        %689 = vmatprep.subr.mxu0 0.0
        %690 = vmatpush1.msra.mxu0 0.0
        %691 = vmatprep.subr.mxu0 0.0
        %692 = vmatpush1.msra.mxu0 0.0
        %693 = vmatprep.subr.mxu0 0.0
        %694 = vmatpush1.msra.mxu0 0.0
        %695 = vmatprep.subr.mxu0 0.0
        %696 = vmatpush1.msra.mxu0 0.0
        %697 = vmatprep.subr.mxu0 0.0
        %698 = vmatpush1.msra.mxu0 0.0
        %699 = vmatprep.subr.mxu0 0.0
        %700 = vmatpush1.msra.mxu0 0.0
        %701 = vmatprep.subr.mxu0 0.0
        %702 = vmatpush1.msra.mxu0 0.0
        %703 = vmatprep.subr.mxu0 0.0
        %704 = vmatpush1.msra.mxu0 0.0
        %705 = vmatprep.subr.mxu0 0.0
        %706 = vmatpush1.msra.mxu0 0.0
        %707 = vmatprep.subr.mxu0 0.0
        %708 = vmatpush1.msra.mxu0 0.0
        %709 = vmatprep.subr.mxu0 0.0
        %710 = vmatpush1.msra.mxu0 0.0
        %711 = vmatprep.subr.mxu0 0.0
        %712 = vmatpush1.msra.mxu0 0.0
        %713 = vmatprep.subr.mxu0 0.0
        %714 = vmatpush1.msra.mxu0 0.0
        %715 = vmatprep.subr.mxu0 0.0
        %716 = vmatpush1.msra.mxu0 0.0
        %717 = vmatprep.mubr.f32.mxu0 0.0
        %v718 = vand.u32 %v278, 4294901760
        %719 = vmatmul.mubr.f32.gmra.mrb[0].mxu0 %v718
        %v720 = vpop.f32.mrb[0].mxu0
        %v721 = vadd.f32 %v630, %v720
        %v722 = vpop.f32.mrb[0].mxu0
        %723 = vmatprep.mubr.f32.mxu0 0.0
        %v724 = vand.u32 %v281, 4294901760
        %725 = vmatmul.mubr.f32.gmra.mrb[0].mxu0 %v724
        %v726 = vpop.f32.mrb[0].mxu0
        %v727 = vadd.f32 %v638, %v726
        %v728 = vpop.f32.mrb[0].mxu0
        %729 = vdwg.mxu0
        %730 = vmatprep.subr.mxu0 0.0
        %v731 = vand.u32 %v272, 4294901760
        %732 = vmatpush1.msra.mxu0 %v731
        %733 = vmatprep.subr.mxu0 0.0
        %v734 = vand.u32 %v273, 4294901760
        %735 = vmatpush1.msra.mxu0 %v734
        %736 = vmatprep.subr.mxu0 0.0
        %v737 = vand.u32 %v274, 4294901760
        %738 = vmatpush1.msra.mxu0 %v737
        %739 = vmatprep.subr.mxu0 0.0
        %v740 = vand.u32 %v275, 4294901760
        %741 = vmatpush1.msra.mxu0 %v740
        %742 = vmatprep.subr.mxu0 0.0
        %743 = vmatpush1.msra.mxu0 0.0
        %744 = vmatprep.subr.mxu0 0.0
        %745 = vmatpush1.msra.mxu0 0.0
        %746 = vmatprep.subr.mxu0 0.0
        %747 = vmatpush1.msra.mxu0 0.0
        %748 = vmatprep.subr.mxu0 0.0
        %749 = vmatpush1.msra.mxu0 0.0
        %750 = vmatprep.subr.mxu0 0.0
        %751 = vmatpush1.msra.mxu0 0.0
        %752 = vmatprep.subr.mxu0 0.0
        %753 = vmatpush1.msra.mxu0 0.0
        %754 = vmatprep.subr.mxu0 0.0
        %755 = vmatpush1.msra.mxu0 0.0
        %756 = vmatprep.subr.mxu0 0.0
        %757 = vmatpush1.msra.mxu0 0.0
        %758 = vmatprep.subr.mxu0 0.0
        %759 = vmatpush1.msra.mxu0 0.0
        %760 = vmatprep.subr.mxu0 0.0
        %761 = vmatpush1.msra.mxu0 0.0
        %762 = vmatprep.subr.mxu0 0.0
        %763 = vmatpush1.msra.mxu0 0.0
        %764 = vmatprep.subr.mxu0 0.0
        %765 = vmatpush1.msra.mxu0 0.0
        %766 = vmatprep.subr.mxu0 0.0
        %767 = vmatpush1.msra.mxu0 0.0
        %768 = vmatprep.subr.mxu0 0.0
        %769 = vmatpush1.msra.mxu0 0.0
        %770 = vmatprep.subr.mxu0 0.0
        %771 = vmatpush1.msra.mxu0 0.0
        %772 = vmatprep.subr.mxu0 0.0
        %773 = vmatpush1.msra.mxu0 0.0
        %774 = vmatprep.subr.mxu0 0.0
        %775 = vmatpush1.msra.mxu0 0.0
        %776 = vmatprep.subr.mxu0 0.0
        %777 = vmatpush1.msra.mxu0 0.0
        %778 = vmatprep.subr.mxu0 0.0
        %779 = vmatpush1.msra.mxu0 0.0
        %780 = vmatprep.subr.mxu0 0.0
        %781 = vmatpush1.msra.mxu0 0.0
        %782 = vmatprep.subr.mxu0 0.0
        %783 = vmatpush1.msra.mxu0 0.0
        %784 = vmatprep.subr.mxu0 0.0
        %785 = vmatpush1.msra.mxu0 0.0
        %786 = vmatprep.subr.mxu0 0.0
        %787 = vmatpush1.msra.mxu0 0.0
        %788 = vmatprep.subr.mxu0 0.0
        %789 = vmatpush1.msra.mxu0 0.0
        %790 = vmatprep.subr.mxu0 0.0
        %791 = vmatpush1.msra.mxu0 0.0
        %792 = vmatprep.subr.mxu0 0.0
        %793 = vmatpush1.msra.mxu0 0.0
        %794 = vmatprep.subr.mxu0 0.0
        %795 = vmatpush1.msra.mxu0 0.0
        %796 = vmatprep.subr.mxu0 0.0
        %797 = vmatpush1.msra.mxu0 0.0
        %798 = vmatprep.mubr.f32.mxu0 0.0
        %v799 = vand.u32 %v278, 4294901760
        %800 = vmatmul.mubr.f32.gmra.mrb[0].mxu0 %v799
        %v801 = vpop.f32.mrb[0].mxu0
        %v802 = vadd.f32 %v721, %v801
        %v803 = vpop.f32.mrb[0].mxu0
        %804 = vmatprep.mubr.f32.mxu0 0.0
        %v805 = vand.u32 %v281, 4294901760
        %806 = vmatmul.mubr.f32.gmra.mrb[0].mxu0 %v805
        %v807 = vpop.f32.mrb[0].mxu0
        %v808 = vadd.f32 %v727, %v807
        %v809 = vpop.f32.mrb[0].mxu0
        %810 = vdwg.mxu0
        %v811 = vld [vmem:[%s3] sm:$0xff]
        %v813 = vsel %vm276, %v811, 0
        %815 = vmatprep.subr.mxu0 0.0
        %v816 = vand.u32 %v278, 4294901760
        %817 = vmatpush1.xpose.msra.mxu0 %v816
        %818 = vmatprep.subr.mxu0 0.0
        %v819 = vand.u32 %v281, 4294901760
        %820 = vmatpush1.xpose.msra.mxu0 %v819
        %821 = vmatprep.subr.mxu0 0.0
        %822 = vmatpush1.xpose.msra.mxu0 0.0
        %823 = vmatprep.subr.mxu0 0.0
        %824 = vmatpush1.xpose.msra.mxu0 0.0
        %825 = vmatprep.subr.mxu0 0.0
        %826 = vmatpush1.xpose.msra.mxu0 0.0
        %827 = vmatprep.subr.mxu0 0.0
        %828 = vmatpush1.xpose.msra.mxu0 0.0
        %829 = vmatprep.subr.mxu0 0.0
        %830 = vmatpush1.xpose.msra.mxu0 0.0
        %831 = vmatprep.subr.mxu0 0.0
        %832 = vmatpush1.xpose.msra.mxu0 0.0
        %833 = vmatprep.subr.mxu0 0.0
        %834 = vmatpush1.xpose.msra.mxu0 0.0
        %835 = vmatprep.subr.mxu0 0.0
        %836 = vmatpush1.xpose.msra.mxu0 0.0
        %837 = vmatprep.subr.mxu0 0.0
        %838 = vmatpush1.xpose.msra.mxu0 0.0
        %839 = vmatprep.subr.mxu0 0.0
        %840 = vmatpush1.xpose.msra.mxu0 0.0
        %841 = vmatprep.subr.mxu0 0.0
        %842 = vmatpush1.xpose.msra.mxu0 0.0
        %843 = vmatprep.subr.mxu0 0.0
        %844 = vmatpush1.xpose.msra.mxu0 0.0
        %845 = vmatprep.subr.mxu0 0.0
        %846 = vmatpush1.xpose.msra.mxu0 0.0
        %847 = vmatprep.subr.mxu0 0.0
        %848 = vmatpush1.xpose.msra.mxu0 0.0
        %849 = vmatprep.subr.mxu0 0.0
        %850 = vmatpush1.xpose.msra.mxu0 0.0
        %851 = vmatprep.subr.mxu0 0.0
        %852 = vmatpush1.xpose.msra.mxu0 0.0
        %853 = vmatprep.subr.mxu0 0.0
        %854 = vmatpush1.xpose.msra.mxu0 0.0
        %855 = vmatprep.subr.mxu0 0.0
        %856 = vmatpush1.xpose.msra.mxu0 0.0
        %857 = vmatprep.subr.mxu0 0.0
        %858 = vmatpush1.xpose.msra.mxu0 0.0
        %859 = vmatprep.subr.mxu0 0.0
        %860 = vmatpush1.xpose.msra.mxu0 0.0
        %861 = vmatprep.subr.mxu0 0.0
        %862 = vmatpush1.xpose.msra.mxu0 0.0
        %863 = vmatprep.subr.mxu0 0.0
        %864 = vmatpush1.xpose.msra.mxu0 0.0
        %865 = vmatprep.subr.mxu0 0.0
        %866 = vmatpush1.xpose.msra.mxu0 0.0
        %867 = vmatprep.subr.mxu0 0.0
        %868 = vmatpush1.xpose.msra.mxu0 0.0
        %869 = vmatprep.subr.mxu0 0.0
        %870 = vmatpush1.xpose.msra.mxu0 0.0
        %871 = vmatprep.subr.mxu0 0.0
        %872 = vmatpush1.xpose.msra.mxu0 0.0
        %873 = vmatprep.subr.mxu0 0.0
        %874 = vmatpush1.xpose.msra.mxu0 0.0
        %875 = vmatprep.subr.mxu0 0.0
        %876 = vmatpush1.xpose.msra.mxu0 0.0
        %877 = vmatprep.subr.mxu0 0.0
        %878 = vmatpush1.xpose.msra.mxu0 0.0
        %879 = vmatprep.subr.mxu0 0.0
        %880 = vmatpush1.xpose.msra.mxu0 0.0
        %881 = vmatprep.mubr.f32.mxu0 0.0
        %v882 = vand.u32 %v813, 4294901760
        %v883 = vsub.f32 %v813, %v882
        %v884 = vand.u32 %v883, 4294901760
        %v885 = vsub.f32 %v883, %v884
        %v886 = vand.u32 %v885, 4294901760
        %887 = vmatmul.mubr.f32.gmra.mrb[0].mxu0 %v886
        %v888 = vpop.f32.mrb[0].mxu0
        %v889 = vadd.f32 0.0, %v888
        %v890 = vpop.f32.mrb[0].mxu0
        %891 = vdwg.mxu0
        %892 = vmatprep.subr.mxu0 0.0
        %v893 = vand.u32 %v278, 4294901760
        %v894 = vsub.f32 %v278, %v893
        %v895 = vand.u32 %v894, 4294901760
        %v896 = vsub.f32 %v894, %v895
        %v897 = vand.u32 %v896, 4294901760
        %898 = vmatpush1.xpose.msra.mxu0 %v897
        %899 = vmatprep.subr.mxu0 0.0
        %v900 = vand.u32 %v281, 4294901760
        %v901 = vsub.f32 %v281, %v900
        %v902 = vand.u32 %v901, 4294901760
        %v903 = vsub.f32 %v901, %v902
        %v904 = vand.u32 %v903, 4294901760
        %905 = vmatpush1.xpose.msra.mxu0 %v904
        %906 = vmatprep.subr.mxu0 0.0
        %907 = vmatpush1.xpose.msra.mxu0 0.0
        %908 = vmatprep.subr.mxu0 0.0
        %909 = vmatpush1.xpose.msra.mxu0 0.0
        %910 = vmatprep.subr.mxu0 0.0
        %911 = vmatpush1.xpose.msra.mxu0 0.0
        %912 = vmatprep.subr.mxu0 0.0
        %913 = vmatpush1.xpose.msra.mxu0 0.0
        %914 = vmatprep.subr.mxu0 0.0
        %915 = vmatpush1.xpose.msra.mxu0 0.0
        %916 = vmatprep.subr.mxu0 0.0
        %917 = vmatpush1.xpose.msra.mxu0 0.0
        %918 = vmatprep.subr.mxu0 0.0
        %919 = vmatpush1.xpose.msra.mxu0 0.0
        %920 = vmatprep.subr.mxu0 0.0
        %921 = vmatpush1.xpose.msra.mxu0 0.0
        %922 = vmatprep.subr.mxu0 0.0
        %923 = vmatpush1.xpose.msra.mxu0 0.0
        %924 = vmatprep.subr.mxu0 0.0
        %925 = vmatpush1.xpose.msra.mxu0 0.0
        %926 = vmatprep.subr.mxu0 0.0
        %927 = vmatpush1.xpose.msra.mxu0 0.0
        %928 = vmatprep.subr.mxu0 0.0
        %929 = vmatpush1.xpose.msra.mxu0 0.0
        %930 = vmatprep.subr.mxu0 0.0
        %931 = vmatpush1.xpose.msra.mxu0 0.0
        %932 = vmatprep.subr.mxu0 0.0
        %933 = vmatpush1.xpose.msra.mxu0 0.0
        %934 = vmatprep.subr.mxu0 0.0
        %935 = vmatpush1.xpose.msra.mxu0 0.0
        %936 = vmatprep.subr.mxu0 0.0
        %937 = vmatpush1.xpose.msra.mxu0 0.0
        %938 = vmatprep.subr.mxu0 0.0
        %939 = vmatpush1.xpose.msra.mxu0 0.0
        %940 = vmatprep.subr.mxu0 0.0
        %941 = vmatpush1.xpose.msra.mxu0 0.0
        %942 = vmatprep.subr.mxu0 0.0
        %943 = vmatpush1.xpose.msra.mxu0 0.0
        %944 = vmatprep.subr.mxu0 0.0
        %945 = vmatpush1.xpose.msra.mxu0 0.0
        %946 = vmatprep.subr.mxu0 0.0
        %947 = vmatpush1.xpose.msra.mxu0 0.0
        %948 = vmatprep.subr.mxu0 0.0
        %949 = vmatpush1.xpose.msra.mxu0 0.0
        %950 = vmatprep.subr.mxu0 0.0
        %951 = vmatpush1.xpose.msra.mxu0 0.0
        %952 = vmatprep.subr.mxu0 0.0
        %953 = vmatpush1.xpose.msra.mxu0 0.0
        %954 = vmatprep.subr.mxu0 0.0
        %955 = vmatpush1.xpose.msra.mxu0 0.0
        %956 = vmatprep.subr.mxu0 0.0
        %957 = vmatpush1.xpose.msra.mxu0 0.0
        %958 = vmatprep.subr.mxu0 0.0
        %959 = vmatpush1.xpose.msra.mxu0 0.0
        %960 = vmatprep.subr.mxu0 0.0
        %961 = vmatpush1.xpose.msra.mxu0 0.0
        %962 = vmatprep.subr.mxu0 0.0
        %963 = vmatpush1.xpose.msra.mxu0 0.0
        %964 = vmatprep.subr.mxu0 0.0
        %965 = vmatpush1.xpose.msra.mxu0 0.0
        %966 = vmatprep.mubr.f32.mxu0 0.0
        %v967 = vand.u32 %v813, 4294901760
        %968 = vmatmul.mubr.f32.gmra.mrb[0].mxu0 %v967
        %v969 = vpop.f32.mrb[0].mxu0
        %v970 = vadd.f32 %v889, %v969
        %v971 = vpop.f32.mrb[0].mxu0
        %972 = vdwg.mxu0
        %973 = vmatprep.subr.mxu0 0.0
        %v974 = vand.u32 %v278, 4294901760
        %v975 = vsub.f32 %v278, %v974
        %976 = vmatpush1.xpose.msra.mxu0 %v975
        %977 = vmatprep.subr.mxu0 0.0
        %v978 = vand.u32 %v281, 4294901760
        %v979 = vsub.f32 %v281, %v978
        %980 = vmatpush1.xpose.msra.mxu0 %v979
        %981 = vmatprep.subr.mxu0 0.0
        %982 = vmatpush1.xpose.msra.mxu0 0.0
        %983 = vmatprep.subr.mxu0 0.0
        %984 = vmatpush1.xpose.msra.mxu0 0.0
        %985 = vmatprep.subr.mxu0 0.0
        %986 = vmatpush1.xpose.msra.mxu0 0.0
        %987 = vmatprep.subr.mxu0 0.0
        %988 = vmatpush1.xpose.msra.mxu0 0.0
        %989 = vmatprep.subr.mxu0 0.0
        %990 = vmatpush1.xpose.msra.mxu0 0.0
        %991 = vmatprep.subr.mxu0 0.0
        %992 = vmatpush1.xpose.msra.mxu0 0.0
        %993 = vmatprep.subr.mxu0 0.0
        %994 = vmatpush1.xpose.msra.mxu0 0.0
        %995 = vmatprep.subr.mxu0 0.0
        %996 = vmatpush1.xpose.msra.mxu0 0.0
        %997 = vmatprep.subr.mxu0 0.0
        %998 = vmatpush1.xpose.msra.mxu0 0.0
        %999 = vmatprep.subr.mxu0 0.0
        %1000 = vmatpush1.xpose.msra.mxu0 0.0
        %1001 = vmatprep.subr.mxu0 0.0
        %1002 = vmatpush1.xpose.msra.mxu0 0.0
        %1003 = vmatprep.subr.mxu0 0.0
        %1004 = vmatpush1.xpose.msra.mxu0 0.0
        %1005 = vmatprep.subr.mxu0 0.0
        %1006 = vmatpush1.xpose.msra.mxu0 0.0
        %1007 = vmatprep.subr.mxu0 0.0
        %1008 = vmatpush1.xpose.msra.mxu0 0.0
        %1009 = vmatprep.subr.mxu0 0.0
        %1010 = vmatpush1.xpose.msra.mxu0 0.0
        %1011 = vmatprep.subr.mxu0 0.0
        %1012 = vmatpush1.xpose.msra.mxu0 0.0
        %1013 = vmatprep.subr.mxu0 0.0
        %1014 = vmatpush1.xpose.msra.mxu0 0.0
        %1015 = vmatprep.subr.mxu0 0.0
        %1016 = vmatpush1.xpose.msra.mxu0 0.0
        %1017 = vmatprep.subr.mxu0 0.0
        %1018 = vmatpush1.xpose.msra.mxu0 0.0
        %1019 = vmatprep.subr.mxu0 0.0
        %1020 = vmatpush1.xpose.msra.mxu0 0.0
        %1021 = vmatprep.subr.mxu0 0.0
        %1022 = vmatpush1.xpose.msra.mxu0 0.0
        %1023 = vmatprep.subr.mxu0 0.0
        %1024 = vmatpush1.xpose.msra.mxu0 0.0
        %1025 = vmatprep.subr.mxu0 0.0
        %1026 = vmatpush1.xpose.msra.mxu0 0.0
        %1027 = vmatprep.subr.mxu0 0.0
        %1028 = vmatpush1.xpose.msra.mxu0 0.0
        %1029 = vmatprep.subr.mxu0 0.0
        %1030 = vmatpush1.xpose.msra.mxu0 0.0
        %1031 = vmatprep.subr.mxu0 0.0
        %1032 = vmatpush1.xpose.msra.mxu0 0.0
        %1033 = vmatprep.subr.mxu0 0.0
        %1034 = vmatpush1.xpose.msra.mxu0 0.0
        %1035 = vmatprep.subr.mxu0 0.0
        %1036 = vmatpush1.xpose.msra.mxu0 0.0
        %1037 = vmatprep.subr.mxu0 0.0
        %1038 = vmatpush1.xpose.msra.mxu0 0.0
        %1039 = vmatprep.subr.mxu0 0.0
        %1040 = vmatpush1.xpose.msra.mxu0 0.0
        %1041 = vmatprep.mubr.f32.mxu0 0.0
        %v1042 = vand.u32 %v813, 4294901760
        %v1043 = vsub.f32 %v813, %v1042
        %1044 = vmatmul.mubr.f32.gmra.mrb[0].mxu0 %v1043
        %v1045 = vpop.f32.mrb[0].mxu0
        %v1046 = vadd.f32 %v970, %v1045
        %v1047 = vpop.f32.mrb[0].mxu0
        %1048 = vdwg.mxu0
        %1049 = vmatprep.subr.mxu0 0.0
        %v1050 = vand.u32 %v278, 4294901760
        %1051 = vmatpush1.xpose.msra.mxu0 %v1050
        %1052 = vmatprep.subr.mxu0 0.0
        %v1053 = vand.u32 %v281, 4294901760
        %1054 = vmatpush1.xpose.msra.mxu0 %v1053
        %1055 = vmatprep.subr.mxu0 0.0
        %1056 = vmatpush1.xpose.msra.mxu0 0.0
        %1057 = vmatprep.subr.mxu0 0.0
        %1058 = vmatpush1.xpose.msra.mxu0 0.0
        %1059 = vmatprep.subr.mxu0 0.0
        %1060 = vmatpush1.xpose.msra.mxu0 0.0
        %1061 = vmatprep.subr.mxu0 0.0
        %1062 = vmatpush1.xpose.msra.mxu0 0.0
        %1063 = vmatprep.subr.mxu0 0.0
        %1064 = vmatpush1.xpose.msra.mxu0 0.0
        %1065 = vmatprep.subr.mxu0 0.0
        %1066 = vmatpush1.xpose.msra.mxu0 0.0
        %1067 = vmatprep.subr.mxu0 0.0
        %1068 = vmatpush1.xpose.msra.mxu0 0.0
        %1069 = vmatprep.subr.mxu0 0.0
        %1070 = vmatpush1.xpose.msra.mxu0 0.0
        %1071 = vmatprep.subr.mxu0 0.0
        %1072 = vmatpush1.xpose.msra.mxu0 0.0
        %1073 = vmatprep.subr.mxu0 0.0
        %1074 = vmatpush1.xpose.msra.mxu0 0.0
        %1075 = vmatprep.subr.mxu0 0.0
        %1076 = vmatpush1.xpose.msra.mxu0 0.0
        %1077 = vmatprep.subr.mxu0 0.0
        %1078 = vmatpush1.xpose.msra.mxu0 0.0
        %1079 = vmatprep.subr.mxu0 0.0
        %1080 = vmatpush1.xpose.msra.mxu0 0.0
        %1081 = vmatprep.subr.mxu0 0.0
        %1082 = vmatpush1.xpose.msra.mxu0 0.0
        %1083 = vmatprep.subr.mxu0 0.0
        %1084 = vmatpush1.xpose.msra.mxu0 0.0
        %1085 = vmatprep.subr.mxu0 0.0
        %1086 = vmatpush1.xpose.msra.mxu0 0.0
        %1087 = vmatprep.subr.mxu0 0.0
        %1088 = vmatpush1.xpose.msra.mxu0 0.0
        %1089 = vmatprep.subr.mxu0 0.0
        %1090 = vmatpush1.xpose.msra.mxu0 0.0
        %1091 = vmatprep.subr.mxu0 0.0
        %1092 = vmatpush1.xpose.msra.mxu0 0.0
        %1093 = vmatprep.subr.mxu0 0.0
        %1094 = vmatpush1.xpose.msra.mxu0 0.0
        %1095 = vmatprep.subr.mxu0 0.0
        %1096 = vmatpush1.xpose.msra.mxu0 0.0
        %1097 = vmatprep.subr.mxu0 0.0
        %1098 = vmatpush1.xpose.msra.mxu0 0.0
        %1099 = vmatprep.subr.mxu0 0.0
        %1100 = vmatpush1.xpose.msra.mxu0 0.0
        %1101 = vmatprep.subr.mxu0 0.0
        %1102 = vmatpush1.xpose.msra.mxu0 0.0
        %1103 = vmatprep.subr.mxu0 0.0
        %1104 = vmatpush1.xpose.msra.mxu0 0.0
        %1105 = vmatprep.subr.mxu0 0.0
        %1106 = vmatpush1.xpose.msra.mxu0 0.0
        %1107 = vmatprep.subr.mxu0 0.0
        %1108 = vmatpush1.xpose.msra.mxu0 0.0
        %1109 = vmatprep.subr.mxu0 0.0
        %1110 = vmatpush1.xpose.msra.mxu0 0.0
        %1111 = vmatprep.subr.mxu0 0.0
        %1112 = vmatpush1.xpose.msra.mxu0 0.0
        %1113 = vmatprep.subr.mxu0 0.0
        %1114 = vmatpush1.xpose.msra.mxu0 0.0
        %1115 = vmatprep.mubr.f32.mxu0 0.0
        %v1116 = vand.u32 %v813, 4294901760
        %v1117 = vsub.f32 %v813, %v1116
        %v1118 = vand.u32 %v1117, 4294901760
        %1119 = vmatmul.mubr.f32.gmra.mrb[0].mxu0 %v1118
        %v1120 = vpop.f32.mrb[0].mxu0
        %v1121 = vadd.f32 %v1046, %v1120
        %v1122 = vpop.f32.mrb[0].mxu0
        %1123 = vdwg.mxu0
        %1124 = vmatprep.subr.mxu0 0.0
        %v1125 = vand.u32 %v278, 4294901760
        %v1126 = vsub.f32 %v278, %v1125
        %v1127 = vand.u32 %v1126, 4294901760
        %1128 = vmatpush1.xpose.msra.mxu0 %v1127
        %1129 = vmatprep.subr.mxu0 0.0
        %v1130 = vand.u32 %v281, 4294901760
        %v1131 = vsub.f32 %v281, %v1130
        %v1132 = vand.u32 %v1131, 4294901760
        %1133 = vmatpush1.xpose.msra.mxu0 %v1132
        %1134 = vmatprep.subr.mxu0 0.0
        %1135 = vmatpush1.xpose.msra.mxu0 0.0
        %1136 = vmatprep.subr.mxu0 0.0
        %1137 = vmatpush1.xpose.msra.mxu0 0.0
        %1138 = vmatprep.subr.mxu0 0.0
        %1139 = vmatpush1.xpose.msra.mxu0 0.0
        %1140 = vmatprep.subr.mxu0 0.0
        %1141 = vmatpush1.xpose.msra.mxu0 0.0
        %1142 = vmatprep.subr.mxu0 0.0
        %1143 = vmatpush1.xpose.msra.mxu0 0.0
        %1144 = vmatprep.subr.mxu0 0.0
        %1145 = vmatpush1.xpose.msra.mxu0 0.0
        %1146 = vmatprep.subr.mxu0 0.0
        %1147 = vmatpush1.xpose.msra.mxu0 0.0
        %1148 = vmatprep.subr.mxu0 0.0
        %1149 = vmatpush1.xpose.msra.mxu0 0.0
        %1150 = vmatprep.subr.mxu0 0.0
        %1151 = vmatpush1.xpose.msra.mxu0 0.0
        %1152 = vmatprep.subr.mxu0 0.0
        %1153 = vmatpush1.xpose.msra.mxu0 0.0
        %1154 = vmatprep.subr.mxu0 0.0
        %1155 = vmatpush1.xpose.msra.mxu0 0.0
        %1156 = vmatprep.subr.mxu0 0.0
        %1157 = vmatpush1.xpose.msra.mxu0 0.0
        %1158 = vmatprep.subr.mxu0 0.0
        %1159 = vmatpush1.xpose.msra.mxu0 0.0
        %1160 = vmatprep.subr.mxu0 0.0
        %1161 = vmatpush1.xpose.msra.mxu0 0.0
        %1162 = vmatprep.subr.mxu0 0.0
        %1163 = vmatpush1.xpose.msra.mxu0 0.0
        %1164 = vmatprep.subr.mxu0 0.0
        %1165 = vmatpush1.xpose.msra.mxu0 0.0
        %1166 = vmatprep.subr.mxu0 0.0
        %1167 = vmatpush1.xpose.msra.mxu0 0.0
        %1168 = vmatprep.subr.mxu0 0.0
        %1169 = vmatpush1.xpose.msra.mxu0 0.0
        %1170 = vmatprep.subr.mxu0 0.0
        %1171 = vmatpush1.xpose.msra.mxu0 0.0
        %1172 = vmatprep.subr.mxu0 0.0
        %1173 = vmatpush1.xpose.msra.mxu0 0.0
        %1174 = vmatprep.subr.mxu0 0.0
        %1175 = vmatpush1.xpose.msra.mxu0 0.0
        %1176 = vmatprep.subr.mxu0 0.0
        %1177 = vmatpush1.xpose.msra.mxu0 0.0
        %1178 = vmatprep.subr.mxu0 0.0
        %1179 = vmatpush1.xpose.msra.mxu0 0.0
        %1180 = vmatprep.subr.mxu0 0.0
        %1181 = vmatpush1.xpose.msra.mxu0 0.0
        %1182 = vmatprep.subr.mxu0 0.0
        %1183 = vmatpush1.xpose.msra.mxu0 0.0
        %1184 = vmatprep.subr.mxu0 0.0
        %1185 = vmatpush1.xpose.msra.mxu0 0.0
        %1186 = vmatprep.subr.mxu0 0.0
        %1187 = vmatpush1.xpose.msra.mxu0 0.0
        %1188 = vmatprep.subr.mxu0 0.0
        %1189 = vmatpush1.xpose.msra.mxu0 0.0
        %1190 = vmatprep.subr.mxu0 0.0
        %1191 = vmatpush1.xpose.msra.mxu0 0.0
        %1192 = vmatprep.subr.mxu0 0.0
        %1193 = vmatpush1.xpose.msra.mxu0 0.0
        %1194 = vmatprep.mubr.f32.mxu0 0.0
        %v1195 = vand.u32 %v813, 4294901760
        %1196 = vmatmul.mubr.f32.gmra.mrb[0].mxu0 %v1195
        %v1197 = vpop.f32.mrb[0].mxu0
        %v1198 = vadd.f32 %v1121, %v1197
        %v1199 = vpop.f32.mrb[0].mxu0
        %1200 = vdwg.mxu0
        %1201 = vmatprep.subr.mxu0 0.0
        %v1202 = vand.u32 %v278, 4294901760
        %1203 = vmatpush1.xpose.msra.mxu0 %v1202
        %1204 = vmatprep.subr.mxu0 0.0
        %v1205 = vand.u32 %v281, 4294901760
        %1206 = vmatpush1.xpose.msra.mxu0 %v1205
        %1207 = vmatprep.subr.mxu0 0.0
        %1208 = vmatpush1.xpose.msra.mxu0 0.0
        %1209 = vmatprep.subr.mxu0 0.0
        %1210 = vmatpush1.xpose.msra.mxu0 0.0
        %1211 = vmatprep.subr.mxu0 0.0
        %1212 = vmatpush1.xpose.msra.mxu0 0.0
        %1213 = vmatprep.subr.mxu0 0.0
        %1214 = vmatpush1.xpose.msra.mxu0 0.0
        %1215 = vmatprep.subr.mxu0 0.0
        %1216 = vmatpush1.xpose.msra.mxu0 0.0
        %1217 = vmatprep.subr.mxu0 0.0
        %1218 = vmatpush1.xpose.msra.mxu0 0.0
        %1219 = vmatprep.subr.mxu0 0.0
        %1220 = vmatpush1.xpose.msra.mxu0 0.0
        %1221 = vmatprep.subr.mxu0 0.0
        %1222 = vmatpush1.xpose.msra.mxu0 0.0
        %1223 = vmatprep.subr.mxu0 0.0
        %1224 = vmatpush1.xpose.msra.mxu0 0.0
        %1225 = vmatprep.subr.mxu0 0.0
        %1226 = vmatpush1.xpose.msra.mxu0 0.0
        %1227 = vmatprep.subr.mxu0 0.0
        %1228 = vmatpush1.xpose.msra.mxu0 0.0
        %1229 = vmatprep.subr.mxu0 0.0
        %1230 = vmatpush1.xpose.msra.mxu0 0.0
        %1231 = vmatprep.subr.mxu0 0.0
        %1232 = vmatpush1.xpose.msra.mxu0 0.0
        %1233 = vmatprep.subr.mxu0 0.0
        %1234 = vmatpush1.xpose.msra.mxu0 0.0
        %1235 = vmatprep.subr.mxu0 0.0
        %1236 = vmatpush1.xpose.msra.mxu0 0.0
        %1237 = vmatprep.subr.mxu0 0.0
        %1238 = vmatpush1.xpose.msra.mxu0 0.0
        %1239 = vmatprep.subr.mxu0 0.0
        %1240 = vmatpush1.xpose.msra.mxu0 0.0
        %1241 = vmatprep.subr.mxu0 0.0
        %1242 = vmatpush1.xpose.msra.mxu0 0.0
        %1243 = vmatprep.subr.mxu0 0.0
        %1244 = vmatpush1.xpose.msra.mxu0 0.0
        %1245 = vmatprep.subr.mxu0 0.0
        %1246 = vmatpush1.xpose.msra.mxu0 0.0
        %1247 = vmatprep.subr.mxu0 0.0
        %1248 = vmatpush1.xpose.msra.mxu0 0.0
        %1249 = vmatprep.subr.mxu0 0.0
        %1250 = vmatpush1.xpose.msra.mxu0 0.0
        %1251 = vmatprep.subr.mxu0 0.0
        %1252 = vmatpush1.xpose.msra.mxu0 0.0
        %1253 = vmatprep.subr.mxu0 0.0
        %1254 = vmatpush1.xpose.msra.mxu0 0.0
        %1255 = vmatprep.subr.mxu0 0.0
        %1256 = vmatpush1.xpose.msra.mxu0 0.0
        %1257 = vmatprep.subr.mxu0 0.0
        %1258 = vmatpush1.xpose.msra.mxu0 0.0
        %1259 = vmatprep.subr.mxu0 0.0
        %1260 = vmatpush1.xpose.msra.mxu0 0.0
        %1261 = vmatprep.subr.mxu0 0.0
        %1262 = vmatpush1.xpose.msra.mxu0 0.0
        %1263 = vmatprep.subr.mxu0 0.0
        %1264 = vmatpush1.xpose.msra.mxu0 0.0
        %1265 = vmatprep.subr.mxu0 0.0
        %1266 = vmatpush1.xpose.msra.mxu0 0.0
        %1267 = vmatprep.mubr.f32.mxu0 0.0
        %v1268 = vand.u32 %v813, 4294901760
        %1269 = vmatmul.mubr.f32.gmra.mrb[0].mxu0 %v1268
        %v1270 = vpop.f32.mrb[0].mxu0
        %v1271 = vadd.f32 %v1198, %v1270
        %v1272 = vpop.f32.mrb[0].mxu0
        %1273 = vdwg.mxu0
        %v1274 = vlaneseq
        %v1275 = vshrl.u32 %v1274, 7
        %v1276 = vsub.s32 4, %v1275
        %v1277 = vrot.slane %v1271, %v1276
        %1279 = vbcast.lane.b32.xlu0 %v1277, 256
        %v1280 = vpop.permute.xlu0 %1279
        %s1282 = sor.u32 256, 8
        %1283 = vbcast.lane.b32.xlu0 %v1277, %s1282
        %v1284 = vpop.permute.xlu0 %1283
        %v1285 = vlaneseq
        %v1286 = vshrl.u32 %v1285, 7
        %v1287 = vsub.s32 5, %v1286
        %v1288 = vrot.slane %v1271, %v1287
        %1290 = vbcast.lane.b32.xlu0 %v1288, 256
        %v1291 = vpop.permute.xlu0 %1290
        %s1293 = sor.u32 256, 8
        %1294 = vbcast.lane.b32.xlu0 %v1288, %s1293
        %v1295 = vpop.permute.xlu0 %1294
        %v1296 = vlaneseq
        %v1297 = vshrl.u32 %v1296, 7
        %v1298 = vsub.s32 6, %v1297
        %v1299 = vrot.slane %v1271, %v1298
        %1301 = vbcast.lane.b32.xlu0 %v1299, 256
        %v1302 = vpop.permute.xlu0 %1301
        %s1304 = sor.u32 256, 8
        %1305 = vbcast.lane.b32.xlu0 %v1299, %s1304
        %v1306 = vpop.permute.xlu0 %1305
        %v1307 = vlaneseq
        %v1308 = vshrl.u32 %v1307, 7
        %v1309 = vsub.s32 7, %v1308
        %v1310 = vrot.slane %v1271, %v1309
        %1312 = vbcast.lane.b32.xlu0 %v1310, 256
        %v1313 = vpop.permute.xlu0 %1312
        %s1315 = sor.u32 256, 8
        %1316 = vbcast.lane.b32.xlu0 %v1310, %s1315
        %v1317 = vpop.permute.xlu0 %1316
        %v1320 = vunpack.c.l.s4 1966171168
        %v1321 = vunpack.c.0.s8 %v1320
        %v1322 = vlaneseq
        %v1323 = vshrl.u32 %v1322, 7
        %v1324 = vsub.s32 %v1321, %v1323
        %v1325 = vrot.slane %v1271, %v1324
        %v1326 = vcombine.high %v1325, %v1325
        %v1328 = vunpack.c.l.s4 1966171168
        %v1329 = vunpack.c.0.s8 %v1328
        %v1330 = vlaneseq
        %v1331 = vshrl.u32 %v1330, 7
        %v1332 = vsub.s32 %v1329, %v1331
        %v1333 = vrot.slane %v1325, %v1332
        %v1335 = vunpack.c.l.s4 1966171168
        %v1336 = vunpack.c.0.s8 %v1335
        %v1337 = vlaneseq
        %v1338 = vshrl.u32 %v1337, 7
        %v1339 = vsub.s32 %v1336, %v1338
        %v1340 = vrot.slane %v1326, %v1339
        %v1341 = vcombine.high %v1333, %v1333
        %v1342 = vcombine.high %v1340, %v1340
        %v1343 = vlaneseq
        %v1344 = vshrl.u32 %v1343, 7
        %v1345 = vsub.s32 0, %v1344
        %v1346 = vrot.slane %v1333, %v1345
        %v1347 = vlaneseq
        %v1348 = vshrl.u32 %v1347, 7
        %v1349 = vsub.s32 0, %v1348
        %v1350 = vrot.slane %v1340, %v1349
        %v1351 = vlaneseq
        %v1352 = vshrl.u32 %v1351, 7
        %v1353 = vsub.s32 0, %v1352
        %v1354 = vrot.slane %v1341, %v1353
        %v1355 = vlaneseq
        %v1356 = vshrl.u32 %v1355, 7
        %v1357 = vsub.s32 0, %v1356
        %v1358 = vrot.slane %v1342, %v1357
        %v1363 = vadd.f32 %v1280, %v1346
        %v1364 = vadd.f32 %v1284, %v1346
        %v1365 = vadd.f32 %v1291, %v1350
        %v1366 = vadd.f32 %v1295, %v1350
        %v1367 = vadd.f32 %v1302, %v1354
        %v1368 = vadd.f32 %v1306, %v1354
        %v1369 = vadd.f32 %v1313, %v1358
        %v1370 = vadd.f32 %v1317, %v1358
        %vm1371 = vcmp.ge.f32.partialorder %v1363, 0.0
        %vm1372 = vcmp.ge.f32.partialorder %v1364, 0.0
        %vm1373 = vcmp.ge.f32.partialorder %v1365, 0.0
        %vm1374 = vcmp.ge.f32.partialorder %v1366, 0.0
        %vm1375 = vcmp.ge.f32.partialorder %v1367, 0.0
        %vm1376 = vcmp.ge.f32.partialorder %v1368, 0.0
        %vm1377 = vcmp.ge.f32.partialorder %v1369, 0.0
        %vm1378 = vcmp.ge.f32.partialorder %v1370, 0.0
        %v1379 = vmul.f32 %v1363, 0.01
        %v1380 = vmul.f32 %v1364, 0.01
        %v1381 = vmul.f32 %v1365, 0.01
        %v1382 = vmul.f32 %v1366, 0.01
        %v1383 = vmul.f32 %v1367, 0.01
        %v1384 = vmul.f32 %v1368, 0.01
        %v1385 = vmul.f32 %v1369, 0.01
        %v1386 = vmul.f32 %v1370, 0.01
        %v1387 = vsel %vm1371, %v1363, %v1379
        %v1388 = vsel %vm1372, %v1364, %v1380
        %v1389 = vsel %vm1373, %v1365, %v1381
        %v1390 = vsel %vm1374, %v1366, %v1382
        %v1391 = vsel %vm1375, %v1367, %v1383
        %v1392 = vsel %vm1376, %v1368, %v1384
        %v1393 = vsel %vm1377, %v1369, %v1385
        %v1394 = vsel %vm1378, %v1370, %v1386
        %v1395 = vld [vmem:[%s236] sm:$0xff]
        %v1396 = vld [vmem:[%s236 + $0x8] sm:$0xff]
        %v1397 = vadd.f32 %v1387, %v1395
        %v1398 = vadd.f32 %v1388, %v1396
        %v1399 = vadd.f32 %v1389, %v1395
        %v1400 = vadd.f32 %v1390, %v1396
        %v1401 = vadd.f32 %v1391, %v1395
        %v1402 = vadd.f32 %v1392, %v1396
        %v1403 = vadd.f32 %v1393, %v1395
        %v1404 = vadd.f32 %v1394, %v1396
        %vm1405 = vcmask 130048
        %v1406 = vsel %vm1405, %v1397, -inf
        %1407 = vmax.xlane.f32.xlu0 %v1406
        %v1408 = vpop.xlane.xlu0 %1407
        %v1409 = vsel %vm1405, %v1398, -inf
        %1410 = vmax.xlane.f32.xlu0 %v1409
        %v1411 = vpop.xlane.xlu0 %1410
        %v1412 = vsel %vm1405, %v1399, -inf
        %1413 = vmax.xlane.f32.xlu0 %v1412
        %v1414 = vpop.xlane.xlu0 %1413
        %v1415 = vsel %vm1405, %v1400, -inf
        %1416 = vmax.xlane.f32.xlu0 %v1415
        %v1417 = vpop.xlane.xlu0 %1416
        %v1418 = vsel %vm1405, %v1401, -inf
        %1419 = vmax.xlane.f32.xlu0 %v1418
        %v1420 = vpop.xlane.xlu0 %1419
        %v1421 = vsel %vm1405, %v1402, -inf
        %1422 = vmax.xlane.f32.xlu0 %v1421
        %v1423 = vpop.xlane.xlu0 %1422
        %v1424 = vsel %vm1405, %v1403, -inf
        %1425 = vmax.xlane.f32.xlu0 %v1424
        %v1426 = vpop.xlane.xlu0 %1425
        %v1427 = vsel %vm1405, %v1404, -inf
        %1428 = vmax.xlane.f32.xlu0 %v1427
        %v1429 = vpop.xlane.xlu0 %1428
        %v1430 = vsub.f32 %v1397, %v1408
        %v1431 = vsub.f32 %v1398, %v1411
        %v1432 = vsub.f32 %v1399, %v1414
        %v1433 = vsub.f32 %v1400, %v1417
        %v1434 = vsub.f32 %v1401, %v1420
        %v1435 = vsub.f32 %v1402, %v1423
        %v1436 = vsub.f32 %v1403, %v1426
        %v1437 = vsub.f32 %v1404, %v1429
        %v1438 = vmul.f32 %v1430, 1.442695
        %v1439 = vpow.pop %v1438
        %v1440 = vmul.f32 %v1431, 1.442695
        %v1441 = vpow.pop %v1440
        %v1442 = vmul.f32 %v1432, 1.442695
        %v1443 = vpow.pop %v1442
        %v1444 = vmul.f32 %v1433, 1.442695
        %v1445 = vpow.pop %v1444
        %v1446 = vmul.f32 %v1434, 1.442695
        %v1447 = vpow.pop %v1446
        %v1448 = vmul.f32 %v1435, 1.442695
        %v1449 = vpow.pop %v1448
        %v1450 = vmul.f32 %v1436, 1.442695
        %v1451 = vpow.pop %v1450
        %v1452 = vmul.f32 %v1437, 1.442695
        %v1453 = vpow.pop %v1452
        %v1454 = vsel %vm1405, %v1439, 0.0
        %1455 = vadd.xlane.f32.xlu0 %v1454
        %v1456 = vpop.xlane.xlu0 %1455
        %v1457 = vsel %vm1405, %v1441, 0.0
        %1458 = vadd.xlane.f32.xlu0 %v1457
        %v1459 = vpop.xlane.xlu0 %1458
        %v1460 = vsel %vm1405, %v1443, 0.0
        %1461 = vadd.xlane.f32.xlu0 %v1460
        %v1462 = vpop.xlane.xlu0 %1461
        %v1463 = vsel %vm1405, %v1445, 0.0
        %1464 = vadd.xlane.f32.xlu0 %v1463
        %v1465 = vpop.xlane.xlu0 %1464
        %v1466 = vsel %vm1405, %v1447, 0.0
        %1467 = vadd.xlane.f32.xlu0 %v1466
        %v1468 = vpop.xlane.xlu0 %1467
        %v1469 = vsel %vm1405, %v1449, 0.0
        %1470 = vadd.xlane.f32.xlu0 %v1469
        %v1471 = vpop.xlane.xlu0 %1470
        %v1472 = vsel %vm1405, %v1451, 0.0
        %1473 = vadd.xlane.f32.xlu0 %v1472
        %v1474 = vpop.xlane.xlu0 %1473
        %v1475 = vsel %vm1405, %v1453, 0.0
        %1476 = vadd.xlane.f32.xlu0 %v1475
        %v1477 = vpop.xlane.xlu0 %1476
        %v1478 = vrcp.pop %v1456
        %v1479 = vrcp.pop %v1459
        %v1480 = vrcp.pop %v1462
        %v1481 = vrcp.pop %v1465
        %v1482 = vrcp.pop %v1468
        %v1483 = vrcp.pop %v1471
        %v1484 = vrcp.pop %v1474
        %v1485 = vrcp.pop %v1477
        %v1486 = vmul.f32 %v1456, %v1478
        %v1487 = vmul.f32 %v1459, %v1479
        %v1488 = vmul.f32 %v1462, %v1480
        %v1489 = vmul.f32 %v1465, %v1481
        %v1490 = vmul.f32 %v1468, %v1482
        %v1491 = vmul.f32 %v1471, %v1483
        %v1492 = vmul.f32 %v1474, %v1484
        %v1493 = vmul.f32 %v1477, %v1485
        %v1494 = vsub.f32 2.0, %v1486
        %v1495 = vsub.f32 2.0, %v1487
        %v1496 = vsub.f32 2.0, %v1488
        %v1497 = vsub.f32 2.0, %v1489
        %v1498 = vsub.f32 2.0, %v1490
        %v1499 = vsub.f32 2.0, %v1491
        %v1500 = vsub.f32 2.0, %v1492
        %v1501 = vsub.f32 2.0, %v1493
        %v1502 = vmul.f32 %v1478, %v1494
        %v1503 = vmul.f32 %v1479, %v1495
        %v1504 = vmul.f32 %v1480, %v1496
        %v1505 = vmul.f32 %v1481, %v1497
        %v1506 = vmul.f32 %v1482, %v1498
        %v1507 = vmul.f32 %v1483, %v1499
        %v1508 = vmul.f32 %v1484, %v1500
        %v1509 = vmul.f32 %v1485, %v1501
        %v1510 = vmul.f32 %v1456, %v1502
        %v1511 = vmul.f32 %v1459, %v1503
        %v1512 = vmul.f32 %v1462, %v1504
        %v1513 = vmul.f32 %v1465, %v1505
        %v1514 = vmul.f32 %v1468, %v1506
        %v1515 = vmul.f32 %v1471, %v1507
        %v1516 = vmul.f32 %v1474, %v1508
        %v1517 = vmul.f32 %v1477, %v1509
        %v1518 = vsub.f32 2.0, %v1510
        %v1519 = vsub.f32 2.0, %v1511
        %v1520 = vsub.f32 2.0, %v1512
        %v1521 = vsub.f32 2.0, %v1513
        %v1522 = vsub.f32 2.0, %v1514
        %v1523 = vsub.f32 2.0, %v1515
        %v1524 = vsub.f32 2.0, %v1516
        %v1525 = vsub.f32 2.0, %v1517
        %v1526 = vmul.f32 %v1502, %v1518
        %v1527 = vmul.f32 %v1503, %v1519
        %v1528 = vmul.f32 %v1504, %v1520
        %v1529 = vmul.f32 %v1505, %v1521
        %v1530 = vmul.f32 %v1506, %v1522
        %v1531 = vmul.f32 %v1507, %v1523
        %v1532 = vmul.f32 %v1508, %v1524
        %v1533 = vmul.f32 %v1509, %v1525
        %v1534 = vmul.f32 %v1439, %v1526
        %v1535 = vmul.f32 %v1441, %v1527
        %v1536 = vmul.f32 %v1443, %v1528
        %v1537 = vmul.f32 %v1445, %v1529
        %v1538 = vmul.f32 %v1447, %v1530
        %v1539 = vmul.f32 %v1449, %v1531
        %v1540 = vmul.f32 %v1451, %v1532
        %v1541 = vmul.f32 %v1453, %v1533
        %v1543 = vsel %vm1405, %v1534, 0
        %v1546 = vsel %vm1405, %v1535, 0
        %1548 = vmatprep.subr.mxu0 0.0
        %v1549 = vand.u32 %v802, 4294901760
        %1550 = vmatpush1.msra.mxu0 %v1549
        %1551 = vmatprep.subr.mxu0 0.0
        %v1552 = vand.u32 %v808, 4294901760
        %1553 = vmatpush1.msra.mxu0 %v1552
        %1554 = vmatprep.subr.mxu0 0.0
        %1555 = vmatpush1.msra.mxu0 0.0
        %1556 = vmatprep.subr.mxu0 0.0
        %1557 = vmatpush1.msra.mxu0 0.0
        %1558 = vmatprep.subr.mxu0 0.0
        %1559 = vmatpush1.msra.mxu0 0.0
        %1560 = vmatprep.subr.mxu0 0.0
        %1561 = vmatpush1.msra.mxu0 0.0
        %1562 = vmatprep.subr.mxu0 0.0
        %1563 = vmatpush1.msra.mxu0 0.0
        %1564 = vmatprep.subr.mxu0 0.0
        %1565 = vmatpush1.msra.mxu0 0.0
        %1566 = vmatprep.subr.mxu0 0.0
        %1567 = vmatpush1.msra.mxu0 0.0
        %1568 = vmatprep.subr.mxu0 0.0
        %1569 = vmatpush1.msra.mxu0 0.0
        %1570 = vmatprep.subr.mxu0 0.0
        %1571 = vmatpush1.msra.mxu0 0.0
        %1572 = vmatprep.subr.mxu0 0.0
        %1573 = vmatpush1.msra.mxu0 0.0
        %1574 = vmatprep.subr.mxu0 0.0
        %1575 = vmatpush1.msra.mxu0 0.0
        %1576 = vmatprep.subr.mxu0 0.0
        %1577 = vmatpush1.msra.mxu0 0.0
        %1578 = vmatprep.subr.mxu0 0.0
        %1579 = vmatpush1.msra.mxu0 0.0
        %1580 = vmatprep.subr.mxu0 0.0
        %1581 = vmatpush1.msra.mxu0 0.0
        %1582 = vmatprep.subr.mxu0 0.0
        %1583 = vmatpush1.msra.mxu0 0.0
        %1584 = vmatprep.subr.mxu0 0.0
        %1585 = vmatpush1.msra.mxu0 0.0
        %1586 = vmatprep.subr.mxu0 0.0
        %1587 = vmatpush1.msra.mxu0 0.0
        %1588 = vmatprep.subr.mxu0 0.0
        %1589 = vmatpush1.msra.mxu0 0.0
        %1590 = vmatprep.subr.mxu0 0.0
        %1591 = vmatpush1.msra.mxu0 0.0
        %1592 = vmatprep.subr.mxu0 0.0
        %1593 = vmatpush1.msra.mxu0 0.0
        %1594 = vmatprep.subr.mxu0 0.0
        %1595 = vmatpush1.msra.mxu0 0.0
        %1596 = vmatprep.subr.mxu0 0.0
        %1597 = vmatpush1.msra.mxu0 0.0
        %1598 = vmatprep.subr.mxu0 0.0
        %1599 = vmatpush1.msra.mxu0 0.0
        %1600 = vmatprep.subr.mxu0 0.0
        %1601 = vmatpush1.msra.mxu0 0.0
        %1602 = vmatprep.subr.mxu0 0.0
        %1603 = vmatpush1.msra.mxu0 0.0
        %1604 = vmatprep.subr.mxu0 0.0
        %1605 = vmatpush1.msra.mxu0 0.0
        %1606 = vmatprep.subr.mxu0 0.0
        %1607 = vmatpush1.msra.mxu0 0.0
        %1608 = vmatprep.subr.mxu0 0.0
        %1609 = vmatpush1.msra.mxu0 0.0
        %1610 = vmatprep.subr.mxu0 0.0
        %1611 = vmatpush1.msra.mxu0 0.0
        %1612 = vmatprep.subr.mxu0 0.0
        %1613 = vmatpush1.msra.mxu0 0.0
        %1614 = vmatprep.mubr.f32.mxu0 0.0
        %v1615 = vand.u32 %v1543, 4294901760
        %v1616 = vsub.f32 %v1543, %v1615
        %v1617 = vand.u32 %v1616, 4294901760
        %v1618 = vsub.f32 %v1616, %v1617
        %v1619 = vand.u32 %v1618, 4294901760
        %1620 = vmatmul.mubr.f32.gmra.mrb[0].mxu0 %v1619
        %v1621 = vpop.f32.mrb[0].mxu0
        %v1622 = vadd.f32 0.0, %v1621
        %v1623 = vpop.f32.mrb[0].mxu0
        %1624 = vmatprep.mubr.f32.mxu0 0.0
        %v1625 = vand.u32 %v1546, 4294901760
        %v1626 = vsub.f32 %v1546, %v1625
        %v1627 = vand.u32 %v1626, 4294901760
        %v1628 = vsub.f32 %v1626, %v1627
        %v1629 = vand.u32 %v1628, 4294901760
        %1630 = vmatmul.mubr.f32.gmra.mrb[0].mxu0 %v1629
        %v1631 = vpop.f32.mrb[0].mxu0
        %v1632 = vadd.f32 0.0, %v1631
        %v1633 = vpop.f32.mrb[0].mxu0
        %1634 = vdwg.mxu0
        %1635 = vmatprep.subr.mxu0 0.0
        %v1636 = vand.u32 %v802, 4294901760
        %v1637 = vsub.f32 %v802, %v1636
        %v1638 = vand.u32 %v1637, 4294901760
        %v1639 = vsub.f32 %v1637, %v1638
        %v1640 = vand.u32 %v1639, 4294901760
        %1641 = vmatpush1.msra.mxu0 %v1640
        %1642 = vmatprep.subr.mxu0 0.0
        %v1643 = vand.u32 %v808, 4294901760
        %v1644 = vsub.f32 %v808, %v1643
        %v1645 = vand.u32 %v1644, 4294901760
        %v1646 = vsub.f32 %v1644, %v1645
        %v1647 = vand.u32 %v1646, 4294901760
        %1648 = vmatpush1.msra.mxu0 %v1647
        %1649 = vmatprep.subr.mxu0 0.0
        %1650 = vmatpush1.msra.mxu0 0.0
        %1651 = vmatprep.subr.mxu0 0.0
        %1652 = vmatpush1.msra.mxu0 0.0
        %1653 = vmatprep.subr.mxu0 0.0
        %1654 = vmatpush1.msra.mxu0 0.0
        %1655 = vmatprep.subr.mxu0 0.0
        %1656 = vmatpush1.msra.mxu0 0.0
        %1657 = vmatprep.subr.mxu0 0.0
        %1658 = vmatpush1.msra.mxu0 0.0
        %1659 = vmatprep.subr.mxu0 0.0
        %1660 = vmatpush1.msra.mxu0 0.0
        %1661 = vmatprep.subr.mxu0 0.0
        %1662 = vmatpush1.msra.mxu0 0.0
        %1663 = vmatprep.subr.mxu0 0.0
        %1664 = vmatpush1.msra.mxu0 0.0
        %1665 = vmatprep.subr.mxu0 0.0
        %1666 = vmatpush1.msra.mxu0 0.0
        %1667 = vmatprep.subr.mxu0 0.0
        %1668 = vmatpush1.msra.mxu0 0.0
        %1669 = vmatprep.subr.mxu0 0.0
        %1670 = vmatpush1.msra.mxu0 0.0
        %1671 = vmatprep.subr.mxu0 0.0
        %1672 = vmatpush1.msra.mxu0 0.0
        %1673 = vmatprep.subr.mxu0 0.0
        %1674 = vmatpush1.msra.mxu0 0.0
        %1675 = vmatprep.subr.mxu0 0.0
        %1676 = vmatpush1.msra.mxu0 0.0
        %1677 = vmatprep.subr.mxu0 0.0
        %1678 = vmatpush1.msra.mxu0 0.0
        %1679 = vmatprep.subr.mxu0 0.0
        %1680 = vmatpush1.msra.mxu0 0.0
        %1681 = vmatprep.subr.mxu0 0.0
        %1682 = vmatpush1.msra.mxu0 0.0
        %1683 = vmatprep.subr.mxu0 0.0
        %1684 = vmatpush1.msra.mxu0 0.0
        %1685 = vmatprep.subr.mxu0 0.0
        %1686 = vmatpush1.msra.mxu0 0.0
        %1687 = vmatprep.subr.mxu0 0.0
        %1688 = vmatpush1.msra.mxu0 0.0
        %1689 = vmatprep.subr.mxu0 0.0
        %1690 = vmatpush1.msra.mxu0 0.0
        %1691 = vmatprep.subr.mxu0 0.0
        %1692 = vmatpush1.msra.mxu0 0.0
        %1693 = vmatprep.subr.mxu0 0.0
        %1694 = vmatpush1.msra.mxu0 0.0
        %1695 = vmatprep.subr.mxu0 0.0
        %1696 = vmatpush1.msra.mxu0 0.0
        %1697 = vmatprep.subr.mxu0 0.0
        %1698 = vmatpush1.msra.mxu0 0.0
        %1699 = vmatprep.subr.mxu0 0.0
        %1700 = vmatpush1.msra.mxu0 0.0
        %1701 = vmatprep.subr.mxu0 0.0
        %1702 = vmatpush1.msra.mxu0 0.0
        %1703 = vmatprep.subr.mxu0 0.0
        %1704 = vmatpush1.msra.mxu0 0.0
        %1705 = vmatprep.subr.mxu0 0.0
        %1706 = vmatpush1.msra.mxu0 0.0
        %1707 = vmatprep.subr.mxu0 0.0
        %1708 = vmatpush1.msra.mxu0 0.0
        %1709 = vmatprep.mubr.f32.mxu0 0.0
        %v1710 = vand.u32 %v1543, 4294901760
        %1711 = vmatmul.mubr.f32.gmra.mrb[0].mxu0 %v1710
        %v1712 = vpop.f32.mrb[0].mxu0
        %v1713 = vadd.f32 %v1622, %v1712
        %v1714 = vpop.f32.mrb[0].mxu0
        %1715 = vmatprep.mubr.f32.mxu0 0.0
        %v1716 = vand.u32 %v1546, 4294901760
        %1717 = vmatmul.mubr.f32.gmra.mrb[0].mxu0 %v1716
        %v1718 = vpop.f32.mrb[0].mxu0
        %v1719 = vadd.f32 %v1632, %v1718
        %v1720 = vpop.f32.mrb[0].mxu0
        %1721 = vdwg.mxu0
        %1722 = vmatprep.subr.mxu0 0.0
        %v1723 = vand.u32 %v802, 4294901760
        %v1724 = vsub.f32 %v802, %v1723
        %1725 = vmatpush1.msra.mxu0 %v1724
        %1726 = vmatprep.subr.mxu0 0.0
        %v1727 = vand.u32 %v808, 4294901760
        %v1728 = vsub.f32 %v808, %v1727
        %1729 = vmatpush1.msra.mxu0 %v1728
        %1730 = vmatprep.subr.mxu0 0.0
        %1731 = vmatpush1.msra.mxu0 0.0
        %1732 = vmatprep.subr.mxu0 0.0
        %1733 = vmatpush1.msra.mxu0 0.0
        %1734 = vmatprep.subr.mxu0 0.0
        %1735 = vmatpush1.msra.mxu0 0.0
        %1736 = vmatprep.subr.mxu0 0.0
        %1737 = vmatpush1.msra.mxu0 0.0
        %1738 = vmatprep.subr.mxu0 0.0
        %1739 = vmatpush1.msra.mxu0 0.0
        %1740 = vmatprep.subr.mxu0 0.0
        %1741 = vmatpush1.msra.mxu0 0.0
        %1742 = vmatprep.subr.mxu0 0.0
        %1743 = vmatpush1.msra.mxu0 0.0
        %1744 = vmatprep.subr.mxu0 0.0
        %1745 = vmatpush1.msra.mxu0 0.0
        %1746 = vmatprep.subr.mxu0 0.0
        %1747 = vmatpush1.msra.mxu0 0.0
        %1748 = vmatprep.subr.mxu0 0.0
        %1749 = vmatpush1.msra.mxu0 0.0
        %1750 = vmatprep.subr.mxu0 0.0
        %1751 = vmatpush1.msra.mxu0 0.0
        %1752 = vmatprep.subr.mxu0 0.0
        %1753 = vmatpush1.msra.mxu0 0.0
        %1754 = vmatprep.subr.mxu0 0.0
        %1755 = vmatpush1.msra.mxu0 0.0
        %1756 = vmatprep.subr.mxu0 0.0
        %1757 = vmatpush1.msra.mxu0 0.0
        %1758 = vmatprep.subr.mxu0 0.0
        %1759 = vmatpush1.msra.mxu0 0.0
        %1760 = vmatprep.subr.mxu0 0.0
        %1761 = vmatpush1.msra.mxu0 0.0
        %1762 = vmatprep.subr.mxu0 0.0
        %1763 = vmatpush1.msra.mxu0 0.0
        %1764 = vmatprep.subr.mxu0 0.0
        %1765 = vmatpush1.msra.mxu0 0.0
        %1766 = vmatprep.subr.mxu0 0.0
        %1767 = vmatpush1.msra.mxu0 0.0
        %1768 = vmatprep.subr.mxu0 0.0
        %1769 = vmatpush1.msra.mxu0 0.0
        %1770 = vmatprep.subr.mxu0 0.0
        %1771 = vmatpush1.msra.mxu0 0.0
        %1772 = vmatprep.subr.mxu0 0.0
        %1773 = vmatpush1.msra.mxu0 0.0
        %1774 = vmatprep.subr.mxu0 0.0
        %1775 = vmatpush1.msra.mxu0 0.0
        %1776 = vmatprep.subr.mxu0 0.0
        %1777 = vmatpush1.msra.mxu0 0.0
        %1778 = vmatprep.subr.mxu0 0.0
        %1779 = vmatpush1.msra.mxu0 0.0
        %1780 = vmatprep.subr.mxu0 0.0
        %1781 = vmatpush1.msra.mxu0 0.0
        %1782 = vmatprep.subr.mxu0 0.0
        %1783 = vmatpush1.msra.mxu0 0.0
        %1784 = vmatprep.subr.mxu0 0.0
        %1785 = vmatpush1.msra.mxu0 0.0
        %1786 = vmatprep.subr.mxu0 0.0
        %1787 = vmatpush1.msra.mxu0 0.0
        %1788 = vmatprep.subr.mxu0 0.0
        %1789 = vmatpush1.msra.mxu0 0.0
        %1790 = vmatprep.mubr.f32.mxu0 0.0
        %v1791 = vand.u32 %v1543, 4294901760
        %v1792 = vsub.f32 %v1543, %v1791
        %1793 = vmatmul.mubr.f32.gmra.mrb[0].mxu0 %v1792
        %v1794 = vpop.f32.mrb[0].mxu0
        %v1795 = vadd.f32 %v1713, %v1794
        %v1796 = vpop.f32.mrb[0].mxu0
        %1797 = vmatprep.mubr.f32.mxu0 0.0
        %v1798 = vand.u32 %v1546, 4294901760
        %v1799 = vsub.f32 %v1546, %v1798
        %1800 = vmatmul.mubr.f32.gmra.mrb[0].mxu0 %v1799
        %v1801 = vpop.f32.mrb[0].mxu0
        %v1802 = vadd.f32 %v1719, %v1801
        %v1803 = vpop.f32.mrb[0].mxu0
        %1804 = vdwg.mxu0
        %1805 = vmatprep.subr.mxu0 0.0
        %v1806 = vand.u32 %v802, 4294901760
        %1807 = vmatpush1.msra.mxu0 %v1806
        %1808 = vmatprep.subr.mxu0 0.0
        %v1809 = vand.u32 %v808, 4294901760
        %1810 = vmatpush1.msra.mxu0 %v1809
        %1811 = vmatprep.subr.mxu0 0.0
        %1812 = vmatpush1.msra.mxu0 0.0
        %1813 = vmatprep.subr.mxu0 0.0
        %1814 = vmatpush1.msra.mxu0 0.0
        %1815 = vmatprep.subr.mxu0 0.0
        %1816 = vmatpush1.msra.mxu0 0.0
        %1817 = vmatprep.subr.mxu0 0.0
        %1818 = vmatpush1.msra.mxu0 0.0
        %1819 = vmatprep.subr.mxu0 0.0
        %1820 = vmatpush1.msra.mxu0 0.0
        %1821 = vmatprep.subr.mxu0 0.0
        %1822 = vmatpush1.msra.mxu0 0.0
        %1823 = vmatprep.subr.mxu0 0.0
        %1824 = vmatpush1.msra.mxu0 0.0
        %1825 = vmatprep.subr.mxu0 0.0
        %1826 = vmatpush1.msra.mxu0 0.0
        %1827 = vmatprep.subr.mxu0 0.0
        %1828 = vmatpush1.msra.mxu0 0.0
        %1829 = vmatprep.subr.mxu0 0.0
        %1830 = vmatpush1.msra.mxu0 0.0
        %1831 = vmatprep.subr.mxu0 0.0
        %1832 = vmatpush1.msra.mxu0 0.0
        %1833 = vmatprep.subr.mxu0 0.0
        %1834 = vmatpush1.msra.mxu0 0.0
        %1835 = vmatprep.subr.mxu0 0.0
        %1836 = vmatpush1.msra.mxu0 0.0
        %1837 = vmatprep.subr.mxu0 0.0
        %1838 = vmatpush1.msra.mxu0 0.0
        %1839 = vmatprep.subr.mxu0 0.0
        %1840 = vmatpush1.msra.mxu0 0.0
        %1841 = vmatprep.subr.mxu0 0.0
        %1842 = vmatpush1.msra.mxu0 0.0
        %1843 = vmatprep.subr.mxu0 0.0
        %1844 = vmatpush1.msra.mxu0 0.0
        %1845 = vmatprep.subr.mxu0 0.0
        %1846 = vmatpush1.msra.mxu0 0.0
        %1847 = vmatprep.subr.mxu0 0.0
        %1848 = vmatpush1.msra.mxu0 0.0
        %1849 = vmatprep.subr.mxu0 0.0
        %1850 = vmatpush1.msra.mxu0 0.0
        %1851 = vmatprep.subr.mxu0 0.0
        %1852 = vmatpush1.msra.mxu0 0.0
        %1853 = vmatprep.subr.mxu0 0.0
        %1854 = vmatpush1.msra.mxu0 0.0
        %1855 = vmatprep.subr.mxu0 0.0
        %1856 = vmatpush1.msra.mxu0 0.0
        %1857 = vmatprep.subr.mxu0 0.0
        %1858 = vmatpush1.msra.mxu0 0.0
        %1859 = vmatprep.subr.mxu0 0.0
        %1860 = vmatpush1.msra.mxu0 0.0
        %1861 = vmatprep.subr.mxu0 0.0
        %1862 = vmatpush1.msra.mxu0 0.0
        %1863 = vmatprep.subr.mxu0 0.0
        %1864 = vmatpush1.msra.mxu0 0.0
        %1865 = vmatprep.subr.mxu0 0.0
        %1866 = vmatpush1.msra.mxu0 0.0
        %1867 = vmatprep.subr.mxu0 0.0
        %1868 = vmatpush1.msra.mxu0 0.0
        %1869 = vmatprep.subr.mxu0 0.0
        %1870 = vmatpush1.msra.mxu0 0.0
        %1871 = vmatprep.mubr.f32.mxu0 0.0
        %v1872 = vand.u32 %v1543, 4294901760
        %v1873 = vsub.f32 %v1543, %v1872
        %v1874 = vand.u32 %v1873, 4294901760
        %1875 = vmatmul.mubr.f32.gmra.mrb[0].mxu0 %v1874
        %v1876 = vpop.f32.mrb[0].mxu0
        %v1877 = vadd.f32 %v1795, %v1876
        %v1878 = vpop.f32.mrb[0].mxu0
        %1879 = vmatprep.mubr.f32.mxu0 0.0
        %v1880 = vand.u32 %v1546, 4294901760
        %v1881 = vsub.f32 %v1546, %v1880
        %v1882 = vand.u32 %v1881, 4294901760
        %1883 = vmatmul.mubr.f32.gmra.mrb[0].mxu0 %v1882
        %v1884 = vpop.f32.mrb[0].mxu0
        %v1885 = vadd.f32 %v1802, %v1884
        %v1886 = vpop.f32.mrb[0].mxu0
        %1887 = vdwg.mxu0
        %1888 = vmatprep.subr.mxu0 0.0
        %v1889 = vand.u32 %v802, 4294901760
        %v1890 = vsub.f32 %v802, %v1889
        %v1891 = vand.u32 %v1890, 4294901760
        %1892 = vmatpush1.msra.mxu0 %v1891
        %1893 = vmatprep.subr.mxu0 0.0
        %v1894 = vand.u32 %v808, 4294901760
        %v1895 = vsub.f32 %v808, %v1894
        %v1896 = vand.u32 %v1895, 4294901760
        %1897 = vmatpush1.msra.mxu0 %v1896
        %1898 = vmatprep.subr.mxu0 0.0
        %1899 = vmatpush1.msra.mxu0 0.0
        %1900 = vmatprep.subr.mxu0 0.0
        %1901 = vmatpush1.msra.mxu0 0.0
        %1902 = vmatprep.subr.mxu0 0.0
        %1903 = vmatpush1.msra.mxu0 0.0
        %1904 = vmatprep.subr.mxu0 0.0
        %1905 = vmatpush1.msra.mxu0 0.0
        %1906 = vmatprep.subr.mxu0 0.0
        %1907 = vmatpush1.msra.mxu0 0.0
        %1908 = vmatprep.subr.mxu0 0.0
        %1909 = vmatpush1.msra.mxu0 0.0
        %1910 = vmatprep.subr.mxu0 0.0
        %1911 = vmatpush1.msra.mxu0 0.0
        %1912 = vmatprep.subr.mxu0 0.0
        %1913 = vmatpush1.msra.mxu0 0.0
        %1914 = vmatprep.subr.mxu0 0.0
        %1915 = vmatpush1.msra.mxu0 0.0
        %1916 = vmatprep.subr.mxu0 0.0
        %1917 = vmatpush1.msra.mxu0 0.0
        %1918 = vmatprep.subr.mxu0 0.0
        %1919 = vmatpush1.msra.mxu0 0.0
        %1920 = vmatprep.subr.mxu0 0.0
        %1921 = vmatpush1.msra.mxu0 0.0
        %1922 = vmatprep.subr.mxu0 0.0
        %1923 = vmatpush1.msra.mxu0 0.0
        %1924 = vmatprep.subr.mxu0 0.0
        %1925 = vmatpush1.msra.mxu0 0.0
        %1926 = vmatprep.subr.mxu0 0.0
        %1927 = vmatpush1.msra.mxu0 0.0
        %1928 = vmatprep.subr.mxu0 0.0
        %1929 = vmatpush1.msra.mxu0 0.0
        %1930 = vmatprep.subr.mxu0 0.0
        %1931 = vmatpush1.msra.mxu0 0.0
        %1932 = vmatprep.subr.mxu0 0.0
        %1933 = vmatpush1.msra.mxu0 0.0
        %1934 = vmatprep.subr.mxu0 0.0
        %1935 = vmatpush1.msra.mxu0 0.0
        %1936 = vmatprep.subr.mxu0 0.0
        %1937 = vmatpush1.msra.mxu0 0.0
        %1938 = vmatprep.subr.mxu0 0.0
        %1939 = vmatpush1.msra.mxu0 0.0
        %1940 = vmatprep.subr.mxu0 0.0
        %1941 = vmatpush1.msra.mxu0 0.0
        %1942 = vmatprep.subr.mxu0 0.0
        %1943 = vmatpush1.msra.mxu0 0.0
        %1944 = vmatprep.subr.mxu0 0.0
        %1945 = vmatpush1.msra.mxu0 0.0
        %1946 = vmatprep.subr.mxu0 0.0
        %1947 = vmatpush1.msra.mxu0 0.0
        %1948 = vmatprep.subr.mxu0 0.0
        %1949 = vmatpush1.msra.mxu0 0.0
        %1950 = vmatprep.subr.mxu0 0.0
        %1951 = vmatpush1.msra.mxu0 0.0
        %1952 = vmatprep.subr.mxu0 0.0
        %1953 = vmatpush1.msra.mxu0 0.0
        %1954 = vmatprep.subr.mxu0 0.0
        %1955 = vmatpush1.msra.mxu0 0.0
        %1956 = vmatprep.subr.mxu0 0.0
        %1957 = vmatpush1.msra.mxu0 0.0
        %1958 = vmatprep.mubr.f32.mxu0 0.0
        %v1959 = vand.u32 %v1543, 4294901760
        %1960 = vmatmul.mubr.f32.gmra.mrb[0].mxu0 %v1959
        %v1961 = vpop.f32.mrb[0].mxu0
        %v1962 = vadd.f32 %v1877, %v1961
        %v1963 = vpop.f32.mrb[0].mxu0
        %1964 = vmatprep.mubr.f32.mxu0 0.0
        %v1965 = vand.u32 %v1546, 4294901760
        %1966 = vmatmul.mubr.f32.gmra.mrb[0].mxu0 %v1965
        %v1967 = vpop.f32.mrb[0].mxu0
        %v1968 = vadd.f32 %v1885, %v1967
        %v1969 = vpop.f32.mrb[0].mxu0
        %1970 = vdwg.mxu0
        %1971 = vmatprep.subr.mxu0 0.0
        %v1972 = vand.u32 %v802, 4294901760
        %1973 = vmatpush1.msra.mxu0 %v1972
        %1974 = vmatprep.subr.mxu0 0.0
        %v1975 = vand.u32 %v808, 4294901760
        %1976 = vmatpush1.msra.mxu0 %v1975
        %1977 = vmatprep.subr.mxu0 0.0
        %1978 = vmatpush1.msra.mxu0 0.0
        %1979 = vmatprep.subr.mxu0 0.0
        %1980 = vmatpush1.msra.mxu0 0.0
        %1981 = vmatprep.subr.mxu0 0.0
        %1982 = vmatpush1.msra.mxu0 0.0
        %1983 = vmatprep.subr.mxu0 0.0
        %1984 = vmatpush1.msra.mxu0 0.0
        %1985 = vmatprep.subr.mxu0 0.0
        %1986 = vmatpush1.msra.mxu0 0.0
        %1987 = vmatprep.subr.mxu0 0.0
        %1988 = vmatpush1.msra.mxu0 0.0
        %1989 = vmatprep.subr.mxu0 0.0
        %1990 = vmatpush1.msra.mxu0 0.0
        %1991 = vmatprep.subr.mxu0 0.0
        %1992 = vmatpush1.msra.mxu0 0.0
        %1993 = vmatprep.subr.mxu0 0.0
        %1994 = vmatpush1.msra.mxu0 0.0
        %1995 = vmatprep.subr.mxu0 0.0
        %1996 = vmatpush1.msra.mxu0 0.0
        %1997 = vmatprep.subr.mxu0 0.0
        %1998 = vmatpush1.msra.mxu0 0.0
        %1999 = vmatprep.subr.mxu0 0.0
        %2000 = vmatpush1.msra.mxu0 0.0
        %2001 = vmatprep.subr.mxu0 0.0
        %2002 = vmatpush1.msra.mxu0 0.0
        %2003 = vmatprep.subr.mxu0 0.0
        %2004 = vmatpush1.msra.mxu0 0.0
        %2005 = vmatprep.subr.mxu0 0.0
        %2006 = vmatpush1.msra.mxu0 0.0
        %2007 = vmatprep.subr.mxu0 0.0
        %2008 = vmatpush1.msra.mxu0 0.0
        %2009 = vmatprep.subr.mxu0 0.0
        %2010 = vmatpush1.msra.mxu0 0.0
        %2011 = vmatprep.subr.mxu0 0.0
        %2012 = vmatpush1.msra.mxu0 0.0
        %2013 = vmatprep.subr.mxu0 0.0
        %2014 = vmatpush1.msra.mxu0 0.0
        %2015 = vmatprep.subr.mxu0 0.0
        %2016 = vmatpush1.msra.mxu0 0.0
        %2017 = vmatprep.subr.mxu0 0.0
        %2018 = vmatpush1.msra.mxu0 0.0
        %2019 = vmatprep.subr.mxu0 0.0
        %2020 = vmatpush1.msra.mxu0 0.0
        %2021 = vmatprep.subr.mxu0 0.0
        %2022 = vmatpush1.msra.mxu0 0.0
        %2023 = vmatprep.subr.mxu0 0.0
        %2024 = vmatpush1.msra.mxu0 0.0
        %2025 = vmatprep.subr.mxu0 0.0
        %2026 = vmatpush1.msra.mxu0 0.0
        %2027 = vmatprep.subr.mxu0 0.0
        %2028 = vmatpush1.msra.mxu0 0.0
        %2029 = vmatprep.subr.mxu0 0.0
        %2030 = vmatpush1.msra.mxu0 0.0
        %2031 = vmatprep.subr.mxu0 0.0
        %2032 = vmatpush1.msra.mxu0 0.0
        %2033 = vmatprep.subr.mxu0 0.0
        %2034 = vmatpush1.msra.mxu0 0.0
        %2035 = vmatprep.subr.mxu0 0.0
        %2036 = vmatpush1.msra.mxu0 0.0
        %2037 = vmatprep.mubr.f32.mxu0 0.0
        %v2038 = vand.u32 %v1543, 4294901760
        %2039 = vmatmul.mubr.f32.gmra.mrb[0].mxu0 %v2038
        %v2040 = vpop.f32.mrb[0].mxu0
        %v2041 = vadd.f32 %v1962, %v2040
        %v2042 = vpop.f32.mrb[0].mxu0
        %2043 = vmatprep.mubr.f32.mxu0 0.0
        %v2044 = vand.u32 %v1546, 4294901760
        %2045 = vmatmul.mubr.f32.gmra.mrb[0].mxu0 %v2044
        %v2046 = vpop.f32.mrb[0].mxu0
        %v2047 = vadd.f32 %v1968, %v2046
        %v2048 = vpop.f32.mrb[0].mxu0
        %2049 = vdwg.mxu0
        %vm2050 = vcmask 64512
        %2051 = vst.msk [vmem:[%s269] sm:$0xff] %vm2050, %v2041
        %2052 = vst.msk [vmem:[%s269 + $0x8] sm:$0xff] %vm2050, %v2047
        %2055 = vrot.lane.b32.xlu0 %v802, 120
        %v2056 = vpop.permute.xlu0 %2055
        %2057 = vrot.lane.b32.xlu0 %v808, 120
        %v2058 = vpop.permute.xlu0 %2057
        %v2062 = vsel %vm1405, %v1536, 0
        %v2065 = vsel %vm1405, %v1537, 0
        %2067 = vmatprep.subr.mxu0 0.0
        %v2068 = vand.u32 %v2056, 4294901760
        %2069 = vmatpush1.msra.mxu0 %v2068
        %2070 = vmatprep.subr.mxu0 0.0
        %v2071 = vand.u32 %v2058, 4294901760
        %2072 = vmatpush1.msra.mxu0 %v2071
        %2073 = vmatprep.subr.mxu0 0.0
        %2074 = vmatpush1.msra.mxu0 0.0
        %2075 = vmatprep.subr.mxu0 0.0
        %2076 = vmatpush1.msra.mxu0 0.0
        %2077 = vmatprep.subr.mxu0 0.0
        %2078 = vmatpush1.msra.mxu0 0.0
        %2079 = vmatprep.subr.mxu0 0.0
        %2080 = vmatpush1.msra.mxu0 0.0
        %2081 = vmatprep.subr.mxu0 0.0
        %2082 = vmatpush1.msra.mxu0 0.0
        %2083 = vmatprep.subr.mxu0 0.0
        %2084 = vmatpush1.msra.mxu0 0.0
        %2085 = vmatprep.subr.mxu0 0.0
        %2086 = vmatpush1.msra.mxu0 0.0
        %2087 = vmatprep.subr.mxu0 0.0
        %2088 = vmatpush1.msra.mxu0 0.0
        %2089 = vmatprep.subr.mxu0 0.0
        %2090 = vmatpush1.msra.mxu0 0.0
        %2091 = vmatprep.subr.mxu0 0.0
        %2092 = vmatpush1.msra.mxu0 0.0
        %2093 = vmatprep.subr.mxu0 0.0
        %2094 = vmatpush1.msra.mxu0 0.0
        %2095 = vmatprep.subr.mxu0 0.0
        %2096 = vmatpush1.msra.mxu0 0.0
        %2097 = vmatprep.subr.mxu0 0.0
        %2098 = vmatpush1.msra.mxu0 0.0
        %2099 = vmatprep.subr.mxu0 0.0
        %2100 = vmatpush1.msra.mxu0 0.0
        %2101 = vmatprep.subr.mxu0 0.0
        %2102 = vmatpush1.msra.mxu0 0.0
        %2103 = vmatprep.subr.mxu0 0.0
        %2104 = vmatpush1.msra.mxu0 0.0
        %2105 = vmatprep.subr.mxu0 0.0
        %2106 = vmatpush1.msra.mxu0 0.0
        %2107 = vmatprep.subr.mxu0 0.0
        %2108 = vmatpush1.msra.mxu0 0.0
        %2109 = vmatprep.subr.mxu0 0.0
        %2110 = vmatpush1.msra.mxu0 0.0
        %2111 = vmatprep.subr.mxu0 0.0
        %2112 = vmatpush1.msra.mxu0 0.0
        %2113 = vmatprep.subr.mxu0 0.0
        %2114 = vmatpush1.msra.mxu0 0.0
        %2115 = vmatprep.subr.mxu0 0.0
        %2116 = vmatpush1.msra.mxu0 0.0
        %2117 = vmatprep.subr.mxu0 0.0
        %2118 = vmatpush1.msra.mxu0 0.0
        %2119 = vmatprep.subr.mxu0 0.0
        %2120 = vmatpush1.msra.mxu0 0.0
        %2121 = vmatprep.subr.mxu0 0.0
        %2122 = vmatpush1.msra.mxu0 0.0
        %2123 = vmatprep.subr.mxu0 0.0
        %2124 = vmatpush1.msra.mxu0 0.0
        %2125 = vmatprep.subr.mxu0 0.0
        %2126 = vmatpush1.msra.mxu0 0.0
        %2127 = vmatprep.subr.mxu0 0.0
        %2128 = vmatpush1.msra.mxu0 0.0
        %2129 = vmatprep.subr.mxu0 0.0
        %2130 = vmatpush1.msra.mxu0 0.0
        %2131 = vmatprep.subr.mxu0 0.0
        %2132 = vmatpush1.msra.mxu0 0.0
        %2133 = vmatprep.mubr.f32.mxu0 0.0
        %v2134 = vand.u32 %v2062, 4294901760
        %v2135 = vsub.f32 %v2062, %v2134
        %v2136 = vand.u32 %v2135, 4294901760
        %v2137 = vsub.f32 %v2135, %v2136
        %v2138 = vand.u32 %v2137, 4294901760
        %2139 = vmatmul.mubr.f32.gmra.mrb[0].mxu0 %v2138
        %v2140 = vpop.f32.mrb[0].mxu0
        %v2141 = vadd.f32 0.0, %v2140
        %v2142 = vpop.f32.mrb[0].mxu0
        %2143 = vmatprep.mubr.f32.mxu0 0.0
        %v2144 = vand.u32 %v2065, 4294901760
        %v2145 = vsub.f32 %v2065, %v2144
        %v2146 = vand.u32 %v2145, 4294901760
        %v2147 = vsub.f32 %v2145, %v2146
        %v2148 = vand.u32 %v2147, 4294901760
        %2149 = vmatmul.mubr.f32.gmra.mrb[0].mxu0 %v2148
        %v2150 = vpop.f32.mrb[0].mxu0
        %v2151 = vadd.f32 0.0, %v2150
        %v2152 = vpop.f32.mrb[0].mxu0
        %2153 = vdwg.mxu0
        %2154 = vmatprep.subr.mxu0 0.0
        %v2155 = vand.u32 %v2056, 4294901760
        %v2156 = vsub.f32 %v2056, %v2155
        %v2157 = vand.u32 %v2156, 4294901760
        %v2158 = vsub.f32 %v2156, %v2157
        %v2159 = vand.u32 %v2158, 4294901760
        %2160 = vmatpush1.msra.mxu0 %v2159
        %2161 = vmatprep.subr.mxu0 0.0
        %v2162 = vand.u32 %v2058, 4294901760
        %v2163 = vsub.f32 %v2058, %v2162
        %v2164 = vand.u32 %v2163, 4294901760
        %v2165 = vsub.f32 %v2163, %v2164
        %v2166 = vand.u32 %v2165, 4294901760
        %2167 = vmatpush1.msra.mxu0 %v2166
        %2168 = vmatprep.subr.mxu0 0.0
        %2169 = vmatpush1.msra.mxu0 0.0
        %2170 = vmatprep.subr.mxu0 0.0
        %2171 = vmatpush1.msra.mxu0 0.0
        %2172 = vmatprep.subr.mxu0 0.0
        %2173 = vmatpush1.msra.mxu0 0.0
        %2174 = vmatprep.subr.mxu0 0.0
        %2175 = vmatpush1.msra.mxu0 0.0
        %2176 = vmatprep.subr.mxu0 0.0
        %2177 = vmatpush1.msra.mxu0 0.0
        %2178 = vmatprep.subr.mxu0 0.0
        %2179 = vmatpush1.msra.mxu0 0.0
        %2180 = vmatprep.subr.mxu0 0.0
        %2181 = vmatpush1.msra.mxu0 0.0
        %2182 = vmatprep.subr.mxu0 0.0
        %2183 = vmatpush1.msra.mxu0 0.0
        %2184 = vmatprep.subr.mxu0 0.0
        %2185 = vmatpush1.msra.mxu0 0.0
        %2186 = vmatprep.subr.mxu0 0.0
        %2187 = vmatpush1.msra.mxu0 0.0
        %2188 = vmatprep.subr.mxu0 0.0
        %2189 = vmatpush1.msra.mxu0 0.0
        %2190 = vmatprep.subr.mxu0 0.0
        %2191 = vmatpush1.msra.mxu0 0.0
        %2192 = vmatprep.subr.mxu0 0.0
        %2193 = vmatpush1.msra.mxu0 0.0
        %2194 = vmatprep.subr.mxu0 0.0
        %2195 = vmatpush1.msra.mxu0 0.0
        %2196 = vmatprep.subr.mxu0 0.0
        %2197 = vmatpush1.msra.mxu0 0.0
        %2198 = vmatprep.subr.mxu0 0.0
        %2199 = vmatpush1.msra.mxu0 0.0
        %2200 = vmatprep.subr.mxu0 0.0
        %2201 = vmatpush1.msra.mxu0 0.0
        %2202 = vmatprep.subr.mxu0 0.0
        %2203 = vmatpush1.msra.mxu0 0.0
        %2204 = vmatprep.subr.mxu0 0.0
        %2205 = vmatpush1.msra.mxu0 0.0
        %2206 = vmatprep.subr.mxu0 0.0
        %2207 = vmatpush1.msra.mxu0 0.0
        %2208 = vmatprep.subr.mxu0 0.0
        %2209 = vmatpush1.msra.mxu0 0.0
        %2210 = vmatprep.subr.mxu0 0.0
        %2211 = vmatpush1.msra.mxu0 0.0
        %2212 = vmatprep.subr.mxu0 0.0
        %2213 = vmatpush1.msra.mxu0 0.0
        %2214 = vmatprep.subr.mxu0 0.0
        %2215 = vmatpush1.msra.mxu0 0.0
        %2216 = vmatprep.subr.mxu0 0.0
        %2217 = vmatpush1.msra.mxu0 0.0
        %2218 = vmatprep.subr.mxu0 0.0
        %2219 = vmatpush1.msra.mxu0 0.0
        %2220 = vmatprep.subr.mxu0 0.0
        %2221 = vmatpush1.msra.mxu0 0.0
        %2222 = vmatprep.subr.mxu0 0.0
        %2223 = vmatpush1.msra.mxu0 0.0
        %2224 = vmatprep.subr.mxu0 0.0
        %2225 = vmatpush1.msra.mxu0 0.0
        %2226 = vmatprep.subr.mxu0 0.0
        %2227 = vmatpush1.msra.mxu0 0.0
        %2228 = vmatprep.mubr.f32.mxu0 0.0
        %v2229 = vand.u32 %v2062, 4294901760
        %2230 = vmatmul.mubr.f32.gmra.mrb[0].mxu0 %v2229
        %v2231 = vpop.f32.mrb[0].mxu0
        %v2232 = vadd.f32 %v2141, %v2231
        %v2233 = vpop.f32.mrb[0].mxu0
        %2234 = vmatprep.mubr.f32.mxu0 0.0
        %v2235 = vand.u32 %v2065, 4294901760
        %2236 = vmatmul.mubr.f32.gmra.mrb[0].mxu0 %v2235
        %v2237 = vpop.f32.mrb[0].mxu0
        %v2238 = vadd.f32 %v2151, %v2237
        %v2239 = vpop.f32.mrb[0].mxu0
        %2240 = vdwg.mxu0
        %2241 = vmatprep.subr.mxu0 0.0
        %v2242 = vand.u32 %v2056, 4294901760
        %v2243 = vsub.f32 %v2056, %v2242
        %2244 = vmatpush1.msra.mxu0 %v2243
        %2245 = vmatprep.subr.mxu0 0.0
        %v2246 = vand.u32 %v2058, 4294901760
        %v2247 = vsub.f32 %v2058, %v2246
        %2248 = vmatpush1.msra.mxu0 %v2247
        %2249 = vmatprep.subr.mxu0 0.0
        %2250 = vmatpush1.msra.mxu0 0.0
        %2251 = vmatprep.subr.mxu0 0.0
        %2252 = vmatpush1.msra.mxu0 0.0
        %2253 = vmatprep.subr.mxu0 0.0
        %2254 = vmatpush1.msra.mxu0 0.0
        %2255 = vmatprep.subr.mxu0 0.0
        %2256 = vmatpush1.msra.mxu0 0.0
        %2257 = vmatprep.subr.mxu0 0.0
        %2258 = vmatpush1.msra.mxu0 0.0
        %2259 = vmatprep.subr.mxu0 0.0
        %2260 = vmatpush1.msra.mxu0 0.0
        %2261 = vmatprep.subr.mxu0 0.0
        %2262 = vmatpush1.msra.mxu0 0.0
        %2263 = vmatprep.subr.mxu0 0.0
        %2264 = vmatpush1.msra.mxu0 0.0
        %2265 = vmatprep.subr.mxu0 0.0
        %2266 = vmatpush1.msra.mxu0 0.0
        %2267 = vmatprep.subr.mxu0 0.0
        %2268 = vmatpush1.msra.mxu0 0.0
        %2269 = vmatprep.subr.mxu0 0.0
        %2270 = vmatpush1.msra.mxu0 0.0
        %2271 = vmatprep.subr.mxu0 0.0
        %2272 = vmatpush1.msra.mxu0 0.0
        %2273 = vmatprep.subr.mxu0 0.0
        %2274 = vmatpush1.msra.mxu0 0.0
        %2275 = vmatprep.subr.mxu0 0.0
        %2276 = vmatpush1.msra.mxu0 0.0
        %2277 = vmatprep.subr.mxu0 0.0
        %2278 = vmatpush1.msra.mxu0 0.0
        %2279 = vmatprep.subr.mxu0 0.0
        %2280 = vmatpush1.msra.mxu0 0.0
        %2281 = vmatprep.subr.mxu0 0.0
        %2282 = vmatpush1.msra.mxu0 0.0
        %2283 = vmatprep.subr.mxu0 0.0
        %2284 = vmatpush1.msra.mxu0 0.0
        %2285 = vmatprep.subr.mxu0 0.0
        %2286 = vmatpush1.msra.mxu0 0.0
        %2287 = vmatprep.subr.mxu0 0.0
        %2288 = vmatpush1.msra.mxu0 0.0
        %2289 = vmatprep.subr.mxu0 0.0
        %2290 = vmatpush1.msra.mxu0 0.0
        %2291 = vmatprep.subr.mxu0 0.0
        %2292 = vmatpush1.msra.mxu0 0.0
        %2293 = vmatprep.subr.mxu0 0.0
        %2294 = vmatpush1.msra.mxu0 0.0
        %2295 = vmatprep.subr.mxu0 0.0
        %2296 = vmatpush1.msra.mxu0 0.0
        %2297 = vmatprep.subr.mxu0 0.0
        %2298 = vmatpush1.msra.mxu0 0.0
        %2299 = vmatprep.subr.mxu0 0.0
        %2300 = vmatpush1.msra.mxu0 0.0
        %2301 = vmatprep.subr.mxu0 0.0
        %2302 = vmatpush1.msra.mxu0 0.0
        %2303 = vmatprep.subr.mxu0 0.0
        %2304 = vmatpush1.msra.mxu0 0.0
        %2305 = vmatprep.subr.mxu0 0.0
        %2306 = vmatpush1.msra.mxu0 0.0
        %2307 = vmatprep.subr.mxu0 0.0
        %2308 = vmatpush1.msra.mxu0 0.0
        %2309 = vmatprep.mubr.f32.mxu0 0.0
        %v2310 = vand.u32 %v2062, 4294901760
        %v2311 = vsub.f32 %v2062, %v2310
        %2312 = vmatmul.mubr.f32.gmra.mrb[0].mxu0 %v2311
        %v2313 = vpop.f32.mrb[0].mxu0
        %v2314 = vadd.f32 %v2232, %v2313
        %v2315 = vpop.f32.mrb[0].mxu0
        %2316 = vmatprep.mubr.f32.mxu0 0.0
        %v2317 = vand.u32 %v2065, 4294901760
        %v2318 = vsub.f32 %v2065, %v2317
        %2319 = vmatmul.mubr.f32.gmra.mrb[0].mxu0 %v2318
        %v2320 = vpop.f32.mrb[0].mxu0
        %v2321 = vadd.f32 %v2238, %v2320
        %v2322 = vpop.f32.mrb[0].mxu0
        %2323 = vdwg.mxu0
        %2324 = vmatprep.subr.mxu0 0.0
        %v2325 = vand.u32 %v2056, 4294901760
        %2326 = vmatpush1.msra.mxu0 %v2325
        %2327 = vmatprep.subr.mxu0 0.0
        %v2328 = vand.u32 %v2058, 4294901760
        %2329 = vmatpush1.msra.mxu0 %v2328
        %2330 = vmatprep.subr.mxu0 0.0
        %2331 = vmatpush1.msra.mxu0 0.0
        %2332 = vmatprep.subr.mxu0 0.0
        %2333 = vmatpush1.msra.mxu0 0.0
        %2334 = vmatprep.subr.mxu0 0.0
        %2335 = vmatpush1.msra.mxu0 0.0
        %2336 = vmatprep.subr.mxu0 0.0
        %2337 = vmatpush1.msra.mxu0 0.0
        %2338 = vmatprep.subr.mxu0 0.0
        %2339 = vmatpush1.msra.mxu0 0.0
        %2340 = vmatprep.subr.mxu0 0.0
        %2341 = vmatpush1.msra.mxu0 0.0
        %2342 = vmatprep.subr.mxu0 0.0
        %2343 = vmatpush1.msra.mxu0 0.0
        %2344 = vmatprep.subr.mxu0 0.0
        %2345 = vmatpush1.msra.mxu0 0.0
        %2346 = vmatprep.subr.mxu0 0.0
        %2347 = vmatpush1.msra.mxu0 0.0
        %2348 = vmatprep.subr.mxu0 0.0
        %2349 = vmatpush1.msra.mxu0 0.0
        %2350 = vmatprep.subr.mxu0 0.0
        %2351 = vmatpush1.msra.mxu0 0.0
        %2352 = vmatprep.subr.mxu0 0.0
        %2353 = vmatpush1.msra.mxu0 0.0
        %2354 = vmatprep.subr.mxu0 0.0
        %2355 = vmatpush1.msra.mxu0 0.0
        %2356 = vmatprep.subr.mxu0 0.0
        %2357 = vmatpush1.msra.mxu0 0.0
        %2358 = vmatprep.subr.mxu0 0.0
        %2359 = vmatpush1.msra.mxu0 0.0
        %2360 = vmatprep.subr.mxu0 0.0
        %2361 = vmatpush1.msra.mxu0 0.0
        %2362 = vmatprep.subr.mxu0 0.0
        %2363 = vmatpush1.msra.mxu0 0.0
        %2364 = vmatprep.subr.mxu0 0.0
        %2365 = vmatpush1.msra.mxu0 0.0
        %2366 = vmatprep.subr.mxu0 0.0
        %2367 = vmatpush1.msra.mxu0 0.0
        %2368 = vmatprep.subr.mxu0 0.0
        %2369 = vmatpush1.msra.mxu0 0.0
        %2370 = vmatprep.subr.mxu0 0.0
        %2371 = vmatpush1.msra.mxu0 0.0
        %2372 = vmatprep.subr.mxu0 0.0
        %2373 = vmatpush1.msra.mxu0 0.0
        %2374 = vmatprep.subr.mxu0 0.0
        %2375 = vmatpush1.msra.mxu0 0.0
        %2376 = vmatprep.subr.mxu0 0.0
        %2377 = vmatpush1.msra.mxu0 0.0
        %2378 = vmatprep.subr.mxu0 0.0
        %2379 = vmatpush1.msra.mxu0 0.0
        %2380 = vmatprep.subr.mxu0 0.0
        %2381 = vmatpush1.msra.mxu0 0.0
        %2382 = vmatprep.subr.mxu0 0.0
        %2383 = vmatpush1.msra.mxu0 0.0
        %2384 = vmatprep.subr.mxu0 0.0
        %2385 = vmatpush1.msra.mxu0 0.0
        %2386 = vmatprep.subr.mxu0 0.0
        %2387 = vmatpush1.msra.mxu0 0.0
        %2388 = vmatprep.subr.mxu0 0.0
        %2389 = vmatpush1.msra.mxu0 0.0
        %2390 = vmatprep.mubr.f32.mxu0 0.0
        %v2391 = vand.u32 %v2062, 4294901760
        %v2392 = vsub.f32 %v2062, %v2391
        %v2393 = vand.u32 %v2392, 4294901760
        %2394 = vmatmul.mubr.f32.gmra.mrb[0].mxu0 %v2393
        %v2395 = vpop.f32.mrb[0].mxu0
        %v2396 = vadd.f32 %v2314, %v2395
        %v2397 = vpop.f32.mrb[0].mxu0
        %2398 = vmatprep.mubr.f32.mxu0 0.0
        %v2399 = vand.u32 %v2065, 4294901760
        %v2400 = vsub.f32 %v2065, %v2399
        %v2401 = vand.u32 %v2400, 4294901760
        %2402 = vmatmul.mubr.f32.gmra.mrb[0].mxu0 %v2401
        %v2403 = vpop.f32.mrb[0].mxu0
        %v2404 = vadd.f32 %v2321, %v2403
        %v2405 = vpop.f32.mrb[0].mxu0
        %2406 = vdwg.mxu0
        %2407 = vmatprep.subr.mxu0 0.0
        %v2408 = vand.u32 %v2056, 4294901760
        %v2409 = vsub.f32 %v2056, %v2408
        %v2410 = vand.u32 %v2409, 4294901760
        %2411 = vmatpush1.msra.mxu0 %v2410
        %2412 = vmatprep.subr.mxu0 0.0
        %v2413 = vand.u32 %v2058, 4294901760
        %v2414 = vsub.f32 %v2058, %v2413
        %v2415 = vand.u32 %v2414, 4294901760
        %2416 = vmatpush1.msra.mxu0 %v2415
        %2417 = vmatprep.subr.mxu0 0.0
        %2418 = vmatpush1.msra.mxu0 0.0
        %2419 = vmatprep.subr.mxu0 0.0
        %2420 = vmatpush1.msra.mxu0 0.0
        %2421 = vmatprep.subr.mxu0 0.0
        %2422 = vmatpush1.msra.mxu0 0.0
        %2423 = vmatprep.subr.mxu0 0.0
        %2424 = vmatpush1.msra.mxu0 0.0
        %2425 = vmatprep.subr.mxu0 0.0
        %2426 = vmatpush1.msra.mxu0 0.0
        %2427 = vmatprep.subr.mxu0 0.0
        %2428 = vmatpush1.msra.mxu0 0.0
        %2429 = vmatprep.subr.mxu0 0.0
        %2430 = vmatpush1.msra.mxu0 0.0
        %2431 = vmatprep.subr.mxu0 0.0
        %2432 = vmatpush1.msra.mxu0 0.0
        %2433 = vmatprep.subr.mxu0 0.0
        %2434 = vmatpush1.msra.mxu0 0.0
        %2435 = vmatprep.subr.mxu0 0.0
        %2436 = vmatpush1.msra.mxu0 0.0
        %2437 = vmatprep.subr.mxu0 0.0
        %2438 = vmatpush1.msra.mxu0 0.0
        %2439 = vmatprep.subr.mxu0 0.0
        %2440 = vmatpush1.msra.mxu0 0.0
        %2441 = vmatprep.subr.mxu0 0.0
        %2442 = vmatpush1.msra.mxu0 0.0
        %2443 = vmatprep.subr.mxu0 0.0
        %2444 = vmatpush1.msra.mxu0 0.0
        %2445 = vmatprep.subr.mxu0 0.0
        %2446 = vmatpush1.msra.mxu0 0.0
        %2447 = vmatprep.subr.mxu0 0.0
        %2448 = vmatpush1.msra.mxu0 0.0
        %2449 = vmatprep.subr.mxu0 0.0
        %2450 = vmatpush1.msra.mxu0 0.0
        %2451 = vmatprep.subr.mxu0 0.0
        %2452 = vmatpush1.msra.mxu0 0.0
        %2453 = vmatprep.subr.mxu0 0.0
        %2454 = vmatpush1.msra.mxu0 0.0
        %2455 = vmatprep.subr.mxu0 0.0
        %2456 = vmatpush1.msra.mxu0 0.0
        %2457 = vmatprep.subr.mxu0 0.0
        %2458 = vmatpush1.msra.mxu0 0.0
        %2459 = vmatprep.subr.mxu0 0.0
        %2460 = vmatpush1.msra.mxu0 0.0
        %2461 = vmatprep.subr.mxu0 0.0
        %2462 = vmatpush1.msra.mxu0 0.0
        %2463 = vmatprep.subr.mxu0 0.0
        %2464 = vmatpush1.msra.mxu0 0.0
        %2465 = vmatprep.subr.mxu0 0.0
        %2466 = vmatpush1.msra.mxu0 0.0
        %2467 = vmatprep.subr.mxu0 0.0
        %2468 = vmatpush1.msra.mxu0 0.0
        %2469 = vmatprep.subr.mxu0 0.0
        %2470 = vmatpush1.msra.mxu0 0.0
        %2471 = vmatprep.subr.mxu0 0.0
        %2472 = vmatpush1.msra.mxu0 0.0
        %2473 = vmatprep.subr.mxu0 0.0
        %2474 = vmatpush1.msra.mxu0 0.0
        %2475 = vmatprep.subr.mxu0 0.0
        %2476 = vmatpush1.msra.mxu0 0.0
        %2477 = vmatprep.mubr.f32.mxu0 0.0
        %v2478 = vand.u32 %v2062, 4294901760
        %2479 = vmatmul.mubr.f32.gmra.mrb[0].mxu0 %v2478
        %v2480 = vpop.f32.mrb[0].mxu0
        %v2481 = vadd.f32 %v2396, %v2480
        %v2482 = vpop.f32.mrb[0].mxu0
        %2483 = vmatprep.mubr.f32.mxu0 0.0
        %v2484 = vand.u32 %v2065, 4294901760
        %2485 = vmatmul.mubr.f32.gmra.mrb[0].mxu0 %v2484
        %v2486 = vpop.f32.mrb[0].mxu0
        %v2487 = vadd.f32 %v2404, %v2486
        %v2488 = vpop.f32.mrb[0].mxu0
        %2489 = vdwg.mxu0
        %2490 = vmatprep.subr.mxu0 0.0
        %v2491 = vand.u32 %v2056, 4294901760
        %2492 = vmatpush1.msra.mxu0 %v2491
        %2493 = vmatprep.subr.mxu0 0.0
        %v2494 = vand.u32 %v2058, 4294901760
        %2495 = vmatpush1.msra.mxu0 %v2494
        %2496 = vmatprep.subr.mxu0 0.0
        %2497 = vmatpush1.msra.mxu0 0.0
        %2498 = vmatprep.subr.mxu0 0.0
        %2499 = vmatpush1.msra.mxu0 0.0
        %2500 = vmatprep.subr.mxu0 0.0
        %2501 = vmatpush1.msra.mxu0 0.0
        %2502 = vmatprep.subr.mxu0 0.0
        %2503 = vmatpush1.msra.mxu0 0.0
        %2504 = vmatprep.subr.mxu0 0.0
        %2505 = vmatpush1.msra.mxu0 0.0
        %2506 = vmatprep.subr.mxu0 0.0
        %2507 = vmatpush1.msra.mxu0 0.0
        %2508 = vmatprep.subr.mxu0 0.0
        %2509 = vmatpush1.msra.mxu0 0.0
        %2510 = vmatprep.subr.mxu0 0.0
        %2511 = vmatpush1.msra.mxu0 0.0
        %2512 = vmatprep.subr.mxu0 0.0
        %2513 = vmatpush1.msra.mxu0 0.0
        %2514 = vmatprep.subr.mxu0 0.0
        %2515 = vmatpush1.msra.mxu0 0.0
        %2516 = vmatprep.subr.mxu0 0.0
        %2517 = vmatpush1.msra.mxu0 0.0
        %2518 = vmatprep.subr.mxu0 0.0
        %2519 = vmatpush1.msra.mxu0 0.0
        %2520 = vmatprep.subr.mxu0 0.0
        %2521 = vmatpush1.msra.mxu0 0.0
        %2522 = vmatprep.subr.mxu0 0.0
        %2523 = vmatpush1.msra.mxu0 0.0
        %2524 = vmatprep.subr.mxu0 0.0
        %2525 = vmatpush1.msra.mxu0 0.0
        %2526 = vmatprep.subr.mxu0 0.0
        %2527 = vmatpush1.msra.mxu0 0.0
        %2528 = vmatprep.subr.mxu0 0.0
        %2529 = vmatpush1.msra.mxu0 0.0
        %2530 = vmatprep.subr.mxu0 0.0
        %2531 = vmatpush1.msra.mxu0 0.0
        %2532 = vmatprep.subr.mxu0 0.0
        %2533 = vmatpush1.msra.mxu0 0.0
        %2534 = vmatprep.subr.mxu0 0.0
        %2535 = vmatpush1.msra.mxu0 0.0
        %2536 = vmatprep.subr.mxu0 0.0
        %2537 = vmatpush1.msra.mxu0 0.0
        %2538 = vmatprep.subr.mxu0 0.0
        %2539 = vmatpush1.msra.mxu0 0.0
        %2540 = vmatprep.subr.mxu0 0.0
        %2541 = vmatpush1.msra.mxu0 0.0
        %2542 = vmatprep.subr.mxu0 0.0
        %2543 = vmatpush1.msra.mxu0 0.0
        %2544 = vmatprep.subr.mxu0 0.0
        %2545 = vmatpush1.msra.mxu0 0.0
        %2546 = vmatprep.subr.mxu0 0.0
        %2547 = vmatpush1.msra.mxu0 0.0
        %2548 = vmatprep.subr.mxu0 0.0
        %2549 = vmatpush1.msra.mxu0 0.0
        %2550 = vmatprep.subr.mxu0 0.0
        %2551 = vmatpush1.msra.mxu0 0.0
        %2552 = vmatprep.subr.mxu0 0.0
        %2553 = vmatpush1.msra.mxu0 0.0
        %2554 = vmatprep.subr.mxu0 0.0
        %2555 = vmatpush1.msra.mxu0 0.0
        %2556 = vmatprep.mubr.f32.mxu0 0.0
        %v2557 = vand.u32 %v2062, 4294901760
        %2558 = vmatmul.mubr.f32.gmra.mrb[0].mxu0 %v2557
        %v2559 = vpop.f32.mrb[0].mxu0
        %v2560 = vadd.f32 %v2481, %v2559
        %v2561 = vpop.f32.mrb[0].mxu0
        %2562 = vmatprep.mubr.f32.mxu0 0.0
        %v2563 = vand.u32 %v2065, 4294901760
        %2564 = vmatmul.mubr.f32.gmra.mrb[0].mxu0 %v2563
        %v2565 = vpop.f32.mrb[0].mxu0
        %v2566 = vadd.f32 %v2487, %v2565
        %v2567 = vpop.f32.mrb[0].mxu0
        %2568 = vdwg.mxu0
        %2571 = vrot.lane.b32.xlu0 %v2560, 8
        %v2572 = vpop.permute.xlu0 %2571
        %2573 = vrot.lane.b32.xlu0 %v2566, 8
        %v2574 = vpop.permute.xlu0 %2573
        %vm2577 = vcmask 130112
        %2578 = vst.msk [vmem:[%s269] sm:$0xff] %vm2577, %v2572
        %2579 = vst.msk [vmem:[%s269 + $0x8] sm:$0xff] %vm2577, %v2574
        %2580 = vrot.lane.b32.xlu0 %v802, 112
        %v2581 = vpop.permute.xlu0 %2580
        %2582 = vrot.lane.b32.xlu0 %v808, 112
        %v2583 = vpop.permute.xlu0 %2582
        %v2587 = vsel %vm1405, %v1538, 0
        %v2590 = vsel %vm1405, %v1539, 0
        %2592 = vmatprep.subr.mxu0 0.0
        %v2593 = vand.u32 %v2581, 4294901760
        %2594 = vmatpush1.msra.mxu0 %v2593
        %2595 = vmatprep.subr.mxu0 0.0
        %v2596 = vand.u32 %v2583, 4294901760
        %2597 = vmatpush1.msra.mxu0 %v2596
        %2598 = vmatprep.subr.mxu0 0.0
        %2599 = vmatpush1.msra.mxu0 0.0
        %2600 = vmatprep.subr.mxu0 0.0
        %2601 = vmatpush1.msra.mxu0 0.0
        %2602 = vmatprep.subr.mxu0 0.0
        %2603 = vmatpush1.msra.mxu0 0.0
        %2604 = vmatprep.subr.mxu0 0.0
        %2605 = vmatpush1.msra.mxu0 0.0
        %2606 = vmatprep.subr.mxu0 0.0
        %2607 = vmatpush1.msra.mxu0 0.0
        %2608 = vmatprep.subr.mxu0 0.0
        %2609 = vmatpush1.msra.mxu0 0.0
        %2610 = vmatprep.subr.mxu0 0.0
        %2611 = vmatpush1.msra.mxu0 0.0
        %2612 = vmatprep.subr.mxu0 0.0
        %2613 = vmatpush1.msra.mxu0 0.0
        %2614 = vmatprep.subr.mxu0 0.0
        %2615 = vmatpush1.msra.mxu0 0.0
        %2616 = vmatprep.subr.mxu0 0.0
        %2617 = vmatpush1.msra.mxu0 0.0
        %2618 = vmatprep.subr.mxu0 0.0
        %2619 = vmatpush1.msra.mxu0 0.0
        %2620 = vmatprep.subr.mxu0 0.0
        %2621 = vmatpush1.msra.mxu0 0.0
        %2622 = vmatprep.subr.mxu0 0.0
        %2623 = vmatpush1.msra.mxu0 0.0
        %2624 = vmatprep.subr.mxu0 0.0
        %2625 = vmatpush1.msra.mxu0 0.0
        %2626 = vmatprep.subr.mxu0 0.0
        %2627 = vmatpush1.msra.mxu0 0.0
        %2628 = vmatprep.subr.mxu0 0.0
        %2629 = vmatpush1.msra.mxu0 0.0
        %2630 = vmatprep.subr.mxu0 0.0
        %2631 = vmatpush1.msra.mxu0 0.0
        %2632 = vmatprep.subr.mxu0 0.0
        %2633 = vmatpush1.msra.mxu0 0.0
        %2634 = vmatprep.subr.mxu0 0.0
        %2635 = vmatpush1.msra.mxu0 0.0
        %2636 = vmatprep.subr.mxu0 0.0
        %2637 = vmatpush1.msra.mxu0 0.0
        %2638 = vmatprep.subr.mxu0 0.0
        %2639 = vmatpush1.msra.mxu0 0.0
        %2640 = vmatprep.subr.mxu0 0.0
        %2641 = vmatpush1.msra.mxu0 0.0
        %2642 = vmatprep.subr.mxu0 0.0
        %2643 = vmatpush1.msra.mxu0 0.0
        %2644 = vmatprep.subr.mxu0 0.0
        %2645 = vmatpush1.msra.mxu0 0.0
        %2646 = vmatprep.subr.mxu0 0.0
        %2647 = vmatpush1.msra.mxu0 0.0
        %2648 = vmatprep.subr.mxu0 0.0
        %2649 = vmatpush1.msra.mxu0 0.0
        %2650 = vmatprep.subr.mxu0 0.0
        %2651 = vmatpush1.msra.mxu0 0.0
        %2652 = vmatprep.subr.mxu0 0.0
        %2653 = vmatpush1.msra.mxu0 0.0
        %2654 = vmatprep.subr.mxu0 0.0
        %2655 = vmatpush1.msra.mxu0 0.0
        %2656 = vmatprep.subr.mxu0 0.0
        %2657 = vmatpush1.msra.mxu0 0.0
        %2658 = vmatprep.mubr.f32.mxu0 0.0
        %v2659 = vand.u32 %v2587, 4294901760
        %v2660 = vsub.f32 %v2587, %v2659
        %v2661 = vand.u32 %v2660, 4294901760
        %v2662 = vsub.f32 %v2660, %v2661
        %v2663 = vand.u32 %v2662, 4294901760
        %2664 = vmatmul.mubr.f32.gmra.mrb[0].mxu0 %v2663
        %v2665 = vpop.f32.mrb[0].mxu0
        %v2666 = vadd.f32 0.0, %v2665
        %v2667 = vpop.f32.mrb[0].mxu0
        %2668 = vmatprep.mubr.f32.mxu0 0.0
        %v2669 = vand.u32 %v2590, 4294901760
        %v2670 = vsub.f32 %v2590, %v2669
        %v2671 = vand.u32 %v2670, 4294901760
        %v2672 = vsub.f32 %v2670, %v2671
        %v2673 = vand.u32 %v2672, 4294901760
        %2674 = vmatmul.mubr.f32.gmra.mrb[0].mxu0 %v2673
        %v2675 = vpop.f32.mrb[0].mxu0
        %v2676 = vadd.f32 0.0, %v2675
        %v2677 = vpop.f32.mrb[0].mxu0
        %2678 = vdwg.mxu0
        %2679 = vmatprep.subr.mxu0 0.0
        %v2680 = vand.u32 %v2581, 4294901760
        %v2681 = vsub.f32 %v2581, %v2680
        %v2682 = vand.u32 %v2681, 4294901760
        %v2683 = vsub.f32 %v2681, %v2682
        %v2684 = vand.u32 %v2683, 4294901760
        %2685 = vmatpush1.msra.mxu0 %v2684
        %2686 = vmatprep.subr.mxu0 0.0
        %v2687 = vand.u32 %v2583, 4294901760
        %v2688 = vsub.f32 %v2583, %v2687
        %v2689 = vand.u32 %v2688, 4294901760
        %v2690 = vsub.f32 %v2688, %v2689
        %v2691 = vand.u32 %v2690, 4294901760
        %2692 = vmatpush1.msra.mxu0 %v2691
        %2693 = vmatprep.subr.mxu0 0.0
        %2694 = vmatpush1.msra.mxu0 0.0
        %2695 = vmatprep.subr.mxu0 0.0
        %2696 = vmatpush1.msra.mxu0 0.0
        %2697 = vmatprep.subr.mxu0 0.0
        %2698 = vmatpush1.msra.mxu0 0.0
        %2699 = vmatprep.subr.mxu0 0.0
        %2700 = vmatpush1.msra.mxu0 0.0
        %2701 = vmatprep.subr.mxu0 0.0
        %2702 = vmatpush1.msra.mxu0 0.0
        %2703 = vmatprep.subr.mxu0 0.0
        %2704 = vmatpush1.msra.mxu0 0.0
        %2705 = vmatprep.subr.mxu0 0.0
        %2706 = vmatpush1.msra.mxu0 0.0
        %2707 = vmatprep.subr.mxu0 0.0
        %2708 = vmatpush1.msra.mxu0 0.0
        %2709 = vmatprep.subr.mxu0 0.0
        %2710 = vmatpush1.msra.mxu0 0.0
        %2711 = vmatprep.subr.mxu0 0.0
        %2712 = vmatpush1.msra.mxu0 0.0
        %2713 = vmatprep.subr.mxu0 0.0
        %2714 = vmatpush1.msra.mxu0 0.0
        %2715 = vmatprep.subr.mxu0 0.0
        %2716 = vmatpush1.msra.mxu0 0.0
        %2717 = vmatprep.subr.mxu0 0.0
        %2718 = vmatpush1.msra.mxu0 0.0
        %2719 = vmatprep.subr.mxu0 0.0
        %2720 = vmatpush1.msra.mxu0 0.0
        %2721 = vmatprep.subr.mxu0 0.0
        %2722 = vmatpush1.msra.mxu0 0.0
        %2723 = vmatprep.subr.mxu0 0.0
        %2724 = vmatpush1.msra.mxu0 0.0
        %2725 = vmatprep.subr.mxu0 0.0
        %2726 = vmatpush1.msra.mxu0 0.0
        %2727 = vmatprep.subr.mxu0 0.0
        %2728 = vmatpush1.msra.mxu0 0.0
        %2729 = vmatprep.subr.mxu0 0.0
        %2730 = vmatpush1.msra.mxu0 0.0
        %2731 = vmatprep.subr.mxu0 0.0
        %2732 = vmatpush1.msra.mxu0 0.0
        %2733 = vmatprep.subr.mxu0 0.0
        %2734 = vmatpush1.msra.mxu0 0.0
        %2735 = vmatprep.subr.mxu0 0.0
        %2736 = vmatpush1.msra.mxu0 0.0
        %2737 = vmatprep.subr.mxu0 0.0
        %2738 = vmatpush1.msra.mxu0 0.0
        %2739 = vmatprep.subr.mxu0 0.0
        %2740 = vmatpush1.msra.mxu0 0.0
        %2741 = vmatprep.subr.mxu0 0.0
        %2742 = vmatpush1.msra.mxu0 0.0
        %2743 = vmatprep.subr.mxu0 0.0
        %2744 = vmatpush1.msra.mxu0 0.0
        %2745 = vmatprep.subr.mxu0 0.0
        %2746 = vmatpush1.msra.mxu0 0.0
        %2747 = vmatprep.subr.mxu0 0.0
        %2748 = vmatpush1.msra.mxu0 0.0
        %2749 = vmatprep.subr.mxu0 0.0
        %2750 = vmatpush1.msra.mxu0 0.0
        %2751 = vmatprep.subr.mxu0 0.0
        %2752 = vmatpush1.msra.mxu0 0.0
        %2753 = vmatprep.mubr.f32.mxu0 0.0
        %v2754 = vand.u32 %v2587, 4294901760
        %2755 = vmatmul.mubr.f32.gmra.mrb[0].mxu0 %v2754
        %v2756 = vpop.f32.mrb[0].mxu0
        %v2757 = vadd.f32 %v2666, %v2756
        %v2758 = vpop.f32.mrb[0].mxu0
        %2759 = vmatprep.mubr.f32.mxu0 0.0
        %v2760 = vand.u32 %v2590, 4294901760
        %2761 = vmatmul.mubr.f32.gmra.mrb[0].mxu0 %v2760
        %v2762 = vpop.f32.mrb[0].mxu0
        %v2763 = vadd.f32 %v2676, %v2762
        %v2764 = vpop.f32.mrb[0].mxu0
        %2765 = vdwg.mxu0
        %2766 = vmatprep.subr.mxu0 0.0
        %v2767 = vand.u32 %v2581, 4294901760
        %v2768 = vsub.f32 %v2581, %v2767
        %2769 = vmatpush1.msra.mxu0 %v2768
        %2770 = vmatprep.subr.mxu0 0.0
        %v2771 = vand.u32 %v2583, 4294901760
        %v2772 = vsub.f32 %v2583, %v2771
        %2773 = vmatpush1.msra.mxu0 %v2772
        %2774 = vmatprep.subr.mxu0 0.0
        %2775 = vmatpush1.msra.mxu0 0.0
        %2776 = vmatprep.subr.mxu0 0.0
        %2777 = vmatpush1.msra.mxu0 0.0
        %2778 = vmatprep.subr.mxu0 0.0
        %2779 = vmatpush1.msra.mxu0 0.0
        %2780 = vmatprep.subr.mxu0 0.0
        %2781 = vmatpush1.msra.mxu0 0.0
        %2782 = vmatprep.subr.mxu0 0.0
        %2783 = vmatpush1.msra.mxu0 0.0
        %2784 = vmatprep.subr.mxu0 0.0
        %2785 = vmatpush1.msra.mxu0 0.0
        %2786 = vmatprep.subr.mxu0 0.0
        %2787 = vmatpush1.msra.mxu0 0.0
        %2788 = vmatprep.subr.mxu0 0.0
        %2789 = vmatpush1.msra.mxu0 0.0
        %2790 = vmatprep.subr.mxu0 0.0
        %2791 = vmatpush1.msra.mxu0 0.0
        %2792 = vmatprep.subr.mxu0 0.0
        %2793 = vmatpush1.msra.mxu0 0.0
        %2794 = vmatprep.subr.mxu0 0.0
        %2795 = vmatpush1.msra.mxu0 0.0
        %2796 = vmatprep.subr.mxu0 0.0
        %2797 = vmatpush1.msra.mxu0 0.0
        %2798 = vmatprep.subr.mxu0 0.0
        %2799 = vmatpush1.msra.mxu0 0.0
        %2800 = vmatprep.subr.mxu0 0.0
        %2801 = vmatpush1.msra.mxu0 0.0
        %2802 = vmatprep.subr.mxu0 0.0
        %2803 = vmatpush1.msra.mxu0 0.0
        %2804 = vmatprep.subr.mxu0 0.0
        %2805 = vmatpush1.msra.mxu0 0.0
        %2806 = vmatprep.subr.mxu0 0.0
        %2807 = vmatpush1.msra.mxu0 0.0
        %2808 = vmatprep.subr.mxu0 0.0
        %2809 = vmatpush1.msra.mxu0 0.0
        %2810 = vmatprep.subr.mxu0 0.0
        %2811 = vmatpush1.msra.mxu0 0.0
        %2812 = vmatprep.subr.mxu0 0.0
        %2813 = vmatpush1.msra.mxu0 0.0
        %2814 = vmatprep.subr.mxu0 0.0
        %2815 = vmatpush1.msra.mxu0 0.0
        %2816 = vmatprep.subr.mxu0 0.0
        %2817 = vmatpush1.msra.mxu0 0.0
        %2818 = vmatprep.subr.mxu0 0.0
        %2819 = vmatpush1.msra.mxu0 0.0
        %2820 = vmatprep.subr.mxu0 0.0
        %2821 = vmatpush1.msra.mxu0 0.0
        %2822 = vmatprep.subr.mxu0 0.0
        %2823 = vmatpush1.msra.mxu0 0.0
        %2824 = vmatprep.subr.mxu0 0.0
        %2825 = vmatpush1.msra.mxu0 0.0
        %2826 = vmatprep.subr.mxu0 0.0
        %2827 = vmatpush1.msra.mxu0 0.0
        %2828 = vmatprep.subr.mxu0 0.0
        %2829 = vmatpush1.msra.mxu0 0.0
        %2830 = vmatprep.subr.mxu0 0.0
        %2831 = vmatpush1.msra.mxu0 0.0
        %2832 = vmatprep.subr.mxu0 0.0
        %2833 = vmatpush1.msra.mxu0 0.0
        %2834 = vmatprep.mubr.f32.mxu0 0.0
        %v2835 = vand.u32 %v2587, 4294901760
        %v2836 = vsub.f32 %v2587, %v2835
        %2837 = vmatmul.mubr.f32.gmra.mrb[0].mxu0 %v2836
        %v2838 = vpop.f32.mrb[0].mxu0
        %v2839 = vadd.f32 %v2757, %v2838
        %v2840 = vpop.f32.mrb[0].mxu0
        %2841 = vmatprep.mubr.f32.mxu0 0.0
        %v2842 = vand.u32 %v2590, 4294901760
        %v2843 = vsub.f32 %v2590, %v2842
        %2844 = vmatmul.mubr.f32.gmra.mrb[0].mxu0 %v2843
        %v2845 = vpop.f32.mrb[0].mxu0
        %v2846 = vadd.f32 %v2763, %v2845
        %v2847 = vpop.f32.mrb[0].mxu0
        %2848 = vdwg.mxu0
        %2849 = vmatprep.subr.mxu0 0.0
        %v2850 = vand.u32 %v2581, 4294901760
        %2851 = vmatpush1.msra.mxu0 %v2850
        %2852 = vmatprep.subr.mxu0 0.0
        %v2853 = vand.u32 %v2583, 4294901760
        %2854 = vmatpush1.msra.mxu0 %v2853
        %2855 = vmatprep.subr.mxu0 0.0
        %2856 = vmatpush1.msra.mxu0 0.0
        %2857 = vmatprep.subr.mxu0 0.0
        %2858 = vmatpush1.msra.mxu0 0.0
        %2859 = vmatprep.subr.mxu0 0.0
        %2860 = vmatpush1.msra.mxu0 0.0
        %2861 = vmatprep.subr.mxu0 0.0
        %2862 = vmatpush1.msra.mxu0 0.0
        %2863 = vmatprep.subr.mxu0 0.0
        %2864 = vmatpush1.msra.mxu0 0.0
        %2865 = vmatprep.subr.mxu0 0.0
        %2866 = vmatpush1.msra.mxu0 0.0
        %2867 = vmatprep.subr.mxu0 0.0
        %2868 = vmatpush1.msra.mxu0 0.0
        %2869 = vmatprep.subr.mxu0 0.0
        %2870 = vmatpush1.msra.mxu0 0.0
        %2871 = vmatprep.subr.mxu0 0.0
        %2872 = vmatpush1.msra.mxu0 0.0
        %2873 = vmatprep.subr.mxu0 0.0
        %2874 = vmatpush1.msra.mxu0 0.0
        %2875 = vmatprep.subr.mxu0 0.0
        %2876 = vmatpush1.msra.mxu0 0.0
        %2877 = vmatprep.subr.mxu0 0.0
        %2878 = vmatpush1.msra.mxu0 0.0
        %2879 = vmatprep.subr.mxu0 0.0
        %2880 = vmatpush1.msra.mxu0 0.0
        %2881 = vmatprep.subr.mxu0 0.0
        %2882 = vmatpush1.msra.mxu0 0.0
        %2883 = vmatprep.subr.mxu0 0.0
        %2884 = vmatpush1.msra.mxu0 0.0
        %2885 = vmatprep.subr.mxu0 0.0
        %2886 = vmatpush1.msra.mxu0 0.0
        %2887 = vmatprep.subr.mxu0 0.0
        %2888 = vmatpush1.msra.mxu0 0.0
        %2889 = vmatprep.subr.mxu0 0.0
        %2890 = vmatpush1.msra.mxu0 0.0
        %2891 = vmatprep.subr.mxu0 0.0
        %2892 = vmatpush1.msra.mxu0 0.0
        %2893 = vmatprep.subr.mxu0 0.0
        %2894 = vmatpush1.msra.mxu0 0.0
        %2895 = vmatprep.subr.mxu0 0.0
        %2896 = vmatpush1.msra.mxu0 0.0
        %2897 = vmatprep.subr.mxu0 0.0
        %2898 = vmatpush1.msra.mxu0 0.0
        %2899 = vmatprep.subr.mxu0 0.0
        %2900 = vmatpush1.msra.mxu0 0.0
        %2901 = vmatprep.subr.mxu0 0.0
        %2902 = vmatpush1.msra.mxu0 0.0
        %2903 = vmatprep.subr.mxu0 0.0
        %2904 = vmatpush1.msra.mxu0 0.0
        %2905 = vmatprep.subr.mxu0 0.0
        %2906 = vmatpush1.msra.mxu0 0.0
        %2907 = vmatprep.subr.mxu0 0.0
        %2908 = vmatpush1.msra.mxu0 0.0
        %2909 = vmatprep.subr.mxu0 0.0
        %2910 = vmatpush1.msra.mxu0 0.0
        %2911 = vmatprep.subr.mxu0 0.0
        %2912 = vmatpush1.msra.mxu0 0.0
        %2913 = vmatprep.subr.mxu0 0.0
        %2914 = vmatpush1.msra.mxu0 0.0
        %2915 = vmatprep.mubr.f32.mxu0 0.0
        %v2916 = vand.u32 %v2587, 4294901760
        %v2917 = vsub.f32 %v2587, %v2916
        %v2918 = vand.u32 %v2917, 4294901760
        %2919 = vmatmul.mubr.f32.gmra.mrb[0].mxu0 %v2918
        %v2920 = vpop.f32.mrb[0].mxu0
        %v2921 = vadd.f32 %v2839, %v2920
        %v2922 = vpop.f32.mrb[0].mxu0
        %2923 = vmatprep.mubr.f32.mxu0 0.0
        %v2924 = vand.u32 %v2590, 4294901760
        %v2925 = vsub.f32 %v2590, %v2924
        %v2926 = vand.u32 %v2925, 4294901760
        %2927 = vmatmul.mubr.f32.gmra.mrb[0].mxu0 %v2926
        %v2928 = vpop.f32.mrb[0].mxu0
        %v2929 = vadd.f32 %v2846, %v2928
        %v2930 = vpop.f32.mrb[0].mxu0
        %2931 = vdwg.mxu0
        %2932 = vmatprep.subr.mxu0 0.0
        %v2933 = vand.u32 %v2581, 4294901760
        %v2934 = vsub.f32 %v2581, %v2933
        %v2935 = vand.u32 %v2934, 4294901760
        %2936 = vmatpush1.msra.mxu0 %v2935
        %2937 = vmatprep.subr.mxu0 0.0
        %v2938 = vand.u32 %v2583, 4294901760
        %v2939 = vsub.f32 %v2583, %v2938
        %v2940 = vand.u32 %v2939, 4294901760
        %2941 = vmatpush1.msra.mxu0 %v2940
        %2942 = vmatprep.subr.mxu0 0.0
        %2943 = vmatpush1.msra.mxu0 0.0
        %2944 = vmatprep.subr.mxu0 0.0
        %2945 = vmatpush1.msra.mxu0 0.0
        %2946 = vmatprep.subr.mxu0 0.0
        %2947 = vmatpush1.msra.mxu0 0.0
        %2948 = vmatprep.subr.mxu0 0.0
        %2949 = vmatpush1.msra.mxu0 0.0
        %2950 = vmatprep.subr.mxu0 0.0
        %2951 = vmatpush1.msra.mxu0 0.0
        %2952 = vmatprep.subr.mxu0 0.0
        %2953 = vmatpush1.msra.mxu0 0.0
        %2954 = vmatprep.subr.mxu0 0.0
        %2955 = vmatpush1.msra.mxu0 0.0
        %2956 = vmatprep.subr.mxu0 0.0
        %2957 = vmatpush1.msra.mxu0 0.0
        %2958 = vmatprep.subr.mxu0 0.0
        %2959 = vmatpush1.msra.mxu0 0.0
        %2960 = vmatprep.subr.mxu0 0.0
        %2961 = vmatpush1.msra.mxu0 0.0
        %2962 = vmatprep.subr.mxu0 0.0
        %2963 = vmatpush1.msra.mxu0 0.0
        %2964 = vmatprep.subr.mxu0 0.0
        %2965 = vmatpush1.msra.mxu0 0.0
        %2966 = vmatprep.subr.mxu0 0.0
        %2967 = vmatpush1.msra.mxu0 0.0
        %2968 = vmatprep.subr.mxu0 0.0
        %2969 = vmatpush1.msra.mxu0 0.0
        %2970 = vmatprep.subr.mxu0 0.0
        %2971 = vmatpush1.msra.mxu0 0.0
        %2972 = vmatprep.subr.mxu0 0.0
        %2973 = vmatpush1.msra.mxu0 0.0
        %2974 = vmatprep.subr.mxu0 0.0
        %2975 = vmatpush1.msra.mxu0 0.0
        %2976 = vmatprep.subr.mxu0 0.0
        %2977 = vmatpush1.msra.mxu0 0.0
        %2978 = vmatprep.subr.mxu0 0.0
        %2979 = vmatpush1.msra.mxu0 0.0
        %2980 = vmatprep.subr.mxu0 0.0
        %2981 = vmatpush1.msra.mxu0 0.0
        %2982 = vmatprep.subr.mxu0 0.0
        %2983 = vmatpush1.msra.mxu0 0.0
        %2984 = vmatprep.subr.mxu0 0.0
        %2985 = vmatpush1.msra.mxu0 0.0
        %2986 = vmatprep.subr.mxu0 0.0
        %2987 = vmatpush1.msra.mxu0 0.0
        %2988 = vmatprep.subr.mxu0 0.0
        %2989 = vmatpush1.msra.mxu0 0.0
        %2990 = vmatprep.subr.mxu0 0.0
        %2991 = vmatpush1.msra.mxu0 0.0
        %2992 = vmatprep.subr.mxu0 0.0
        %2993 = vmatpush1.msra.mxu0 0.0
        %2994 = vmatprep.subr.mxu0 0.0
        %2995 = vmatpush1.msra.mxu0 0.0
        %2996 = vmatprep.subr.mxu0 0.0
        %2997 = vmatpush1.msra.mxu0 0.0
        %2998 = vmatprep.subr.mxu0 0.0
        %2999 = vmatpush1.msra.mxu0 0.0
        %3000 = vmatprep.subr.mxu0 0.0
        %3001 = vmatpush1.msra.mxu0 0.0
        %3002 = vmatprep.mubr.f32.mxu0 0.0
        %v3003 = vand.u32 %v2587, 4294901760
        %3004 = vmatmul.mubr.f32.gmra.mrb[0].mxu0 %v3003
        %v3005 = vpop.f32.mrb[0].mxu0
        %v3006 = vadd.f32 %v2921, %v3005
        %v3007 = vpop.f32.mrb[0].mxu0
        %3008 = vmatprep.mubr.f32.mxu0 0.0
        %v3009 = vand.u32 %v2590, 4294901760
        %3010 = vmatmul.mubr.f32.gmra.mrb[0].mxu0 %v3009
        %v3011 = vpop.f32.mrb[0].mxu0
        %v3012 = vadd.f32 %v2929, %v3011
        %v3013 = vpop.f32.mrb[0].mxu0
        %3014 = vdwg.mxu0
        %3015 = vmatprep.subr.mxu0 0.0
        %v3016 = vand.u32 %v2581, 4294901760
        %3017 = vmatpush1.msra.mxu0 %v3016
        %3018 = vmatprep.subr.mxu0 0.0
        %v3019 = vand.u32 %v2583, 4294901760
        %3020 = vmatpush1.msra.mxu0 %v3019
        %3021 = vmatprep.subr.mxu0 0.0
        %3022 = vmatpush1.msra.mxu0 0.0
        %3023 = vmatprep.subr.mxu0 0.0
        %3024 = vmatpush1.msra.mxu0 0.0
        %3025 = vmatprep.subr.mxu0 0.0
        %3026 = vmatpush1.msra.mxu0 0.0
        %3027 = vmatprep.subr.mxu0 0.0
        %3028 = vmatpush1.msra.mxu0 0.0
        %3029 = vmatprep.subr.mxu0 0.0
        %3030 = vmatpush1.msra.mxu0 0.0
        %3031 = vmatprep.subr.mxu0 0.0
        %3032 = vmatpush1.msra.mxu0 0.0
        %3033 = vmatprep.subr.mxu0 0.0
        %3034 = vmatpush1.msra.mxu0 0.0
        %3035 = vmatprep.subr.mxu0 0.0
        %3036 = vmatpush1.msra.mxu0 0.0
        %3037 = vmatprep.subr.mxu0 0.0
        %3038 = vmatpush1.msra.mxu0 0.0
        %3039 = vmatprep.subr.mxu0 0.0
        %3040 = vmatpush1.msra.mxu0 0.0
        %3041 = vmatprep.subr.mxu0 0.0
        %3042 = vmatpush1.msra.mxu0 0.0
        %3043 = vmatprep.subr.mxu0 0.0
        %3044 = vmatpush1.msra.mxu0 0.0
        %3045 = vmatprep.subr.mxu0 0.0
        %3046 = vmatpush1.msra.mxu0 0.0
        %3047 = vmatprep.subr.mxu0 0.0
        %3048 = vmatpush1.msra.mxu0 0.0
        %3049 = vmatprep.subr.mxu0 0.0
        %3050 = vmatpush1.msra.mxu0 0.0
        %3051 = vmatprep.subr.mxu0 0.0
        %3052 = vmatpush1.msra.mxu0 0.0
        %3053 = vmatprep.subr.mxu0 0.0
        %3054 = vmatpush1.msra.mxu0 0.0
        %3055 = vmatprep.subr.mxu0 0.0
        %3056 = vmatpush1.msra.mxu0 0.0
        %3057 = vmatprep.subr.mxu0 0.0
        %3058 = vmatpush1.msra.mxu0 0.0
        %3059 = vmatprep.subr.mxu0 0.0
        %3060 = vmatpush1.msra.mxu0 0.0
        %3061 = vmatprep.subr.mxu0 0.0
        %3062 = vmatpush1.msra.mxu0 0.0
        %3063 = vmatprep.subr.mxu0 0.0
        %3064 = vmatpush1.msra.mxu0 0.0
        %3065 = vmatprep.subr.mxu0 0.0
        %3066 = vmatpush1.msra.mxu0 0.0
        %3067 = vmatprep.subr.mxu0 0.0
        %3068 = vmatpush1.msra.mxu0 0.0
        %3069 = vmatprep.subr.mxu0 0.0
        %3070 = vmatpush1.msra.mxu0 0.0
        %3071 = vmatprep.subr.mxu0 0.0
        %3072 = vmatpush1.msra.mxu0 0.0
        %3073 = vmatprep.subr.mxu0 0.0
        %3074 = vmatpush1.msra.mxu0 0.0
        %3075 = vmatprep.subr.mxu0 0.0
        %3076 = vmatpush1.msra.mxu0 0.0
        %3077 = vmatprep.subr.mxu0 0.0
        %3078 = vmatpush1.msra.mxu0 0.0
        %3079 = vmatprep.subr.mxu0 0.0
        %3080 = vmatpush1.msra.mxu0 0.0
        %3081 = vmatprep.mubr.f32.mxu0 0.0
        %v3082 = vand.u32 %v2587, 4294901760
        %3083 = vmatmul.mubr.f32.gmra.mrb[0].mxu0 %v3082
        %v3084 = vpop.f32.mrb[0].mxu0
        %v3085 = vadd.f32 %v3006, %v3084
        %v3086 = vpop.f32.mrb[0].mxu0
        %3087 = vmatprep.mubr.f32.mxu0 0.0
        %v3088 = vand.u32 %v2590, 4294901760
        %3089 = vmatmul.mubr.f32.gmra.mrb[0].mxu0 %v3088
        %v3090 = vpop.f32.mrb[0].mxu0
        %v3091 = vadd.f32 %v3012, %v3090
        %v3092 = vpop.f32.mrb[0].mxu0
        %3093 = vdwg.mxu0
        %3096 = vrot.lane.b32.xlu0 %v3085, 16
        %v3097 = vpop.permute.xlu0 %3096
        %3098 = vrot.lane.b32.xlu0 %v3091, 16
        %v3099 = vpop.permute.xlu0 %3098
        %vm3102 = vcmask 195712
        %3103 = vst.msk [vmem:[%s269] sm:$0xff] %vm3102, %v3097
        %3104 = vst.msk [vmem:[%s269 + $0x8] sm:$0xff] %vm3102, %v3099
        %3105 = vrot.lane.b32.xlu0 %v802, 104
        %v3106 = vpop.permute.xlu0 %3105
        %3107 = vrot.lane.b32.xlu0 %v808, 104
        %v3108 = vpop.permute.xlu0 %3107
        %v3112 = vsel %vm1405, %v1540, 0
        %v3115 = vsel %vm1405, %v1541, 0
        %3117 = vmatprep.subr.mxu0 0.0
        %v3118 = vand.u32 %v3106, 4294901760
        %3119 = vmatpush1.msra.mxu0 %v3118
        %3120 = vmatprep.subr.mxu0 0.0
        %v3121 = vand.u32 %v3108, 4294901760
        %3122 = vmatpush1.msra.mxu0 %v3121
        %3123 = vmatprep.subr.mxu0 0.0
        %3124 = vmatpush1.msra.mxu0 0.0
        %3125 = vmatprep.subr.mxu0 0.0
        %3126 = vmatpush1.msra.mxu0 0.0
        %3127 = vmatprep.subr.mxu0 0.0
        %3128 = vmatpush1.msra.mxu0 0.0
        %3129 = vmatprep.subr.mxu0 0.0
        %3130 = vmatpush1.msra.mxu0 0.0
        %3131 = vmatprep.subr.mxu0 0.0
        %3132 = vmatpush1.msra.mxu0 0.0
        %3133 = vmatprep.subr.mxu0 0.0
        %3134 = vmatpush1.msra.mxu0 0.0
        %3135 = vmatprep.subr.mxu0 0.0
        %3136 = vmatpush1.msra.mxu0 0.0
        %3137 = vmatprep.subr.mxu0 0.0
        %3138 = vmatpush1.msra.mxu0 0.0
        %3139 = vmatprep.subr.mxu0 0.0
        %3140 = vmatpush1.msra.mxu0 0.0
        %3141 = vmatprep.subr.mxu0 0.0
        %3142 = vmatpush1.msra.mxu0 0.0
        %3143 = vmatprep.subr.mxu0 0.0
        %3144 = vmatpush1.msra.mxu0 0.0
        %3145 = vmatprep.subr.mxu0 0.0
        %3146 = vmatpush1.msra.mxu0 0.0
        %3147 = vmatprep.subr.mxu0 0.0
        %3148 = vmatpush1.msra.mxu0 0.0
        %3149 = vmatprep.subr.mxu0 0.0
        %3150 = vmatpush1.msra.mxu0 0.0
        %3151 = vmatprep.subr.mxu0 0.0
        %3152 = vmatpush1.msra.mxu0 0.0
        %3153 = vmatprep.subr.mxu0 0.0
        %3154 = vmatpush1.msra.mxu0 0.0
        %3155 = vmatprep.subr.mxu0 0.0
        %3156 = vmatpush1.msra.mxu0 0.0
        %3157 = vmatprep.subr.mxu0 0.0
        %3158 = vmatpush1.msra.mxu0 0.0
        %3159 = vmatprep.subr.mxu0 0.0
        %3160 = vmatpush1.msra.mxu0 0.0
        %3161 = vmatprep.subr.mxu0 0.0
        %3162 = vmatpush1.msra.mxu0 0.0
        %3163 = vmatprep.subr.mxu0 0.0
        %3164 = vmatpush1.msra.mxu0 0.0
        %3165 = vmatprep.subr.mxu0 0.0
        %3166 = vmatpush1.msra.mxu0 0.0
        %3167 = vmatprep.subr.mxu0 0.0
        %3168 = vmatpush1.msra.mxu0 0.0
        %3169 = vmatprep.subr.mxu0 0.0
        %3170 = vmatpush1.msra.mxu0 0.0
        %3171 = vmatprep.subr.mxu0 0.0
        %3172 = vmatpush1.msra.mxu0 0.0
        %3173 = vmatprep.subr.mxu0 0.0
        %3174 = vmatpush1.msra.mxu0 0.0
        %3175 = vmatprep.subr.mxu0 0.0
        %3176 = vmatpush1.msra.mxu0 0.0
        %3177 = vmatprep.subr.mxu0 0.0
        %3178 = vmatpush1.msra.mxu0 0.0
        %3179 = vmatprep.subr.mxu0 0.0
        %3180 = vmatpush1.msra.mxu0 0.0
        %3181 = vmatprep.subr.mxu0 0.0
        %3182 = vmatpush1.msra.mxu0 0.0
        %3183 = vmatprep.mubr.f32.mxu0 0.0
        %v3184 = vand.u32 %v3112, 4294901760
        %v3185 = vsub.f32 %v3112, %v3184
        %v3186 = vand.u32 %v3185, 4294901760
        %v3187 = vsub.f32 %v3185, %v3186
        %v3188 = vand.u32 %v3187, 4294901760
        %3189 = vmatmul.mubr.f32.gmra.mrb[0].mxu0 %v3188
        %v3190 = vpop.f32.mrb[0].mxu0
        %v3191 = vadd.f32 0.0, %v3190
        %v3192 = vpop.f32.mrb[0].mxu0
        %3193 = vmatprep.mubr.f32.mxu0 0.0
        %v3194 = vand.u32 %v3115, 4294901760
        %v3195 = vsub.f32 %v3115, %v3194
        %v3196 = vand.u32 %v3195, 4294901760
        %v3197 = vsub.f32 %v3195, %v3196
        %v3198 = vand.u32 %v3197, 4294901760
        %3199 = vmatmul.mubr.f32.gmra.mrb[0].mxu0 %v3198
        %v3200 = vpop.f32.mrb[0].mxu0
        %v3201 = vadd.f32 0.0, %v3200
        %v3202 = vpop.f32.mrb[0].mxu0
        %3203 = vdwg.mxu0
        %3204 = vmatprep.subr.mxu0 0.0
        %v3205 = vand.u32 %v3106, 4294901760
        %v3206 = vsub.f32 %v3106, %v3205
        %v3207 = vand.u32 %v3206, 4294901760
        %v3208 = vsub.f32 %v3206, %v3207
        %v3209 = vand.u32 %v3208, 4294901760
        %3210 = vmatpush1.msra.mxu0 %v3209
        %3211 = vmatprep.subr.mxu0 0.0
        %v3212 = vand.u32 %v3108, 4294901760
        %v3213 = vsub.f32 %v3108, %v3212
        %v3214 = vand.u32 %v3213, 4294901760
        %v3215 = vsub.f32 %v3213, %v3214
        %v3216 = vand.u32 %v3215, 4294901760
        %3217 = vmatpush1.msra.mxu0 %v3216
        %3218 = vmatprep.subr.mxu0 0.0
        %3219 = vmatpush1.msra.mxu0 0.0
        %3220 = vmatprep.subr.mxu0 0.0
        %3221 = vmatpush1.msra.mxu0 0.0
        %3222 = vmatprep.subr.mxu0 0.0
        %3223 = vmatpush1.msra.mxu0 0.0
        %3224 = vmatprep.subr.mxu0 0.0
        %3225 = vmatpush1.msra.mxu0 0.0
        %3226 = vmatprep.subr.mxu0 0.0
        %3227 = vmatpush1.msra.mxu0 0.0
        %3228 = vmatprep.subr.mxu0 0.0
        %3229 = vmatpush1.msra.mxu0 0.0
        %3230 = vmatprep.subr.mxu0 0.0
        %3231 = vmatpush1.msra.mxu0 0.0
        %3232 = vmatprep.subr.mxu0 0.0
        %3233 = vmatpush1.msra.mxu0 0.0
        %3234 = vmatprep.subr.mxu0 0.0
        %3235 = vmatpush1.msra.mxu0 0.0
        %3236 = vmatprep.subr.mxu0 0.0
        %3237 = vmatpush1.msra.mxu0 0.0
        %3238 = vmatprep.subr.mxu0 0.0
        %3239 = vmatpush1.msra.mxu0 0.0
        %3240 = vmatprep.subr.mxu0 0.0
        %3241 = vmatpush1.msra.mxu0 0.0
        %3242 = vmatprep.subr.mxu0 0.0
        %3243 = vmatpush1.msra.mxu0 0.0
        %3244 = vmatprep.subr.mxu0 0.0
        %3245 = vmatpush1.msra.mxu0 0.0
        %3246 = vmatprep.subr.mxu0 0.0
        %3247 = vmatpush1.msra.mxu0 0.0
        %3248 = vmatprep.subr.mxu0 0.0
        %3249 = vmatpush1.msra.mxu0 0.0
        %3250 = vmatprep.subr.mxu0 0.0
        %3251 = vmatpush1.msra.mxu0 0.0
        %3252 = vmatprep.subr.mxu0 0.0
        %3253 = vmatpush1.msra.mxu0 0.0
        %3254 = vmatprep.subr.mxu0 0.0
        %3255 = vmatpush1.msra.mxu0 0.0
        %3256 = vmatprep.subr.mxu0 0.0
        %3257 = vmatpush1.msra.mxu0 0.0
        %3258 = vmatprep.subr.mxu0 0.0
        %3259 = vmatpush1.msra.mxu0 0.0
        %3260 = vmatprep.subr.mxu0 0.0
        %3261 = vmatpush1.msra.mxu0 0.0
        %3262 = vmatprep.subr.mxu0 0.0
        %3263 = vmatpush1.msra.mxu0 0.0
        %3264 = vmatprep.subr.mxu0 0.0
        %3265 = vmatpush1.msra.mxu0 0.0
        %3266 = vmatprep.subr.mxu0 0.0
        %3267 = vmatpush1.msra.mxu0 0.0
        %3268 = vmatprep.subr.mxu0 0.0
        %3269 = vmatpush1.msra.mxu0 0.0
        %3270 = vmatprep.subr.mxu0 0.0
        %3271 = vmatpush1.msra.mxu0 0.0
        %3272 = vmatprep.subr.mxu0 0.0
        %3273 = vmatpush1.msra.mxu0 0.0
        %3274 = vmatprep.subr.mxu0 0.0
        %3275 = vmatpush1.msra.mxu0 0.0
        %3276 = vmatprep.subr.mxu0 0.0
        %3277 = vmatpush1.msra.mxu0 0.0
        %3278 = vmatprep.mubr.f32.mxu0 0.0
        %v3279 = vand.u32 %v3112, 4294901760
        %3280 = vmatmul.mubr.f32.gmra.mrb[0].mxu0 %v3279
        %v3281 = vpop.f32.mrb[0].mxu0
        %v3282 = vadd.f32 %v3191, %v3281
        %v3283 = vpop.f32.mrb[0].mxu0
        %3284 = vmatprep.mubr.f32.mxu0 0.0
        %v3285 = vand.u32 %v3115, 4294901760
        %3286 = vmatmul.mubr.f32.gmra.mrb[0].mxu0 %v3285
        %v3287 = vpop.f32.mrb[0].mxu0
        %v3288 = vadd.f32 %v3201, %v3287
        %v3289 = vpop.f32.mrb[0].mxu0
        %3290 = vdwg.mxu0
        %3291 = vmatprep.subr.mxu0 0.0
        %v3292 = vand.u32 %v3106, 4294901760
        %v3293 = vsub.f32 %v3106, %v3292
        %3294 = vmatpush1.msra.mxu0 %v3293
        %3295 = vmatprep.subr.mxu0 0.0
        %v3296 = vand.u32 %v3108, 4294901760
        %v3297 = vsub.f32 %v3108, %v3296
        %3298 = vmatpush1.msra.mxu0 %v3297
        %3299 = vmatprep.subr.mxu0 0.0
        %3300 = vmatpush1.msra.mxu0 0.0
        %3301 = vmatprep.subr.mxu0 0.0
        %3302 = vmatpush1.msra.mxu0 0.0
        %3303 = vmatprep.subr.mxu0 0.0
        %3304 = vmatpush1.msra.mxu0 0.0
        %3305 = vmatprep.subr.mxu0 0.0
        %3306 = vmatpush1.msra.mxu0 0.0
        %3307 = vmatprep.subr.mxu0 0.0
        %3308 = vmatpush1.msra.mxu0 0.0
        %3309 = vmatprep.subr.mxu0 0.0
        %3310 = vmatpush1.msra.mxu0 0.0
        %3311 = vmatprep.subr.mxu0 0.0
        %3312 = vmatpush1.msra.mxu0 0.0
        %3313 = vmatprep.subr.mxu0 0.0
        %3314 = vmatpush1.msra.mxu0 0.0
        %3315 = vmatprep.subr.mxu0 0.0
        %3316 = vmatpush1.msra.mxu0 0.0
        %3317 = vmatprep.subr.mxu0 0.0
        %3318 = vmatpush1.msra.mxu0 0.0
        %3319 = vmatprep.subr.mxu0 0.0
        %3320 = vmatpush1.msra.mxu0 0.0
        %3321 = vmatprep.subr.mxu0 0.0
        %3322 = vmatpush1.msra.mxu0 0.0
        %3323 = vmatprep.subr.mxu0 0.0
        %3324 = vmatpush1.msra.mxu0 0.0
        %3325 = vmatprep.subr.mxu0 0.0
        %3326 = vmatpush1.msra.mxu0 0.0
        %3327 = vmatprep.subr.mxu0 0.0
        %3328 = vmatpush1.msra.mxu0 0.0
        %3329 = vmatprep.subr.mxu0 0.0
        %3330 = vmatpush1.msra.mxu0 0.0
        %3331 = vmatprep.subr.mxu0 0.0
        %3332 = vmatpush1.msra.mxu0 0.0
        %3333 = vmatprep.subr.mxu0 0.0
        %3334 = vmatpush1.msra.mxu0 0.0
        %3335 = vmatprep.subr.mxu0 0.0
        %3336 = vmatpush1.msra.mxu0 0.0
        %3337 = vmatprep.subr.mxu0 0.0
        %3338 = vmatpush1.msra.mxu0 0.0
        %3339 = vmatprep.subr.mxu0 0.0
        %3340 = vmatpush1.msra.mxu0 0.0
        %3341 = vmatprep.subr.mxu0 0.0
        %3342 = vmatpush1.msra.mxu0 0.0
        %3343 = vmatprep.subr.mxu0 0.0
        %3344 = vmatpush1.msra.mxu0 0.0
        %3345 = vmatprep.subr.mxu0 0.0
        %3346 = vmatpush1.msra.mxu0 0.0
        %3347 = vmatprep.subr.mxu0 0.0
        %3348 = vmatpush1.msra.mxu0 0.0
        %3349 = vmatprep.subr.mxu0 0.0
        %3350 = vmatpush1.msra.mxu0 0.0
        %3351 = vmatprep.subr.mxu0 0.0
        %3352 = vmatpush1.msra.mxu0 0.0
        %3353 = vmatprep.subr.mxu0 0.0
        %3354 = vmatpush1.msra.mxu0 0.0
        %3355 = vmatprep.subr.mxu0 0.0
        %3356 = vmatpush1.msra.mxu0 0.0
        %3357 = vmatprep.subr.mxu0 0.0
        %3358 = vmatpush1.msra.mxu0 0.0
        %3359 = vmatprep.mubr.f32.mxu0 0.0
        %v3360 = vand.u32 %v3112, 4294901760
        %v3361 = vsub.f32 %v3112, %v3360
        %3362 = vmatmul.mubr.f32.gmra.mrb[0].mxu0 %v3361
        %v3363 = vpop.f32.mrb[0].mxu0
        %v3364 = vadd.f32 %v3282, %v3363
        %v3365 = vpop.f32.mrb[0].mxu0
        %3366 = vmatprep.mubr.f32.mxu0 0.0
        %v3367 = vand.u32 %v3115, 4294901760
        %v3368 = vsub.f32 %v3115, %v3367
        %3369 = vmatmul.mubr.f32.gmra.mrb[0].mxu0 %v3368
        %v3370 = vpop.f32.mrb[0].mxu0
        %v3371 = vadd.f32 %v3288, %v3370
        %v3372 = vpop.f32.mrb[0].mxu0
        %3373 = vdwg.mxu0
        %3374 = vmatprep.subr.mxu0 0.0
        %v3375 = vand.u32 %v3106, 4294901760
        %3376 = vmatpush1.msra.mxu0 %v3375
        %3377 = vmatprep.subr.mxu0 0.0
        %v3378 = vand.u32 %v3108, 4294901760
        %3379 = vmatpush1.msra.mxu0 %v3378
        %3380 = vmatprep.subr.mxu0 0.0
        %3381 = vmatpush1.msra.mxu0 0.0
        %3382 = vmatprep.subr.mxu0 0.0
        %3383 = vmatpush1.msra.mxu0 0.0
        %3384 = vmatprep.subr.mxu0 0.0
        %3385 = vmatpush1.msra.mxu0 0.0
        %3386 = vmatprep.subr.mxu0 0.0
        %3387 = vmatpush1.msra.mxu0 0.0
        %3388 = vmatprep.subr.mxu0 0.0
        %3389 = vmatpush1.msra.mxu0 0.0
        %3390 = vmatprep.subr.mxu0 0.0
        %3391 = vmatpush1.msra.mxu0 0.0
        %3392 = vmatprep.subr.mxu0 0.0
        %3393 = vmatpush1.msra.mxu0 0.0
        %3394 = vmatprep.subr.mxu0 0.0
        %3395 = vmatpush1.msra.mxu0 0.0
        %3396 = vmatprep.subr.mxu0 0.0
        %3397 = vmatpush1.msra.mxu0 0.0
        %3398 = vmatprep.subr.mxu0 0.0
        %3399 = vmatpush1.msra.mxu0 0.0
        %3400 = vmatprep.subr.mxu0 0.0
        %3401 = vmatpush1.msra.mxu0 0.0
        %3402 = vmatprep.subr.mxu0 0.0
        %3403 = vmatpush1.msra.mxu0 0.0
        %3404 = vmatprep.subr.mxu0 0.0
        %3405 = vmatpush1.msra.mxu0 0.0
        %3406 = vmatprep.subr.mxu0 0.0
        %3407 = vmatpush1.msra.mxu0 0.0
        %3408 = vmatprep.subr.mxu0 0.0
        %3409 = vmatpush1.msra.mxu0 0.0
        %3410 = vmatprep.subr.mxu0 0.0
        %3411 = vmatpush1.msra.mxu0 0.0
        %3412 = vmatprep.subr.mxu0 0.0
        %3413 = vmatpush1.msra.mxu0 0.0
        %3414 = vmatprep.subr.mxu0 0.0
        %3415 = vmatpush1.msra.mxu0 0.0
        %3416 = vmatprep.subr.mxu0 0.0
        %3417 = vmatpush1.msra.mxu0 0.0
        %3418 = vmatprep.subr.mxu0 0.0
        %3419 = vmatpush1.msra.mxu0 0.0
        %3420 = vmatprep.subr.mxu0 0.0
        %3421 = vmatpush1.msra.mxu0 0.0
        %3422 = vmatprep.subr.mxu0 0.0
        %3423 = vmatpush1.msra.mxu0 0.0
        %3424 = vmatprep.subr.mxu0 0.0
        %3425 = vmatpush1.msra.mxu0 0.0
        %3426 = vmatprep.subr.mxu0 0.0
        %3427 = vmatpush1.msra.mxu0 0.0
        %3428 = vmatprep.subr.mxu0 0.0
        %3429 = vmatpush1.msra.mxu0 0.0
        %3430 = vmatprep.subr.mxu0 0.0
        %3431 = vmatpush1.msra.mxu0 0.0
        %3432 = vmatprep.subr.mxu0 0.0
        %3433 = vmatpush1.msra.mxu0 0.0
        %3434 = vmatprep.subr.mxu0 0.0
        %3435 = vmatpush1.msra.mxu0 0.0
        %3436 = vmatprep.subr.mxu0 0.0
        %3437 = vmatpush1.msra.mxu0 0.0
        %3438 = vmatprep.subr.mxu0 0.0
        %3439 = vmatpush1.msra.mxu0 0.0
        %3440 = vmatprep.mubr.f32.mxu0 0.0
        %v3441 = vand.u32 %v3112, 4294901760
        %v3442 = vsub.f32 %v3112, %v3441
        %v3443 = vand.u32 %v3442, 4294901760
        %3444 = vmatmul.mubr.f32.gmra.mrb[0].mxu0 %v3443
        %v3445 = vpop.f32.mrb[0].mxu0
        %v3446 = vadd.f32 %v3364, %v3445
        %v3447 = vpop.f32.mrb[0].mxu0
        %3448 = vmatprep.mubr.f32.mxu0 0.0
        %v3449 = vand.u32 %v3115, 4294901760
        %v3450 = vsub.f32 %v3115, %v3449
        %v3451 = vand.u32 %v3450, 4294901760
        %3452 = vmatmul.mubr.f32.gmra.mrb[0].mxu0 %v3451
        %v3453 = vpop.f32.mrb[0].mxu0
        %v3454 = vadd.f32 %v3371, %v3453
        %v3455 = vpop.f32.mrb[0].mxu0
        %3456 = vdwg.mxu0
        %3457 = vmatprep.subr.mxu0 0.0
        %v3458 = vand.u32 %v3106, 4294901760
        %v3459 = vsub.f32 %v3106, %v3458
        %v3460 = vand.u32 %v3459, 4294901760
        %3461 = vmatpush1.msra.mxu0 %v3460
        %3462 = vmatprep.subr.mxu0 0.0
        %v3463 = vand.u32 %v3108, 4294901760
        %v3464 = vsub.f32 %v3108, %v3463
        %v3465 = vand.u32 %v3464, 4294901760
        %3466 = vmatpush1.msra.mxu0 %v3465
        %3467 = vmatprep.subr.mxu0 0.0
        %3468 = vmatpush1.msra.mxu0 0.0
        %3469 = vmatprep.subr.mxu0 0.0
        %3470 = vmatpush1.msra.mxu0 0.0
        %3471 = vmatprep.subr.mxu0 0.0
        %3472 = vmatpush1.msra.mxu0 0.0
        %3473 = vmatprep.subr.mxu0 0.0
        %3474 = vmatpush1.msra.mxu0 0.0
        %3475 = vmatprep.subr.mxu0 0.0
        %3476 = vmatpush1.msra.mxu0 0.0
        %3477 = vmatprep.subr.mxu0 0.0
        %3478 = vmatpush1.msra.mxu0 0.0
        %3479 = vmatprep.subr.mxu0 0.0
        %3480 = vmatpush1.msra.mxu0 0.0
        %3481 = vmatprep.subr.mxu0 0.0
        %3482 = vmatpush1.msra.mxu0 0.0
        %3483 = vmatprep.subr.mxu0 0.0
        %3484 = vmatpush1.msra.mxu0 0.0
        %3485 = vmatprep.subr.mxu0 0.0
        %3486 = vmatpush1.msra.mxu0 0.0
        %3487 = vmatprep.subr.mxu0 0.0
        %3488 = vmatpush1.msra.mxu0 0.0
        %3489 = vmatprep.subr.mxu0 0.0
        %3490 = vmatpush1.msra.mxu0 0.0
        %3491 = vmatprep.subr.mxu0 0.0
        %3492 = vmatpush1.msra.mxu0 0.0
        %3493 = vmatprep.subr.mxu0 0.0
        %3494 = vmatpush1.msra.mxu0 0.0
        %3495 = vmatprep.subr.mxu0 0.0
        %3496 = vmatpush1.msra.mxu0 0.0
        %3497 = vmatprep.subr.mxu0 0.0
        %3498 = vmatpush1.msra.mxu0 0.0
        %3499 = vmatprep.subr.mxu0 0.0
        %3500 = vmatpush1.msra.mxu0 0.0
        %3501 = vmatprep.subr.mxu0 0.0
        %3502 = vmatpush1.msra.mxu0 0.0
        %3503 = vmatprep.subr.mxu0 0.0
        %3504 = vmatpush1.msra.mxu0 0.0
        %3505 = vmatprep.subr.mxu0 0.0
        %3506 = vmatpush1.msra.mxu0 0.0
        %3507 = vmatprep.subr.mxu0 0.0
        %3508 = vmatpush1.msra.mxu0 0.0
        %3509 = vmatprep.subr.mxu0 0.0
        %3510 = vmatpush1.msra.mxu0 0.0
        %3511 = vmatprep.subr.mxu0 0.0
        %3512 = vmatpush1.msra.mxu0 0.0
        %3513 = vmatprep.subr.mxu0 0.0
        %3514 = vmatpush1.msra.mxu0 0.0
        %3515 = vmatprep.subr.mxu0 0.0
        %3516 = vmatpush1.msra.mxu0 0.0
        %3517 = vmatprep.subr.mxu0 0.0
        %3518 = vmatpush1.msra.mxu0 0.0
        %3519 = vmatprep.subr.mxu0 0.0
        %3520 = vmatpush1.msra.mxu0 0.0
        %3521 = vmatprep.subr.mxu0 0.0
        %3522 = vmatpush1.msra.mxu0 0.0
        %3523 = vmatprep.subr.mxu0 0.0
        %3524 = vmatpush1.msra.mxu0 0.0
        %3525 = vmatprep.subr.mxu0 0.0
        %3526 = vmatpush1.msra.mxu0 0.0
        %3527 = vmatprep.mubr.f32.mxu0 0.0
        %v3528 = vand.u32 %v3112, 4294901760
        %3529 = vmatmul.mubr.f32.gmra.mrb[0].mxu0 %v3528
        %v3530 = vpop.f32.mrb[0].mxu0
        %v3531 = vadd.f32 %v3446, %v3530
        %v3532 = vpop.f32.mrb[0].mxu0
        %3533 = vmatprep.mubr.f32.mxu0 0.0
        %v3534 = vand.u32 %v3115, 4294901760
        %3535 = vmatmul.mubr.f32.gmra.mrb[0].mxu0 %v3534
        %v3536 = vpop.f32.mrb[0].mxu0
        %v3537 = vadd.f32 %v3454, %v3536
        %v3538 = vpop.f32.mrb[0].mxu0
        %3539 = vdwg.mxu0
        %3540 = vmatprep.subr.mxu0 0.0
        %v3541 = vand.u32 %v3106, 4294901760
        %3542 = vmatpush1.msra.mxu0 %v3541
        %3543 = vmatprep.subr.mxu0 0.0
        %v3544 = vand.u32 %v3108, 4294901760
        %3545 = vmatpush1.msra.mxu0 %v3544
        %3546 = vmatprep.subr.mxu0 0.0
        %3547 = vmatpush1.msra.mxu0 0.0
        %3548 = vmatprep.subr.mxu0 0.0
        %3549 = vmatpush1.msra.mxu0 0.0
        %3550 = vmatprep.subr.mxu0 0.0
        %3551 = vmatpush1.msra.mxu0 0.0
        %3552 = vmatprep.subr.mxu0 0.0
        %3553 = vmatpush1.msra.mxu0 0.0
        %3554 = vmatprep.subr.mxu0 0.0
        %3555 = vmatpush1.msra.mxu0 0.0
        %3556 = vmatprep.subr.mxu0 0.0
        %3557 = vmatpush1.msra.mxu0 0.0
        %3558 = vmatprep.subr.mxu0 0.0
        %3559 = vmatpush1.msra.mxu0 0.0
        %3560 = vmatprep.subr.mxu0 0.0
        %3561 = vmatpush1.msra.mxu0 0.0
        %3562 = vmatprep.subr.mxu0 0.0
        %3563 = vmatpush1.msra.mxu0 0.0
        %3564 = vmatprep.subr.mxu0 0.0
        %3565 = vmatpush1.msra.mxu0 0.0
        %3566 = vmatprep.subr.mxu0 0.0
        %3567 = vmatpush1.msra.mxu0 0.0
        %3568 = vmatprep.subr.mxu0 0.0
        %3569 = vmatpush1.msra.mxu0 0.0
        %3570 = vmatprep.subr.mxu0 0.0
        %3571 = vmatpush1.msra.mxu0 0.0
        %3572 = vmatprep.subr.mxu0 0.0
        %3573 = vmatpush1.msra.mxu0 0.0
        %3574 = vmatprep.subr.mxu0 0.0
        %3575 = vmatpush1.msra.mxu0 0.0
        %3576 = vmatprep.subr.mxu0 0.0
        %3577 = vmatpush1.msra.mxu0 0.0
        %3578 = vmatprep.subr.mxu0 0.0
        %3579 = vmatpush1.msra.mxu0 0.0
        %3580 = vmatprep.subr.mxu0 0.0
        %3581 = vmatpush1.msra.mxu0 0.0
        %3582 = vmatprep.subr.mxu0 0.0
        %3583 = vmatpush1.msra.mxu0 0.0
        %3584 = vmatprep.subr.mxu0 0.0
        %3585 = vmatpush1.msra.mxu0 0.0
        %3586 = vmatprep.subr.mxu0 0.0
        %3587 = vmatpush1.msra.mxu0 0.0
        %3588 = vmatprep.subr.mxu0 0.0
        %3589 = vmatpush1.msra.mxu0 0.0
        %3590 = vmatprep.subr.mxu0 0.0
        %3591 = vmatpush1.msra.mxu0 0.0
        %3592 = vmatprep.subr.mxu0 0.0
        %3593 = vmatpush1.msra.mxu0 0.0
        %3594 = vmatprep.subr.mxu0 0.0
        %3595 = vmatpush1.msra.mxu0 0.0
        %3596 = vmatprep.subr.mxu0 0.0
        %3597 = vmatpush1.msra.mxu0 0.0
        %3598 = vmatprep.subr.mxu0 0.0
        %3599 = vmatpush1.msra.mxu0 0.0
        %3600 = vmatprep.subr.mxu0 0.0
        %3601 = vmatpush1.msra.mxu0 0.0
        %3602 = vmatprep.subr.mxu0 0.0
        %3603 = vmatpush1.msra.mxu0 0.0
        %3604 = vmatprep.subr.mxu0 0.0
        %3605 = vmatpush1.msra.mxu0 0.0
        %3606 = vmatprep.mubr.f32.mxu0 0.0
        %v3607 = vand.u32 %v3112, 4294901760
        %3608 = vmatmul.mubr.f32.gmra.mrb[0].mxu0 %v3607
        %v3609 = vpop.f32.mrb[0].mxu0
        %v3610 = vadd.f32 %v3531, %v3609
        %v3611 = vpop.f32.mrb[0].mxu0
        %3612 = vmatprep.mubr.f32.mxu0 0.0
        %v3613 = vand.u32 %v3115, 4294901760
        %3614 = vmatmul.mubr.f32.gmra.mrb[0].mxu0 %v3613
        %v3615 = vpop.f32.mrb[0].mxu0
        %v3616 = vadd.f32 %v3537, %v3615
        %v3617 = vpop.f32.mrb[0].mxu0
        %3618 = vdwg.mxu0
        %3621 = vrot.lane.b32.xlu0 %v3610, 24
        %v3622 = vpop.permute.xlu0 %3621
        %3623 = vrot.lane.b32.xlu0 %v3616, 24
        %v3624 = vpop.permute.xlu0 %3623
        %vm3627 = vcmask 261312
        %3628 = vst.msk [vmem:[%s269] sm:$0xff] %vm3627, %v3622
        %3629 = vst.msk [vmem:[%s269 + $0x8] sm:$0xff] %vm3627, %v3624
        %s3630 = sand.u32 %s126, 1
        %s3631 = scalar_lea.sflag [#allocation4], %s3630
        %s3632 = sand.u32 %s126, 1
        %s3633 = smul.addr %s3632, 16
        %s3634 = scalar_lea.vmem [#allocation8], %s3633
        // Predicated region
        $region49: #{multi_head_gat.1} parent=35 // pred_check
          %p3635 = pneg %p136
        $region50: #{multi_head_gat.1} parent=35 // pred_check_branch
          %3637 = sbr.rel (%p3635) target = $region52
        $region51: #{multi_head_gat.1} parent=35 // pred_region
          %s3639 = ssub.s32 256, 256
          %3640 = vsyncadd %s3631, %s3639
          %s3641 = smul.addr %s24, 2
          %s3642 = smul.addr %s3641, 128
          %s3643 = scalar_lea.hbm %s4, %s3642
          %s3644 = sshll.u32 %s3634, 4
          %s3645 = int_to_ptr.vmem [resolvable:$true] %s3644
          %3650 = dma.vmem_to_hbm [thread:$0]  %s3645, 256, %s3643, %s3631, 128, 128, 8
        $region52: #{multi_head_gat.1} parent=35 // pred_fallthru
          _
      $region36: #{multi_head_gat.1} parent=5 // pred_fallthru
        _
      %p3651 = scmp.le.s32.totalorder 2, %s19
      // Predicated region
      $region53: #{multi_head_gat.1} parent=5 // pred_check
        %p3652 = pneg %p3651
      $region54: #{multi_head_gat.1} parent=5 // pred_check_branch
        %3654 = sbr.rel (%p3652) target = $region56
      $region55: #{multi_head_gat.1} parent=5 // pred_region
        %s3655 = ssub.s32 %s19, 2
        // Predicated region
        $region57: #{multi_head_gat.1} parent=55 // pred_check
          %p3656 = pneg %p142
        $region58: #{multi_head_gat.1} parent=55 // pred_check_branch
          %3658 = sbr.rel (%p3656) target = $region60
        $region59: #{multi_head_gat.1} parent=55 // pred_region
          %s3659 = sand.u32 %s127, 1
          %s3660 = scalar_lea.sflag [#allocation4], %s3659
          %s3661 = sand.u32 %s127, 1
          %s3662 = smul.addr %s3661, 16
          %s3663 = scalar_lea.vmem [#allocation8], %s3662
          %3664 = dma.done %s3660, 256
        $region60: #{multi_head_gat.1} parent=55 // pred_fallthru
          _
      $region56: #{multi_head_gat.1} parent=5 // pred_fallthru
        _
    $region6: #{multi_head_gat.1} parent=1 // loop_footer
      %s23 = sadd.s32 1, %s19
    $region7: #{multi_head_gat.1} parent=1 // loop_footer_branch
      %18 = sbr.rel target = $region3
    $region8: #{multi_head_gat.1} parent=1 // loop_exit
      _
    %3665 = vsyncpa [#allocation3], 1
    %s3666 = scalar_lea.sflag [#allocation3], 1
    %3667 = vsyncpa %s3666, 1
    %3668 = vsyncpa [#allocation6], 1
    %s3669 = scalar_lea.sflag [#allocation6], 1
    %3670 = vsyncpa %s3669, 1
    %3671 = vsyncpa [#allocation4], 1
    %s3672 = scalar_lea.sflag [#allocation4], 1
    %3673 = vsyncpa %s3672, 1

</llo_original>
